<compile_context>
chip_gen: v7x
topology: tpu7x:2x2x1
jax: 0.10.0
libtpu: 0.0.40
codegen_flags: <defaults>
</compile_context>

<pallas_src>
import functools
import math

import jax
import jax.numpy as jnp
from jax import lax
from jax.experimental import pallas as pl
from jax.experimental.pallas import tpu as pltpu

_MIB = 2 ** 20


def _round_up(x, k):
    return (x + k - 1) // k * k


def _sublane(dtype):
    return {1: 32, 2: 16}.get(jnp.dtype(dtype).itemsize, 8)


def _vmem_limit_bytes(per_step_bytes):
    """Scoped VMEM request, capped at 75% of physical VMEM (v7x-safe)."""
    cap = None
    try:
        cap = int(getattr(pltpu.get_tpu_info(), "vmem_capacity_bytes", 0)) or None
    except Exception:
        cap = None
    cap = (cap or 64 * _MIB) * 3 // 4          # unknown chip -> 48 MiB (safe everywhere)
    want = max(4 * int(per_step_bytes) + 8 * _MIB, 32 * _MIB)
    return int(min(want, cap))


# ---------------------------------------------------------------------------
# Weight row permutation: (c, kh, kw) -> (kh, kw, c) so the activation can keep
# channel-last (lane-dense) layout.  One-time O(K*N).
# ---------------------------------------------------------------------------
def permute_weight_rows(weight, C, m):
    K, N = weight.shape
    assert K == C * m * m
    return jnp.transpose(weight.reshape(C, m, m, N), (1, 2, 0, 3)).reshape(K, N)


# ---------------------------------------------------------------------------
# Fallback data re-layout (XLA): window2image + non-overlapping unfold,
# channel-LAST, feature order (kh, kw, c).
# ---------------------------------------------------------------------------
def merge_windows_channels_last(x, m):
    bs, num_window, num_patch, C = x.shape
    ws = int(round(math.sqrt(num_patch)))
    s = int(round(math.sqrt(num_window)))
    assert s * s == num_window and ws * ws == num_patch
    H = s * ws
    assert H % m == 0, "image size must be divisible by merge_size"
    if ws % m == 0:
        q = ws // m
        t = x.reshape(bs, s, s, q, m, q, m, C)           # (b, wr, wc, cr, kh, cc, kw, C)
        t = jnp.transpose(t, (0, 1, 3, 2, 5, 4, 6, 7))   # (b, wr, cr, wc, cc, kh, kw, C)
        return t.reshape(bs, (H // m) * (H // m), m * m * C)
    img = x.reshape(bs, s, s, ws, ws, C)
    img = jnp.transpose(img, (0, 1, 3, 2, 4, 5)).reshape(bs, H, H, C)
    u = img.reshape(bs, H // m, m, H // m, m, C)
    u = jnp.transpose(u, (0, 1, 3, 2, 4, 5))
    return u.reshape(bs, (H // m) * (H // m), m * m * C)


# ---------------------------------------------------------------------------
# Fused kernel: window-merge gather (in VMEM) + matmul + bias.
# ---------------------------------------------------------------------------
def _fused_merge_linear_kernel(x_ref, w_ref, b_ref, o_ref, *,
                               G, s, q, m, C, compute_dtype, precision):
    # x_ref: (1, G, s, ws*ws, C)   G window-rows, raw windowed layout
    # w_ref: (K, N) resident       b_ref: (1, N) f32
    # o_ref: (G*q*s*q, N)          rows already in final (wr, cr, wc, cc) order
    X = x_ref[0]                                      # (G, s, ws*ws, C)
    X = X.reshape(G, s, q, m, q, m, C)                # (g, wc, cr, kh, cc, kw, c)
    X = jnp.transpose(X, (0, 2, 1, 4, 3, 5, 6))       # (g, cr, wc, cc, kh, kw, c)
    A = X.reshape(G * q * s * q, m * m * C)           # rows (g,cr,wc,cc) / cols (kh,kw,c)
    if compute_dtype is not None and A.dtype != jnp.dtype(compute_dtype):
        A = A.astype(compute_dtype)                   # bf16 MXU feed; input DMA stayed native
    acc = jnp.dot(A, w_ref[...], preferred_element_type=jnp.float32,
                  precision=precision)
    o_ref[...] = (acc + b_ref[...]).astype(o_ref.dtype)


def _choose_rows_per_step(bs, s, q, sub, target_steps=8, max_rows=2048):
    """Largest G (dividing s) with G*q*s*q % sub == 0 and enough grid steps."""
    best = None
    for G in range(1, s + 1):
        if s % G:
            continue
        rows = G * q * s * q
        if rows % sub:
            continue
        steps = bs * (s // G)
        if best is None or (steps >= target_steps and rows <= max_rows):
            best = G
    return best


# ---------------------------------------------------------------------------
# Fallback Pallas kernel: y = x @ W + b, row tiled, weight/bias VMEM-resident.
# ---------------------------------------------------------------------------
def _linear_kernel(x_ref, w_ref, b_ref, o_ref, *, precision):
    acc = jnp.dot(x_ref[...], w_ref[...],
                  preferred_element_type=jnp.float32, precision=precision)
    o_ref[...] = (acc + b_ref[...]).astype(o_ref.dtype)


def pallas_linear(x2d, w, b, *, out_dtype=None, precision=None, tm=None, tn=None,
                  allow_input_fusion=False, target_steps=8):
    M, K = x2d.shape
    Kw, N = w.shape
    assert K == Kw and b.shape == (N,)
    out_dtype = out_dtype or x2d.dtype
    in_it = jnp.dtype(x2d.dtype).itemsize
    w_it = jnp.dtype(w.dtype).itemsize
    out_it = jnp.dtype(out_dtype).itemsize

    sub = max(_sublane(x2d.dtype), _sublane(out_dtype))
    if tm is None:
        tm = _round_up(pl.cdiv(M, target_steps), sub)   # ~4+ steps per TC on dual-TC
        tm = max(sub, min(tm, 512))
    tm = min(_round_up(tm, sub), _round_up(M, sub))

    # Whole weight + bias resident in VMEM (never re-streamed) when they fit;
    # only tile N for pathologically wide layers.
    if tn is None:
        resident = 2 * K * N * w_it + 2 * tm * (K * in_it + N * (4 + out_it))
        if resident <= 24 * _MIB or N % 128:
            tn = N
        elif N % 256 == 0:
            tn = 256
        else:
            tn = 128

    b2d = b.astype(jnp.float32).reshape(1, N)
    grid = (pl.cdiv(M, tm), pl.cdiv(N, tn))      # ragged last row block is masked

    per_step = (2 * tm * K * in_it + 2 * K * tn * w_it + 2 * tn * 4
                + 2 * tm * tn * (4 + out_it))
    cost = pl.CostEstimate(
        flops=2 * M * K * N, transcendentals=0,
        bytes_accessed=M * K * in_it + K * N * w_it + N * 4 + M * N * out_it)

    cp = dict(dimension_semantics=("parallel", "parallel"),
              vmem_limit_bytes=_vmem_limit_bytes(per_step))
    if allow_input_fusion:
        # Let XLA fold the producing (spatial-only) transpose into the input DMA.
        cp["allow_input_fusion"] = [True, False, False]

    return pl.pallas_call(
        functools.partial(_linear_kernel, precision=precision),
        out_shape=jax.ShapeDtypeStruct((M, N), out_dtype),
        grid=grid,
        in_specs=[
            pl.BlockSpec((tm, K), lambda i, j: (i, 0)),
            pl.BlockSpec((K, tn), lambda i, j: (0, j)),
            pl.BlockSpec((1, tn), lambda i, j: (0, j)),
        ],
        out_specs=pl.BlockSpec((tm, tn), lambda i, j: (i, j)),
        compiler_params=pltpu.CompilerParams(**cp),
        cost_estimate=cost,
    )(x2d, w, b2d)


# ---------------------------------------------------------------------------
# Forward implementations (jitted so casts / reshapes fuse with the call).
# ---------------------------------------------------------------------------
def _forward_core(x, weight, bias, *, m, compute_dtype, out_dtype, precision, mode):
    bs, num_window, num_patch, C = x.shape
    ws = int(round(math.sqrt(num_patch)))
    s = int(round(math.sqrt(num_window)))
    assert s * s == num_window and ws * ws == num_patch, "window grid must be square"
    K, N = weight.shape
    assert K == C * m * m
    H = s * ws
    assert H % m == 0
    out_dtype = out_dtype or compute_dtype or x.dtype
    L = (H // m) * (H // m)

    w_perm = permute_weight_rows(weight, C, m)           # (kh, kw, c) row order
    if compute_dtype is not None:
        w_perm = w_perm.astype(compute_dtype)
    b2d = bias.astype(jnp.float32).reshape(1, N)

    if mode == "fused":
        assert ws % m == 0
        q = ws // m
        sub = max(_sublane(out_dtype), _sublane(x.dtype))
        G = _choose_rows_per_step(bs, s, q, sub)
        assert G is not None
        rows = G * q * s * q                              # output rows per grid step
        steps_per_batch = s // G
        x5 = x.reshape(bs, s, s, ws * ws, C)              # zero-copy view

        in_it = jnp.dtype(x.dtype).itemsize
        w_it = jnp.dtype(w_perm.dtype).itemsize
        out_it = jnp.dtype(out_dtype).itemsize
        per_step = (2 * G * s * ws * ws * C * in_it + 2 * K * N * w_it
                    + 2 * rows * N * (4 + out_it) + 2 * rows * K * 4)
        cost = pl.CostEstimate(
            flops=2 * bs * L * K * N, transcendentals=0,
            bytes_accessed=(x.size * in_it + K * N * w_it + N * 4
                            + bs * L * N * out_it))

        out2 = pl.pallas_call(
            functools.partial(_fused_merge_linear_kernel, G=G, s=s, q=q, m=m, C=C,
                              compute_dtype=compute_dtype, precision=precision),
            out_shape=jax.ShapeDtypeStruct((bs * L, N), out_dtype),
            grid=(bs, steps_per_batch),
            in_specs=[
                pl.BlockSpec((1, G, s, ws * ws, C), lambda b, i: (b, i, 0, 0, 0)),
                pl.BlockSpec((K, N), lambda b, i: (0, 0)),    # weight stays resident
                pl.BlockSpec((1, N), lambda b, i: (0, 0)),    # bias stays resident
            ],
            # Rows of this step land contiguously in the flat (bs*L, N) output.
            out_specs=pl.BlockSpec((rows, N),
                                   lambda b, i: (b * steps_per_batch + i, 0)),
            compiler_params=pltpu.CompilerParams(
                dimension_semantics=("parallel", "parallel"),
                vmem_limit_bytes=_vmem_limit_bytes(per_step)),
            cost_estimate=cost,
        )(x5, w_perm, b2d)
        return out2.reshape(bs, L, N)

    # Two-stage path: XLA lane-dense re-layout + Pallas linear.
    merged = merge_windows_channels_last(x, m)            # (bs, L, K)
    flat = merged.reshape(bs * L, K)
    if compute_dtype is not None:
        flat = flat.astype(compute_dtype)                 # fuses with the transpose under jit
    out = pallas_linear(flat, w_perm, bias, out_dtype=out_dtype, precision=precision,
                        allow_input_fusion=(mode == "two_stage_fuse_input"))
    return out.reshape(bs, L, N)


_forward_jit = jax.jit(
    _forward_core,
    static_argnames=("m", "compute_dtype", "out_dtype", "precision", "mode"))


def patch_merging_forward(x, weight, bias, merge_size, *, compute_dtype=None,
                          out_dtype=None, precision=None, fuse=True):
    """PatchMerging forward.  weight: (C*m*m, N) in PyTorch (c,kh,kw) row order.

    compute_dtype=jnp.bfloat16 enables the bf16 MXU path on any generation
    (f32 accumulation + f32 bias add); out_dtype then defaults to bf16.
    """
    bs, num_window, num_patch, C = x.shape
    ws = int(round(math.sqrt(num_patch)))
    s = int(round(math.sqrt(num_window)))
    assert s * s == num_window and ws * ws == num_patch, "window grid must be square"
    m = int(merge_size)
    assert (s * ws) % m == 0

    od = out_dtype or compute_dtype or x.dtype
    sub = max(_sublane(od), _sublane(x.dtype))

    modes = []
    if fuse and ws % m == 0 and _choose_rows_per_step(bs, s, ws // m, sub) is not None:
        modes.append("fused")
    modes += ["two_stage_fuse_input", "two_stage"]

    kwargs = dict(m=m, compute_dtype=compute_dtype, out_dtype=out_dtype,
                  precision=precision)
    for mode in modes[:-1]:
        try:
            out = _forward_jit(x, weight, bias, mode=mode, **kwargs)
            jax.block_until_ready(out)   # surface lowering/runtime issues here
            return out
        except Exception:
            continue                      # fall back to the next (safer) variant
    return _forward_jit(x, weight, bias, mode=modes[-1], **kwargs)


# ---------------------------------------------------------------------------
# Pure-JAX reference replicating the PyTorch module exactly.
# ---------------------------------------------------------------------------
def reference_forward(x, weight, bias, m):
    bs, num_window, num_patch, C = x.shape
    ws = int(round(math.sqrt(num_patch)))
    s = int(round(math.sqrt(num_window)))
    H = s * ws
    img = x.reshape(bs, s, s, ws, ws, C)
    img = jnp.transpose(img, (0, 1, 3, 2, 4, 5)).reshape(bs, H * H, C)
    img = jnp.transpose(img, (0, 2, 1)).reshape(bs, C, H, H)          # NCHW
    u = img.reshape(bs, C, H // m, m, H // m, m)
    u = jnp.transpose(u, (0, 2, 4, 1, 3, 5)).reshape(bs, (H // m) ** 2, C * m * m)
    return jnp.dot(u, weight, precision=lax.Precision.HIGHEST) + bias


if __name__ == "__main__":
    model_dim = 64            # patch_depth / C
    merge_size = 2
    bs = 2
    num_window = 256          # 16 x 16 windows
    num_patch_in_window = 16  # 4 x 4 patches per window -> 64 x 64 image
    in_features = model_dim * merge_size * merge_size                 # 256
    out_features = int(model_dim * merge_size * merge_size * 0.5)     # 128

    key = jax.random.PRNGKey(0)
    kx, kw, kb = jax.random.split(key, 3)
    x = jax.random.normal(
        kx, (bs, num_window, num_patch_in_window, model_dim), dtype=jnp.float32)

    bound = 1.0 / math.sqrt(in_features)
    # PyTorch stores weight as (out, in); kept pre-transposed here as (in, out)
    # with the original (c, kh, kw) row order.
    weight = jax.random.uniform(kw, (in_features, out_features), jnp.float32,
                                minval=-bound, maxval=bound)
    bias = jax.random.uniform(kb, (out_features,), jnp.float32,
                              minval=-bound, maxval=bound)

    ref = reference_forward(x, weight, bias, merge_size)
    H = int(math.sqrt(num_window)) * int(math.sqrt(num_patch_in_window))
    L = (H // merge_size) ** 2

    # f32 path (fused window-merge + matmul), bit-accuracy precision.
    out = jax.block_until_ready(
        patch_merging_forward(x, weight, bias, merge_size,
                              precision=lax.Precision.HIGHEST))
    assert out.shape == (bs, L, out_features)
    assert jnp.allclose(out, ref, atol=2e-4, rtol=2e-4), "f32 fused path mismatch"

    # Proven two-stage path (also the automatic fallback) must stay correct.
    out_ts = jax.block_until_ready(
        patch_merging_forward(x, weight, bias, merge_size, fuse=False,
                              precision=lax.Precision.HIGHEST))
    assert jnp.allclose(out_ts, ref, atol=2e-4, rtol=2e-4), "two-stage path mismatch"

    # bf16 MXU perf path (any generation): f32 accumulate, bf16 stores.
    out_bf16 = jax.block_until_ready(
        patch_merging_forward(x, weight, bias, merge_size,
                              compute_dtype=jnp.bfloat16))
    assert out_bf16.dtype == jnp.bfloat16
    assert jnp.allclose(out_bf16.astype(jnp.float32), ref,
                        atol=5e-2, rtol=5e-2), "bf16 path mismatch"

    print("KERNEL_OK")
</pallas_src>

<mosaic_0001>
module attributes {stable_mosaic.version = 11 : i64} {
  func.func @_fused_merge_linear_kernel(%arg0: i32, %arg1: i32, %arg2: memref<1x4x16x16x64xf32, #tpu.memory_space<vmem>>, %arg3: memref<256x128xf32, #tpu.memory_space<vmem>>, %arg4: memref<1x128xf32, #tpu.memory_space<vmem>>, %arg5: memref<256x128xf32, #tpu.memory_space<vmem>>) attributes {dimension_semantics = [#tpu.dimension_semantics<parallel>, #tpu.dimension_semantics<parallel>], iteration_bounds = array<i64: 2, 4>, scalar_prefetch = 0 : i64, scratch_operands = 0 : i64, tpu.core_type = #tpu.core_type<tc>, window_params = [{transform_indices = @transform_0, window_bounds = array<i64: 1, 4, 16, 16, 64>}, {pipeline_mode = #tpu.pipeline_mode<synchronous>, transform_indices = @transform_1, window_bounds = array<i64: 256, 128>}, {pipeline_mode = #tpu.pipeline_mode<synchronous>, transform_indices = @transform_2, window_bounds = array<i64: 1, 128>}, {transform_indices = @transform_3, window_bounds = array<i64: 256, 128>}]} {
    %c0 = arith.constant 0 : index
    %c0_0 = arith.constant 0 : index
    %c0_1 = arith.constant 0 : index
    %c0_2 = arith.constant 0 : index
    %c0_3 = arith.constant 0 : index
    %0 = vector.load %arg2[%c0, %c0_0, %c0_1, %c0_2, %c0_3] : memref<1x4x16x16x64xf32, #tpu.memory_space<vmem>>, vector<1x4x16x16x64xf32>
    %1 = vector.shape_cast %0 : vector<1x4x16x16x64xf32> to vector<4x16x16x64xf32>
    %2 = vector.shape_cast %1 : vector<4x16x16x64xf32> to vector<4x16x2x2x2x2x64xf32>
    %3 = tpu.transpose %2, [0, 2, 1, 4, 3, 5, 6] : vector<4x16x2x2x2x2x64xf32> -> vector<4x2x16x2x2x2x64xf32>
    %4 = vector.shape_cast %3 : vector<4x2x16x2x2x2x64xf32> to vector<256x256xf32>
    %c0_4 = arith.constant 0 : index
    %c0_5 = arith.constant 0 : index
    %5 = vector.load %arg3[%c0_4, %c0_5] : memref<256x128xf32, #tpu.memory_space<vmem>>, vector<256x128xf32>
    %cst = arith.constant dense<0.000000e+00> : vector<256x128xf32>
    %6 = tpu.matmul %4, %5, %cst {dimension_numbers = #tpu.dot_dimension_numbers<[1], [0], [0], [1], [0, 0, 1, 1], [], []>, precision = #tpu.contract_precision<fp32>} : vector<256x256xf32>, vector<256x128xf32>, vector<256x128xf32> -> vector<256x128xf32>
    %c0_6 = arith.constant 0 : index
    %c0_7 = arith.constant 0 : index
    %7 = vector.load %arg4[%c0_6, %c0_7] : memref<1x128xf32, #tpu.memory_space<vmem>>, vector<1x128xf32>
    %8 = vector.broadcast %7 : vector<1x128xf32> to vector<256x128xf32>
    %9 = arith.addf %6, %8 : vector<256x128xf32>
    %c0_8 = arith.constant 0 : index
    %c0_9 = arith.constant 0 : index
    %10 = vector.load %arg5[%c0_8, %c0_9] : memref<256x128xf32, #tpu.memory_space<vmem>>, vector<256x128xf32>
    tpu.vector_store %arg5[%c0_8, %c0_9], %9 {strides = array<i32>} : memref<256x128xf32, #tpu.memory_space<vmem>>, vector<256x128xf32>,
    return
  }
  func.func @transform_0(%arg0: i32, %arg1: i32) -> (i32, i32, i32, i32, i32) {
    %c0_i32 = arith.constant 0 : i32
    %c0_i32_0 = arith.constant 0 : i32
    %c0_i32_1 = arith.constant 0 : i32
    %c0_i32_2 = arith.constant 0 : i32
    return %arg0, %arg1, %c0_i32, %c0_i32_0, %c0_i32_1 : i32, i32, i32, i32, i32
  }
  func.func @transform_1(%arg0: i32, %arg1: i32) -> (i32, i32) {
    %c0_i32 = arith.constant 0 : i32
    %c0_i32_0 = arith.constant 0 : i32
    %c0_i32_1 = arith.constant 0 : i32
    return %c0_i32, %c0_i32_0 : i32, i32
  }
  func.func @transform_2(%arg0: i32, %arg1: i32) -> (i32, i32) {
    %c0_i32 = arith.constant 0 : i32
    %c0_i32_0 = arith.constant 0 : i32
    %c0_i32_1 = arith.constant 0 : i32
    return %c0_i32, %c0_i32_0 : i32, i32
  }
  func.func @transform_3(%arg0: i32, %arg1: i32) -> (i32, i32) {
    %c4_i32 = arith.constant 4 : i32
    %0 = arith.muli %arg0, %c4_i32 : i32
    %1 = arith.addi %0, %arg1 : i32
    %c0_i32 = arith.constant 0 : i32
    %c0_i32_0 = arith.constant 0 : i32
    return %1, %c0_i32 : i32, i32
  }
}

module attributes {stable_mosaic.version = 11 : i64} {
  func.func @_linear_kernel(%arg0: i32, %arg1: i32, %arg2: memref<256x256xf32, #tpu.memory_space<vmem>>, %arg3: memref<256x128xf32, #tpu.memory_space<vmem>>, %arg4: memref<1x128xf32, #tpu.memory_space<vmem>>, %arg5: memref<256x128xf32, #tpu.memory_space<vmem>>) attributes {dimension_semantics = [#tpu.dimension_semantics<parallel>, #tpu.dimension_semantics<parallel>], iteration_bounds = array<i64: 8, 1>, scalar_prefetch = 0 : i64, scratch_operands = 0 : i64, tpu.core_type = #tpu.core_type<tc>, window_params = [{transform_indices = @transform_0, window_bounds = array<i64: 256, 256>}, {transform_indices = @transform_1, window_bounds = array<i64: 256, 128>}, {transform_indices = @transform_2, window_bounds = array<i64: 1, 128>}, {transform_indices = @transform_3, window_bounds = array<i64: 256, 128>}]} {
    %c0 = arith.constant 0 : index
    %c0_0 = arith.constant 0 : index
    %0 = vector.load %arg2[%c0, %c0_0] : memref<256x256xf32, #tpu.memory_space<vmem>>, vector<256x256xf32>
    %c0_1 = arith.constant 0 : index
    %c0_2 = arith.constant 0 : index
    %1 = vector.load %arg3[%c0_1, %c0_2] : memref<256x128xf32, #tpu.memory_space<vmem>>, vector<256x128xf32>
    %cst = arith.constant dense<0.000000e+00> : vector<256x128xf32>
    %2 = tpu.matmul %0, %1, %cst {dimension_numbers = #tpu.dot_dimension_numbers<[1], [0], [0], [1], [0, 0, 1, 1], [], []>, precision = #tpu.contract_precision<fp32>} : vector<256x256xf32>, vector<256x128xf32>, vector<256x128xf32> -> vector<256x128xf32>
    %c0_3 = arith.constant 0 : index
    %c0_4 = arith.constant 0 : index
    %3 = vector.load %arg4[%c0_3, %c0_4] : memref<1x128xf32, #tpu.memory_space<vmem>>, vector<1x128xf32>
    %4 = vector.broadcast %3 : vector<1x128xf32> to vector<256x128xf32>
    %5 = arith.addf %2, %4 : vector<256x128xf32>
    %c0_5 = arith.constant 0 : index
    %c0_6 = arith.constant 0 : index
    %6 = vector.load %arg5[%c0_5, %c0_6] : memref<256x128xf32, #tpu.memory_space<vmem>>, vector<256x128xf32>
    tpu.vector_store %arg5[%c0_5, %c0_6], %5 {strides = array<i32>} : memref<256x128xf32, #tpu.memory_space<vmem>>, vector<256x128xf32>,
    return
  }
  func.func @transform_0(%arg0: i32, %arg1: i32) -> (i32, i32) {
    %c0_i32 = arith.constant 0 : i32
    %c0_i32_0 = arith.constant 0 : i32
    return %arg0, %c0_i32 : i32, i32
  }
  func.func @transform_1(%arg0: i32, %arg1: i32) -> (i32, i32) {
    %c0_i32 = arith.constant 0 : i32
    %c0_i32_0 = arith.constant 0 : i32
    return %c0_i32, %arg1 : i32, i32
  }
  func.func @transform_2(%arg0: i32, %arg1: i32) -> (i32, i32) {
    %c0_i32 = arith.constant 0 : i32
    %c0_i32_0 = arith.constant 0 : i32
    return %c0_i32, %arg1 : i32, i32
  }
  func.func @transform_3(%arg0: i32, %arg1: i32) -> (i32, i32) {
    %c0_i32 = arith.constant 0 : i32
    return %arg0, %arg1 : i32, i32
  }
}

module attributes {stable_mosaic.version = 11 : i64} {
  func.func @_linear_kernel(%arg0: i32, %arg1: i32, %arg2: memref<256x256xf32, #tpu.memory_space<vmem>>, %arg3: memref<256x128xf32, #tpu.memory_space<vmem>>, %arg4: memref<1x128xf32, #tpu.memory_space<vmem>>, %arg5: memref<256x128xf32, #tpu.memory_space<vmem>>) attributes {dimension_semantics = [#tpu.dimension_semantics<parallel>, #tpu.dimension_semantics<parallel>], iteration_bounds = array<i64: 8, 1>, scalar_prefetch = 0 : i64, scratch_operands = 0 : i64, tpu.core_type = #tpu.core_type<tc>, window_params = [{transform_indices = @transform_0, window_bounds = array<i64: 256, 256>}, {transform_indices = @transform_1, window_bounds = array<i64: 256, 128>}, {transform_indices = @transform_2, window_bounds = array<i64: 1, 128>}, {transform_indices = @transform_3, window_bounds = array<i64: 256, 128>}]} {
    %c0 = arith.constant 0 : index
    %c0_0 = arith.constant 0 : index
    %0 = vector.load %arg2[%c0, %c0_0] : memref<256x256xf32, #tpu.memory_space<vmem>>, vector<256x256xf32>
    %c0_1 = arith.constant 0 : index
    %c0_2 = arith.constant 0 : index
    %1 = vector.load %arg3[%c0_1, %c0_2] : memref<256x128xf32, #tpu.memory_space<vmem>>, vector<256x128xf32>
    %cst = arith.constant dense<0.000000e+00> : vector<256x128xf32>
    %2 = tpu.matmul %0, %1, %cst {dimension_numbers = #tpu.dot_dimension_numbers<[1], [0], [0], [1], [0, 0, 1, 1], [], []>, precision = #tpu.contract_precision<fp32>} : vector<256x256xf32>, vector<256x128xf32>, vector<256x128xf32> -> vector<256x128xf32>
    %c0_3 = arith.constant 0 : index
    %c0_4 = arith.constant 0 : index
    %3 = vector.load %arg4[%c0_3, %c0_4] : memref<1x128xf32, #tpu.memory_space<vmem>>, vector<1x128xf32>
    %4 = vector.broadcast %3 : vector<1x128xf32> to vector<256x128xf32>
    %5 = arith.addf %2, %4 : vector<256x128xf32>
    %c0_5 = arith.constant 0 : index
    %c0_6 = arith.constant 0 : index
    %6 = vector.load %arg5[%c0_5, %c0_6] : memref<256x128xf32, #tpu.memory_space<vmem>>, vector<256x128xf32>
    tpu.vector_store %arg5[%c0_5, %c0_6], %5 {strides = array<i32>} : memref<256x128xf32, #tpu.memory_space<vmem>>, vector<256x128xf32>,
    return
  }
  func.func @transform_0(%arg0: i32, %arg1: i32) -> (i32, i32) {
    %c0_i32 = arith.constant 0 : i32
    %c0_i32_0 = arith.constant 0 : i32
    return %arg0, %c0_i32 : i32, i32
  }
  func.func @transform_1(%arg0: i32, %arg1: i32) -> (i32, i32) {
    %c0_i32 = arith.constant 0 : i32
    %c0_i32_0 = arith.constant 0 : i32
    return %c0_i32, %arg1 : i32, i32
  }
  func.func @transform_2(%arg0: i32, %arg1: i32) -> (i32, i32) {
    %c0_i32 = arith.constant 0 : i32
    %c0_i32_0 = arith.constant 0 : i32
    return %c0_i32, %arg1 : i32, i32
  }
  func.func @transform_3(%arg0: i32, %arg1: i32) -> (i32, i32) {
    %c0_i32 = arith.constant 0 : i32
    return %arg0, %arg1 : i32, i32
  }
}

</mosaic_0001>

<llo_original>
// kernel: _forward_core.1
$region0: #{_forward_core.1}
  #allocation0 [shape = 'u32[]', space=smem, size = 0x4, offset = 0x4, fixed_abs, tag = 'smem constant byte address 0x4 - core index']
  #allocation1 [shape = 'u32[144,128]{1,0:T(1,128)}', space=vmem, size = 0x12000, scoped, tag = 'internal scratch']
  %s0 = inlined_call_operand.vmem [shape: f32[2048,256], index: 0, kind: input, shape index: {}]
  %s1 = inlined_call_operand.vmem [shape: f32[256,128], index: 1, kind: input, shape index: {}]
  %s2 = inlined_call_operand.vmem [shape: f32[1,128], index: 2, kind: input, shape index: {}]
  %s3 = inlined_call_operand.hbm [shape: f32[2048,128], index: 3, kind: output, shape index: {}]
  %s4 = sld [smem:[#allocation0]]
  $region45: #{_forward_core.1} parent=0
    _
  %s6 = ssub.s32 1, %s4
  %s7 = scalar_select 0, %s6, %s4
  $region1: #{_forward_core.1} parent=0
    #allocation2 [shape = 'u8[262144]{0}', space=vmem, size = 0x40000, scoped, tag = 'output window, operand 0']
    #allocation3 [shape = 's32[2]{0}', space=sflag, size = 0x8, scoped, tag = 'scoped memory for _forward_core.1']
    %8 = vsyncpa [#allocation3], 0
    %s9 = scalar_lea.sflag [#allocation3], 1
    %10 = vsyncpa %s9, 0
    loop: start=0, step=1, limit=10
    $region2: #{_forward_core.1} parent=1 // loop_pre_header
      _
    $region3: #{_forward_core.1} parent=1 // loop_header
      %s12 = sphi 0, %s16
      %p13 = scmp.ge.s32.totalorder %s12, 10
      %s19 = sphi 0, %s31
      %s20 = sphi 0, %s27
      %s21 = sphi 0, %s19
      %s22 = sphi 0, %s20
      %s23 = sphi 0, %s21
      %s24 = sphi 0, %s22
      %s34 = sphi 0, %s36
      %s37 = sphi 0, %s34
      %s38 = sphi 0, %s37
      %s54 = sphi 0, %s38
      %s60 = sphi 0, %s62
      %s63 = sphi 0, %s60
      %s64 = sphi 0, %s63
      %s80 = sphi 0, %s64
      %s86 = sphi 0, %s88
      %s89 = sphi 0, %s86
      %s90 = sphi 0, %s89
      %s106 = sphi 0, %s90
      %s114 = sphi 0, %s116
      %s117 = sphi 0, %s114
      %s118 = sphi 0, %s117
      %s134 = sphi 0, %s118
    $region4: #{_forward_core.1} parent=1 // loop_header_branch
      %15 = sbr.rel (%p13) target = $region8
    $region5: #{_forward_core.1} parent=1 // loop_body
      %s17 = ssub.s32 %s12, 1
      %s18 = ssub.s32 %s12, 2
      %s25 = sadd.s32 1, %s20
      %p26 = scmp.ge.s32.totalorder %s25, 1
      %s27 = scalar_select %p26, 0, %s25
      %s28 = sadd.s32 1, %s19
      %s29 = scalar_select %p26, %s28, %s19
      %p30 = scmp.ge.s32.totalorder %s29, 8
      %s31 = scalar_select %p30, 0, %s29
      %s32 = ssub.s32 %s19, %s31
      %p33 = scmp.eq.s32.totalorder %s32, 0
      %s35 = sadd.s32 %s34, 1
      %s36 = scalar_select %p33, %s34, %s35
      %p39 = pneg %p33
      %p40 = scmp.eq.s32.totalorder %s12, 7
      %p41 = por %p39, %p40
      %p42 = scmp.ne.s32.totalorder %s34, %s37
      %p43 = scmp.eq.s32.totalorder %s12, 0
      %p44 = por %p42, %p43
      %p45 = scmp.ne.s32.totalorder %s34, %s37
      %p46 = scmp.eq.s32.totalorder %s17, 7
      %p47 = por %p45, %p46
      %p48 = scmp.ne.s32.totalorder %s37, %s38
      %p49 = scmp.eq.s32.totalorder %s17, 0
      %p50 = por %p48, %p49
      %p51 = scmp.ne.s32.totalorder %s37, %s38
      %p52 = scmp.eq.s32.totalorder %s18, 7
      %p53 = por %p51, %p52
      %p55 = scmp.ne.s32.totalorder %s38, %s54
      %p56 = scmp.eq.s32.totalorder %s18, 0
      %p57 = por %p55, %p56
      %s58 = ssub.s32 %s20, %s27
      %p59 = scmp.eq.s32.totalorder %s58, 0
      %s61 = sadd.s32 %s60, 1
      %s62 = scalar_select %p59, %s60, %s61
      %p65 = pneg %p59
      %p66 = scmp.eq.s32.totalorder %s12, 7
      %p67 = por %p65, %p66
      %p68 = scmp.ne.s32.totalorder %s60, %s63
      %p69 = scmp.eq.s32.totalorder %s12, 0
      %p70 = por %p68, %p69
      %p71 = scmp.ne.s32.totalorder %s60, %s63
      %p72 = scmp.eq.s32.totalorder %s17, 7
      %p73 = por %p71, %p72
      %p74 = scmp.ne.s32.totalorder %s63, %s64
      %p75 = scmp.eq.s32.totalorder %s17, 0
      %p76 = por %p74, %p75
      %p77 = scmp.ne.s32.totalorder %s63, %s64
      %p78 = scmp.eq.s32.totalorder %s18, 7
      %p79 = por %p77, %p78
      %p81 = scmp.ne.s32.totalorder %s64, %s80
      %p82 = scmp.eq.s32.totalorder %s18, 0
      %p83 = por %p81, %p82
      %s84 = ssub.s32 %s20, %s27
      %p85 = scmp.eq.s32.totalorder %s84, 0
      %s87 = sadd.s32 %s86, 1
      %s88 = scalar_select %p85, %s86, %s87
      %p91 = pneg %p85
      %p92 = scmp.eq.s32.totalorder %s12, 7
      %p93 = por %p91, %p92
      %p94 = scmp.ne.s32.totalorder %s86, %s89
      %p95 = scmp.eq.s32.totalorder %s12, 0
      %p96 = por %p94, %p95
      %p97 = scmp.ne.s32.totalorder %s86, %s89
      %p98 = scmp.eq.s32.totalorder %s17, 7
      %p99 = por %p97, %p98
      %p100 = scmp.ne.s32.totalorder %s89, %s90
      %p101 = scmp.eq.s32.totalorder %s17, 0
      %p102 = por %p100, %p101
      %p103 = scmp.ne.s32.totalorder %s89, %s90
      %p104 = scmp.eq.s32.totalorder %s18, 7
      %p105 = por %p103, %p104
      %p107 = scmp.ne.s32.totalorder %s90, %s106
      %p108 = scmp.eq.s32.totalorder %s18, 0
      %p109 = por %p107, %p108
      %s110 = ssub.s32 %s19, %s31
      %s111 = ssub.s32 %s20, %s27
      %s112 = sor.u32 %s110, %s111
      %p113 = scmp.eq.s32.totalorder %s112, 0
      %s115 = sadd.s32 %s114, 1
      %s116 = scalar_select %p113, %s114, %s115
      %p119 = pneg %p113
      %p120 = scmp.eq.s32.totalorder %s12, 7
      %p121 = por %p119, %p120
      %p122 = scmp.ne.s32.totalorder %s114, %s117
      %p123 = scmp.eq.s32.totalorder %s12, 0
      %p124 = por %p122, %p123
      %p125 = scmp.ne.s32.totalorder %s114, %s117
      %p126 = scmp.eq.s32.totalorder %s17, 7
      %p127 = por %p125, %p126
      %p128 = scmp.ne.s32.totalorder %s117, %s118
      %p129 = scmp.eq.s32.totalorder %s17, 0
      %p130 = por %p128, %p129
      %p131 = scmp.ne.s32.totalorder %s117, %s118
      %p132 = scmp.eq.s32.totalorder %s18, 7
      %p133 = por %p131, %p132
      %p135 = scmp.ne.s32.totalorder %s118, %s134
      %p136 = scmp.eq.s32.totalorder %s18, 0
      %p137 = por %p135, %p136
      %p138 = scmp.le.s32.totalorder 1, %s12
      %p139 = scmp.lt.s32.totalorder %s12, 9
      %p140 = pnand %p138, %p139
      %p141 = pneg %p140
      // Predicated region
      $region9: #{_forward_core.1} parent=5 // pred_check
        _
      $region10: #{_forward_core.1} parent=5 // pred_check_branch
        %143 = sbr.rel (%p140) target = $region12
      $region11: #{_forward_core.1} parent=5 // pred_region
        %s144 = ssub.s32 %s12, 1
        // Predicated region
        $region13: #{_forward_core.1} parent=11 // pred_check
          %p145 = pneg %p76
        $region14: #{_forward_core.1} parent=11 // pred_check_branch
          %147 = sbr.rel (%p145) target = $region16
        $region15: #{_forward_core.1} parent=11 // pred_region
          %p148 = scmp.lt.s32.totalorder %s22, 0
          %s149 = scalar_select %p148, %s22, 0
          %s150 = smul.addr %s149, 8
          %s151 = scalar_lea.vmem %s1, %s150
        $region16: #{_forward_core.1} parent=11 // pred_fallthru
          _
        // Predicated region
        $region17: #{_forward_core.1} parent=11 // pred_check
          %p152 = pneg %p102
        $region18: #{_forward_core.1} parent=11 // pred_check_branch
          %154 = sbr.rel (%p152) target = $region20
        $region19: #{_forward_core.1} parent=11 // pred_region
          %p155 = scmp.lt.s32.totalorder %s22, 0
          %s156 = scalar_select %p155, %s22, 0
          %s157 = scalar_lea.vmem %s2, %s156
        $region20: #{_forward_core.1} parent=11 // pred_fallthru
          _
      $region12: #{_forward_core.1} parent=5 // pred_fallthru
        _
      %p158 = scmp.lt.s32.totalorder %s12, 8
      // Predicated region
      $region21: #{_forward_core.1} parent=5 // pred_check
        %p159 = pneg %p158
      $region22: #{_forward_core.1} parent=5 // pred_check_branch
        %161 = sbr.rel (%p159) target = $region24
      $region23: #{_forward_core.1} parent=5 // pred_region
        // Predicated region
        $region25: #{_forward_core.1} parent=23 // pred_check
          %p162 = pneg %p44
        $region26: #{_forward_core.1} parent=23 // pred_check_branch
          %164 = sbr.rel (%p162) target = $region28
        $region27: #{_forward_core.1} parent=23 // pred_region
          %s165 = smul.u32 32, %s19
          %p166 = scmp.lt.s32.totalorder %s165, 255
          %s167 = scalar_select %p166, %s165, 255
          %s168 = smul.addr %s167, 2
          %s169 = smul.addr %s168, 8
          %s170 = scalar_lea.vmem %s0, %s169
          %s171 = smul.u32 32, %s19
        $region28: #{_forward_core.1} parent=23 // pred_fallthru
          _
      $region24: #{_forward_core.1} parent=5 // pred_fallthru
        _
      %p172 = scmp.le.s32.totalorder 1, %s12
      %p173 = scmp.lt.s32.totalorder %s12, 9
      %p174 = pnand %p172, %p173
      %p175 = pneg %p174
      // Predicated region
      $region29: #{_forward_core.1} parent=5 // pred_check
        _
      $region30: #{_forward_core.1} parent=5 // pred_check_branch
        %177 = sbr.rel (%p174) target = $region32
      $region31: #{_forward_core.1} parent=5 // pred_region
        %s178 = ssub.s32 %s12, 1
        %s179 = smul.u32 32, %s21
        %p180 = scmp.lt.s32.totalorder %s179, 255
        %s181 = scalar_select %p180, %s179, 255
        %s182 = smul.addr %s181, 2
        %s183 = smul.addr %s182, 8
        %s184 = scalar_lea.vmem %s0, %s183
        %p185 = pneg %p50
        %p186 = pneg %p47
        %p187 = scmp.lt.s32.totalorder %s22, 0
        %s188 = scalar_select %p187, %s22, 0
        %s189 = smul.addr %s188, 8
        %s190 = scalar_lea.vmem %s1, %s189
        %p191 = pneg %p76
        %p192 = pneg %p73
        %p193 = scmp.lt.s32.totalorder %s22, 0
        %s194 = scalar_select %p193, %s22, 0
        %s195 = scalar_lea.vmem %s2, %s194
        %p196 = pneg %p102
        %p197 = pneg %p99
        %p198 = pneg %p130
        %p199 = pneg %p127
        %s200 = sand.u32 %s117, 1
        %s201 = scalar_lea.sflag [#allocation3], %s200
        %s202 = sand.u32 %s117, 1
        %s203 = smul.addr %s202, 256
        %s204 = scalar_lea.vmem [#allocation2], %s203
        %s205 = smul.u32 32, %s21
        %p206 = scmp.lt.s32.totalorder %s205, 255
        %s207 = scalar_select %p206, %s205, 255
        %s208 = smul.addr %s207, 2
        %s209 = smul.addr %s208, 8
        %s210 = scalar_lea.vmem %s0, %s209
        %s211 = smul.u32 32, %s21
        %p212 = scmp.lt.s32.totalorder %s22, 0
        %s213 = scalar_select %p212, %s22, 0
        %s214 = smul.addr %s213, 8
        %s215 = scalar_lea.vmem %s1, %s214
        %p216 = scmp.lt.s32.totalorder %s22, 0
        %s217 = scalar_select %p216, %s22, 0
        %s218 = scalar_lea.vmem %s2, %s217
        %s219 = smul.u32 32, %s21
        %v220 = vld [vmem:[%s210] sm:$0xff]
        %v221 = vld [vmem:[%s210 + $0x8] sm:$0xff]
        %v222 = vld [vmem:[%s210 + $0x10] sm:$0xff]
        %v223 = vld [vmem:[%s210 + $0x18] sm:$0xff]
        %v224 = vld [vmem:[%s210 + $0x20] sm:$0xff]
        %v225 = vld [vmem:[%s210 + $0x28] sm:$0xff]
        %v226 = vld [vmem:[%s210 + $0x30] sm:$0xff]
        %v227 = vld [vmem:[%s210 + $0x38] sm:$0xff]
        %v228 = vld [vmem:[%s210 + $0x40] sm:$0xff]
        %v229 = vld [vmem:[%s210 + $0x48] sm:$0xff]
        %v230 = vld [vmem:[%s210 + $0x50] sm:$0xff]
        %v231 = vld [vmem:[%s210 + $0x58] sm:$0xff]
        %v232 = vld [vmem:[%s210 + $0x60] sm:$0xff]
        %v233 = vld [vmem:[%s210 + $0x68] sm:$0xff]
        %v234 = vld [vmem:[%s210 + $0x70] sm:$0xff]
        %v235 = vld [vmem:[%s210 + $0x78] sm:$0xff]
        %v236 = vld [vmem:[%s210 + $0x80] sm:$0xff]
        %v237 = vld [vmem:[%s210 + $0x88] sm:$0xff]
        %v238 = vld [vmem:[%s210 + $0x90] sm:$0xff]
        %v239 = vld [vmem:[%s210 + $0x98] sm:$0xff]
        %v240 = vld [vmem:[%s210 + $0xa0] sm:$0xff]
        %v241 = vld [vmem:[%s210 + $0xa8] sm:$0xff]
        %v242 = vld [vmem:[%s210 + $0xb0] sm:$0xff]
        %v243 = vld [vmem:[%s210 + $0xb8] sm:$0xff]
        %v244 = vld [vmem:[%s210 + $0xc0] sm:$0xff]
        %v245 = vld [vmem:[%s210 + $0xc8] sm:$0xff]
        %v246 = vld [vmem:[%s210 + $0xd0] sm:$0xff]
        %v247 = vld [vmem:[%s210 + $0xd8] sm:$0xff]
        %v248 = vld [vmem:[%s210 + $0xe0] sm:$0xff]
        %v249 = vld [vmem:[%s210 + $0xe8] sm:$0xff]
        %v250 = vld [vmem:[%s210 + $0xf0] sm:$0xff]
        %v251 = vld [vmem:[%s210 + $0xf8] sm:$0xff]
        %v252 = vld [vmem:[%s210 + $0x100] sm:$0xff]
        %v253 = vld [vmem:[%s210 + $0x108] sm:$0xff]
        %v254 = vld [vmem:[%s210 + $0x110] sm:$0xff]
        %v255 = vld [vmem:[%s210 + $0x118] sm:$0xff]
        %v256 = vld [vmem:[%s210 + $0x120] sm:$0xff]
        %v257 = vld [vmem:[%s210 + $0x128] sm:$0xff]
        %v258 = vld [vmem:[%s210 + $0x130] sm:$0xff]
        %v259 = vld [vmem:[%s210 + $0x138] sm:$0xff]
        %v260 = vld [vmem:[%s210 + $0x140] sm:$0xff]
        %v261 = vld [vmem:[%s210 + $0x148] sm:$0xff]
        %v262 = vld [vmem:[%s210 + $0x150] sm:$0xff]
        %v263 = vld [vmem:[%s210 + $0x158] sm:$0xff]
        %v264 = vld [vmem:[%s210 + $0x160] sm:$0xff]
        %v265 = vld [vmem:[%s210 + $0x168] sm:$0xff]
        %v266 = vld [vmem:[%s210 + $0x170] sm:$0xff]
        %v267 = vld [vmem:[%s210 + $0x178] sm:$0xff]
        %v268 = vld [vmem:[%s210 + $0x180] sm:$0xff]
        %v269 = vld [vmem:[%s210 + $0x188] sm:$0xff]
        %v270 = vld [vmem:[%s210 + $0x190] sm:$0xff]
        %v271 = vld [vmem:[%s210 + $0x198] sm:$0xff]
        %v272 = vld [vmem:[%s210 + $0x1a0] sm:$0xff]
        %v273 = vld [vmem:[%s210 + $0x1a8] sm:$0xff]
        %v274 = vld [vmem:[%s210 + $0x1b0] sm:$0xff]
        %v275 = vld [vmem:[%s210 + $0x1b8] sm:$0xff]
        %v276 = vld [vmem:[%s210 + $0x1c0] sm:$0xff]
        %v277 = vld [vmem:[%s210 + $0x1c8] sm:$0xff]
        %v278 = vld [vmem:[%s210 + $0x1d0] sm:$0xff]
        %v279 = vld [vmem:[%s210 + $0x1d8] sm:$0xff]
        %v280 = vld [vmem:[%s210 + $0x1e0] sm:$0xff]
        %v281 = vld [vmem:[%s210 + $0x1e8] sm:$0xff]
        %v282 = vld [vmem:[%s210 + $0x1f0] sm:$0xff]
        %v283 = vld [vmem:[%s210 + $0x1f8] sm:$0xff]
        %v284 = vld [vmem:[%s215] sm:$0xff]
        %v285 = vld [vmem:[%s215 + $0x8] sm:$0xff]
        %v286 = vld [vmem:[%s215 + $0x10] sm:$0xff]
        %v287 = vld [vmem:[%s215 + $0x18] sm:$0xff]
        %v288 = vld [vmem:[%s215 + $0x20] sm:$0xff]
        %v289 = vld [vmem:[%s215 + $0x28] sm:$0xff]
        %v290 = vld [vmem:[%s215 + $0x30] sm:$0xff]
        %v291 = vld [vmem:[%s215 + $0x38] sm:$0xff]
        %v292 = vld [vmem:[%s215 + $0x40] sm:$0xff]
        %v293 = vld [vmem:[%s215 + $0x48] sm:$0xff]
        %v294 = vld [vmem:[%s215 + $0x50] sm:$0xff]
        %v295 = vld [vmem:[%s215 + $0x58] sm:$0xff]
        %v296 = vld [vmem:[%s215 + $0x60] sm:$0xff]
        %v297 = vld [vmem:[%s215 + $0x68] sm:$0xff]
        %v298 = vld [vmem:[%s215 + $0x70] sm:$0xff]
        %v299 = vld [vmem:[%s215 + $0x78] sm:$0xff]
        %v300 = vld [vmem:[%s215 + $0x80] sm:$0xff]
        %v301 = vld [vmem:[%s215 + $0x88] sm:$0xff]
        %v302 = vld [vmem:[%s215 + $0x90] sm:$0xff]
        %v303 = vld [vmem:[%s215 + $0x98] sm:$0xff]
        %v304 = vld [vmem:[%s215 + $0xa0] sm:$0xff]
        %v305 = vld [vmem:[%s215 + $0xa8] sm:$0xff]
        %v306 = vld [vmem:[%s215 + $0xb0] sm:$0xff]
        %v307 = vld [vmem:[%s215 + $0xb8] sm:$0xff]
        %v308 = vld [vmem:[%s215 + $0xc0] sm:$0xff]
        %v309 = vld [vmem:[%s215 + $0xc8] sm:$0xff]
        %v310 = vld [vmem:[%s215 + $0xd0] sm:$0xff]
        %v311 = vld [vmem:[%s215 + $0xd8] sm:$0xff]
        %v312 = vld [vmem:[%s215 + $0xe0] sm:$0xff]
        %v313 = vld [vmem:[%s215 + $0xe8] sm:$0xff]
        %v314 = vld [vmem:[%s215 + $0xf0] sm:$0xff]
        %v315 = vld [vmem:[%s215 + $0xf8] sm:$0xff]
        %v316 = vld [vmem:[%s218] sm:$0x1]
        %v318 = vlaneseq
        %v319 = vshrl.u32 %v318, 7
        %v320 = vsub.s32 0, %v319
        %v321 = vrot.slane %v316, %v320
        %323 = vmatprep.subr.mxu0 0.0
        %v324 = vand.u32 %v284, 4294901760
        %325 = vmatpush1.msra.mxu0 %v324
        %326 = vmatprep.subr.mxu0 0.0
        %v327 = vand.u32 %v285, 4294901760
        %328 = vmatpush1.msra.mxu0 %v327
        %329 = vmatprep.subr.mxu0 0.0
        %v330 = vand.u32 %v286, 4294901760
        %331 = vmatpush1.msra.mxu0 %v330
        %332 = vmatprep.subr.mxu0 0.0
        %v333 = vand.u32 %v287, 4294901760
        %334 = vmatpush1.msra.mxu0 %v333
        %335 = vmatprep.subr.mxu0 0.0
        %v336 = vand.u32 %v288, 4294901760
        %337 = vmatpush1.msra.mxu0 %v336
        %338 = vmatprep.subr.mxu0 0.0
        %v339 = vand.u32 %v289, 4294901760
        %340 = vmatpush1.msra.mxu0 %v339
        %341 = vmatprep.subr.mxu0 0.0
        %v342 = vand.u32 %v290, 4294901760
        %343 = vmatpush1.msra.mxu0 %v342
        %344 = vmatprep.subr.mxu0 0.0
        %v345 = vand.u32 %v291, 4294901760
        %346 = vmatpush1.msra.mxu0 %v345
        %347 = vmatprep.subr.mxu0 0.0
        %v348 = vand.u32 %v292, 4294901760
        %349 = vmatpush1.msra.mxu0 %v348
        %350 = vmatprep.subr.mxu0 0.0
        %v351 = vand.u32 %v293, 4294901760
        %352 = vmatpush1.msra.mxu0 %v351
        %353 = vmatprep.subr.mxu0 0.0
        %v354 = vand.u32 %v294, 4294901760
        %355 = vmatpush1.msra.mxu0 %v354
        %356 = vmatprep.subr.mxu0 0.0
        %v357 = vand.u32 %v295, 4294901760
        %358 = vmatpush1.msra.mxu0 %v357
        %359 = vmatprep.subr.mxu0 0.0
        %v360 = vand.u32 %v296, 4294901760
        %361 = vmatpush1.msra.mxu0 %v360
        %362 = vmatprep.subr.mxu0 0.0
        %v363 = vand.u32 %v297, 4294901760
        %364 = vmatpush1.msra.mxu0 %v363
        %365 = vmatprep.subr.mxu0 0.0
        %v366 = vand.u32 %v298, 4294901760
        %367 = vmatpush1.msra.mxu0 %v366
        %368 = vmatprep.subr.mxu0 0.0
        %v369 = vand.u32 %v299, 4294901760
        %370 = vmatpush1.msra.mxu0 %v369
        %371 = vmatprep.subr.mxu0 0.0
        %v372 = vand.u32 %v300, 4294901760
        %373 = vmatpush1.msra.mxu0 %v372
        %374 = vmatprep.subr.mxu0 0.0
        %v375 = vand.u32 %v301, 4294901760
        %376 = vmatpush1.msra.mxu0 %v375
        %377 = vmatprep.subr.mxu0 0.0
        %v378 = vand.u32 %v302, 4294901760
        %379 = vmatpush1.msra.mxu0 %v378
        %380 = vmatprep.subr.mxu0 0.0
        %v381 = vand.u32 %v303, 4294901760
        %382 = vmatpush1.msra.mxu0 %v381
        %383 = vmatprep.subr.mxu0 0.0
        %v384 = vand.u32 %v304, 4294901760
        %385 = vmatpush1.msra.mxu0 %v384
        %386 = vmatprep.subr.mxu0 0.0
        %v387 = vand.u32 %v305, 4294901760
        %388 = vmatpush1.msra.mxu0 %v387
        %389 = vmatprep.subr.mxu0 0.0
        %v390 = vand.u32 %v306, 4294901760
        %391 = vmatpush1.msra.mxu0 %v390
        %392 = vmatprep.subr.mxu0 0.0
        %v393 = vand.u32 %v307, 4294901760
        %394 = vmatpush1.msra.mxu0 %v393
        %395 = vmatprep.subr.mxu0 0.0
        %v396 = vand.u32 %v308, 4294901760
        %397 = vmatpush1.msra.mxu0 %v396
        %398 = vmatprep.subr.mxu0 0.0
        %v399 = vand.u32 %v309, 4294901760
        %400 = vmatpush1.msra.mxu0 %v399
        %401 = vmatprep.subr.mxu0 0.0
        %v402 = vand.u32 %v310, 4294901760
        %403 = vmatpush1.msra.mxu0 %v402
        %404 = vmatprep.subr.mxu0 0.0
        %v405 = vand.u32 %v311, 4294901760
        %406 = vmatpush1.msra.mxu0 %v405
        %407 = vmatprep.subr.mxu0 0.0
        %v408 = vand.u32 %v312, 4294901760
        %409 = vmatpush1.msra.mxu0 %v408
        %410 = vmatprep.subr.mxu0 0.0
        %v411 = vand.u32 %v313, 4294901760
        %412 = vmatpush1.msra.mxu0 %v411
        %413 = vmatprep.subr.mxu0 0.0
        %v414 = vand.u32 %v314, 4294901760
        %415 = vmatpush1.msra.mxu0 %v414
        %416 = vmatprep.subr.mxu0 0.0
        %v417 = vand.u32 %v315, 4294901760
        %418 = vmatpush1.msra.mxu0 %v417
        %v419 = vand.u32 %v221, 4294901760
        %v420 = vsub.f32 %v221, %v419
        %v421 = vand.u32 %v420, 4294901760
        %v422 = vsub.f32 %v420, %v421
        %v423 = vand.u32 %v422, 4294901760
        %424 = vmatprep.mubr.f32.mxu0 %v423
        %v425 = vand.u32 %v220, 4294901760
        %v426 = vsub.f32 %v220, %v425
        %v427 = vand.u32 %v426, 4294901760
        %v428 = vsub.f32 %v426, %v427
        %v429 = vand.u32 %v428, 4294901760
        %430 = vmatmul.mubr.f32.gmra.mrb[0].mxu0 %v429
        %v431 = vpop.f32.mrb[0].mxu0
        %v432 = vadd.f32 %v321, %v431
        %v433 = vpop.f32.mrb[0].mxu0
        %v434 = vand.u32 %v223, 4294901760
        %v435 = vsub.f32 %v223, %v434
        %v436 = vand.u32 %v435, 4294901760
        %v437 = vsub.f32 %v435, %v436
        %v438 = vand.u32 %v437, 4294901760
        %439 = vmatprep.mubr.f32.mxu0 %v438
        %v440 = vand.u32 %v222, 4294901760
        %v441 = vsub.f32 %v222, %v440
        %v442 = vand.u32 %v441, 4294901760
        %v443 = vsub.f32 %v441, %v442
        %v444 = vand.u32 %v443, 4294901760
        %445 = vmatmul.mubr.f32.gmra.mrb[0].mxu0 %v444
        %v446 = vpop.f32.mrb[0].mxu0
        %v447 = vadd.f32 %v321, %v446
        %v448 = vpop.f32.mrb[0].mxu0
        %v449 = vand.u32 %v225, 4294901760
        %v450 = vsub.f32 %v225, %v449
        %v451 = vand.u32 %v450, 4294901760
        %v452 = vsub.f32 %v450, %v451
        %v453 = vand.u32 %v452, 4294901760
        %454 = vmatprep.mubr.f32.mxu0 %v453
        %v455 = vand.u32 %v224, 4294901760
        %v456 = vsub.f32 %v224, %v455
        %v457 = vand.u32 %v456, 4294901760
        %v458 = vsub.f32 %v456, %v457
        %v459 = vand.u32 %v458, 4294901760
        %460 = vmatmul.mubr.f32.gmra.mrb[0].mxu0 %v459
        %v461 = vpop.f32.mrb[0].mxu0
        %v462 = vadd.f32 %v321, %v461
        %v463 = vpop.f32.mrb[0].mxu0
        %v464 = vand.u32 %v227, 4294901760
        %v465 = vsub.f32 %v227, %v464
        %v466 = vand.u32 %v465, 4294901760
        %v467 = vsub.f32 %v465, %v466
        %v468 = vand.u32 %v467, 4294901760
        %469 = vmatprep.mubr.f32.mxu0 %v468
        %v470 = vand.u32 %v226, 4294901760
        %v471 = vsub.f32 %v226, %v470
        %v472 = vand.u32 %v471, 4294901760
        %v473 = vsub.f32 %v471, %v472
        %v474 = vand.u32 %v473, 4294901760
        %475 = vmatmul.mubr.f32.gmra.mrb[0].mxu0 %v474
        %v476 = vpop.f32.mrb[0].mxu0
        %v477 = vadd.f32 %v321, %v476
        %v478 = vpop.f32.mrb[0].mxu0
        %v479 = vand.u32 %v229, 4294901760
        %v480 = vsub.f32 %v229, %v479
        %v481 = vand.u32 %v480, 4294901760
        %v482 = vsub.f32 %v480, %v481
        %v483 = vand.u32 %v482, 4294901760
        %484 = vmatprep.mubr.f32.mxu0 %v483
        %v485 = vand.u32 %v228, 4294901760
        %v486 = vsub.f32 %v228, %v485
        %v487 = vand.u32 %v486, 4294901760
        %v488 = vsub.f32 %v486, %v487
        %v489 = vand.u32 %v488, 4294901760
        %490 = vmatmul.mubr.f32.gmra.mrb[0].mxu0 %v489
        %v491 = vpop.f32.mrb[0].mxu0
        %v492 = vadd.f32 %v321, %v491
        %v493 = vpop.f32.mrb[0].mxu0
        %v494 = vand.u32 %v231, 4294901760
        %v495 = vsub.f32 %v231, %v494
        %v496 = vand.u32 %v495, 4294901760
        %v497 = vsub.f32 %v495, %v496
        %v498 = vand.u32 %v497, 4294901760
        %499 = vmatprep.mubr.f32.mxu0 %v498
        %v500 = vand.u32 %v230, 4294901760
        %v501 = vsub.f32 %v230, %v500
        %v502 = vand.u32 %v501, 4294901760
        %v503 = vsub.f32 %v501, %v502
        %v504 = vand.u32 %v503, 4294901760
        %505 = vmatmul.mubr.f32.gmra.mrb[0].mxu0 %v504
        %v506 = vpop.f32.mrb[0].mxu0
        %v507 = vadd.f32 %v321, %v506
        %v508 = vpop.f32.mrb[0].mxu0
        %v509 = vand.u32 %v233, 4294901760
        %v510 = vsub.f32 %v233, %v509
        %v511 = vand.u32 %v510, 4294901760
        %v512 = vsub.f32 %v510, %v511
        %v513 = vand.u32 %v512, 4294901760
        %514 = vmatprep.mubr.f32.mxu0 %v513
        %v515 = vand.u32 %v232, 4294901760
        %v516 = vsub.f32 %v232, %v515
        %v517 = vand.u32 %v516, 4294901760
        %v518 = vsub.f32 %v516, %v517
        %v519 = vand.u32 %v518, 4294901760
        %520 = vmatmul.mubr.f32.gmra.mrb[0].mxu0 %v519
        %v521 = vpop.f32.mrb[0].mxu0
        %v522 = vadd.f32 %v321, %v521
        %v523 = vpop.f32.mrb[0].mxu0
        %v524 = vand.u32 %v235, 4294901760
        %v525 = vsub.f32 %v235, %v524
        %v526 = vand.u32 %v525, 4294901760
        %v527 = vsub.f32 %v525, %v526
        %v528 = vand.u32 %v527, 4294901760
        %529 = vmatprep.mubr.f32.mxu0 %v528
        %v530 = vand.u32 %v234, 4294901760
        %v531 = vsub.f32 %v234, %v530
        %v532 = vand.u32 %v531, 4294901760
        %v533 = vsub.f32 %v531, %v532
        %v534 = vand.u32 %v533, 4294901760
        %535 = vmatmul.mubr.f32.gmra.mrb[0].mxu0 %v534
        %v536 = vpop.f32.mrb[0].mxu0
        %v537 = vadd.f32 %v321, %v536
        %v538 = vpop.f32.mrb[0].mxu0
        %v539 = vand.u32 %v237, 4294901760
        %v540 = vsub.f32 %v237, %v539
        %v541 = vand.u32 %v540, 4294901760
        %v542 = vsub.f32 %v540, %v541
        %v543 = vand.u32 %v542, 4294901760
        %544 = vmatprep.mubr.f32.mxu0 %v543
        %v545 = vand.u32 %v236, 4294901760
        %v546 = vsub.f32 %v236, %v545
        %v547 = vand.u32 %v546, 4294901760
        %v548 = vsub.f32 %v546, %v547
        %v549 = vand.u32 %v548, 4294901760
        %550 = vmatmul.mubr.f32.gmra.mrb[0].mxu0 %v549
        %v551 = vpop.f32.mrb[0].mxu0
        %v552 = vadd.f32 %v321, %v551
        %v553 = vpop.f32.mrb[0].mxu0
        %v554 = vand.u32 %v239, 4294901760
        %v555 = vsub.f32 %v239, %v554
        %v556 = vand.u32 %v555, 4294901760
        %v557 = vsub.f32 %v555, %v556
        %v558 = vand.u32 %v557, 4294901760
        %559 = vmatprep.mubr.f32.mxu0 %v558
        %v560 = vand.u32 %v238, 4294901760
        %v561 = vsub.f32 %v238, %v560
        %v562 = vand.u32 %v561, 4294901760
        %v563 = vsub.f32 %v561, %v562
        %v564 = vand.u32 %v563, 4294901760
        %565 = vmatmul.mubr.f32.gmra.mrb[0].mxu0 %v564
        %v566 = vpop.f32.mrb[0].mxu0
        %v567 = vadd.f32 %v321, %v566
        %v568 = vpop.f32.mrb[0].mxu0
        %v569 = vand.u32 %v241, 4294901760
        %v570 = vsub.f32 %v241, %v569
        %v571 = vand.u32 %v570, 4294901760
        %v572 = vsub.f32 %v570, %v571
        %v573 = vand.u32 %v572, 4294901760
        %574 = vmatprep.mubr.f32.mxu0 %v573
        %v575 = vand.u32 %v240, 4294901760
        %v576 = vsub.f32 %v240, %v575
        %v577 = vand.u32 %v576, 4294901760
        %v578 = vsub.f32 %v576, %v577
        %v579 = vand.u32 %v578, 4294901760
        %580 = vmatmul.mubr.f32.gmra.mrb[0].mxu0 %v579
        %v581 = vpop.f32.mrb[0].mxu0
        %v582 = vadd.f32 %v321, %v581
        %v583 = vpop.f32.mrb[0].mxu0
        %v584 = vand.u32 %v243, 4294901760
        %v585 = vsub.f32 %v243, %v584
        %v586 = vand.u32 %v585, 4294901760
        %v587 = vsub.f32 %v585, %v586
        %v588 = vand.u32 %v587, 4294901760
        %589 = vmatprep.mubr.f32.mxu0 %v588
        %v590 = vand.u32 %v242, 4294901760
        %v591 = vsub.f32 %v242, %v590
        %v592 = vand.u32 %v591, 4294901760
        %v593 = vsub.f32 %v591, %v592
        %v594 = vand.u32 %v593, 4294901760
        %595 = vmatmul.mubr.f32.gmra.mrb[0].mxu0 %v594
        %v596 = vpop.f32.mrb[0].mxu0
        %v597 = vadd.f32 %v321, %v596
        %v598 = vpop.f32.mrb[0].mxu0
        %v599 = vand.u32 %v245, 4294901760
        %v600 = vsub.f32 %v245, %v599
        %v601 = vand.u32 %v600, 4294901760
        %v602 = vsub.f32 %v600, %v601
        %v603 = vand.u32 %v602, 4294901760
        %604 = vmatprep.mubr.f32.mxu0 %v603
        %v605 = vand.u32 %v244, 4294901760
        %v606 = vsub.f32 %v244, %v605
        %v607 = vand.u32 %v606, 4294901760
        %v608 = vsub.f32 %v606, %v607
        %v609 = vand.u32 %v608, 4294901760
        %610 = vmatmul.mubr.f32.gmra.mrb[0].mxu0 %v609
        %v611 = vpop.f32.mrb[0].mxu0
        %v612 = vadd.f32 %v321, %v611
        %v613 = vpop.f32.mrb[0].mxu0
        %v614 = vand.u32 %v247, 4294901760
        %v615 = vsub.f32 %v247, %v614
        %v616 = vand.u32 %v615, 4294901760
        %v617 = vsub.f32 %v615, %v616
        %v618 = vand.u32 %v617, 4294901760
        %619 = vmatprep.mubr.f32.mxu0 %v618
        %v620 = vand.u32 %v246, 4294901760
        %v621 = vsub.f32 %v246, %v620
        %v622 = vand.u32 %v621, 4294901760
        %v623 = vsub.f32 %v621, %v622
        %v624 = vand.u32 %v623, 4294901760
        %625 = vmatmul.mubr.f32.gmra.mrb[0].mxu0 %v624
        %v626 = vpop.f32.mrb[0].mxu0
        %v627 = vadd.f32 %v321, %v626
        %v628 = vpop.f32.mrb[0].mxu0
        %v629 = vand.u32 %v249, 4294901760
        %v630 = vsub.f32 %v249, %v629
        %v631 = vand.u32 %v630, 4294901760
        %v632 = vsub.f32 %v630, %v631
        %v633 = vand.u32 %v632, 4294901760
        %634 = vmatprep.mubr.f32.mxu0 %v633
        %v635 = vand.u32 %v248, 4294901760
        %v636 = vsub.f32 %v248, %v635
        %v637 = vand.u32 %v636, 4294901760
        %v638 = vsub.f32 %v636, %v637
        %v639 = vand.u32 %v638, 4294901760
        %640 = vmatmul.mubr.f32.gmra.mrb[0].mxu0 %v639
        %v641 = vpop.f32.mrb[0].mxu0
        %v642 = vadd.f32 %v321, %v641
        %v643 = vpop.f32.mrb[0].mxu0
        %v644 = vand.u32 %v251, 4294901760
        %v645 = vsub.f32 %v251, %v644
        %v646 = vand.u32 %v645, 4294901760
        %v647 = vsub.f32 %v645, %v646
        %v648 = vand.u32 %v647, 4294901760
        %649 = vmatprep.mubr.f32.mxu0 %v648
        %v650 = vand.u32 %v250, 4294901760
        %v651 = vsub.f32 %v250, %v650
        %v652 = vand.u32 %v651, 4294901760
        %v653 = vsub.f32 %v651, %v652
        %v654 = vand.u32 %v653, 4294901760
        %655 = vmatmul.mubr.f32.gmra.mrb[0].mxu0 %v654
        %v656 = vpop.f32.mrb[0].mxu0
        %v657 = vadd.f32 %v321, %v656
        %v658 = vpop.f32.mrb[0].mxu0
        %v659 = vand.u32 %v253, 4294901760
        %v660 = vsub.f32 %v253, %v659
        %v661 = vand.u32 %v660, 4294901760
        %v662 = vsub.f32 %v660, %v661
        %v663 = vand.u32 %v662, 4294901760
        %664 = vmatprep.mubr.f32.mxu0 %v663
        %v665 = vand.u32 %v252, 4294901760
        %v666 = vsub.f32 %v252, %v665
        %v667 = vand.u32 %v666, 4294901760
        %v668 = vsub.f32 %v666, %v667
        %v669 = vand.u32 %v668, 4294901760
        %670 = vmatmul.mubr.f32.gmra.mrb[0].mxu0 %v669
        %v671 = vpop.f32.mrb[0].mxu0
        %v672 = vadd.f32 %v321, %v671
        %v673 = vpop.f32.mrb[0].mxu0
        %v674 = vand.u32 %v255, 4294901760
        %v675 = vsub.f32 %v255, %v674
        %v676 = vand.u32 %v675, 4294901760
        %v677 = vsub.f32 %v675, %v676
        %v678 = vand.u32 %v677, 4294901760
        %679 = vmatprep.mubr.f32.mxu0 %v678
        %v680 = vand.u32 %v254, 4294901760
        %v681 = vsub.f32 %v254, %v680
        %v682 = vand.u32 %v681, 4294901760
        %v683 = vsub.f32 %v681, %v682
        %v684 = vand.u32 %v683, 4294901760
        %685 = vmatmul.mubr.f32.gmra.mrb[0].mxu0 %v684
        %v686 = vpop.f32.mrb[0].mxu0
        %v687 = vadd.f32 %v321, %v686
        %v688 = vpop.f32.mrb[0].mxu0
        %v689 = vand.u32 %v257, 4294901760
        %v690 = vsub.f32 %v257, %v689
        %v691 = vand.u32 %v690, 4294901760
        %v692 = vsub.f32 %v690, %v691
        %v693 = vand.u32 %v692, 4294901760
        %694 = vmatprep.mubr.f32.mxu0 %v693
        %v695 = vand.u32 %v256, 4294901760
        %v696 = vsub.f32 %v256, %v695
        %v697 = vand.u32 %v696, 4294901760
        %v698 = vsub.f32 %v696, %v697
        %v699 = vand.u32 %v698, 4294901760
        %700 = vmatmul.mubr.f32.gmra.mrb[0].mxu0 %v699
        %v701 = vpop.f32.mrb[0].mxu0
        %v702 = vadd.f32 %v321, %v701
        %v703 = vpop.f32.mrb[0].mxu0
        %v704 = vand.u32 %v259, 4294901760
        %v705 = vsub.f32 %v259, %v704
        %v706 = vand.u32 %v705, 4294901760
        %v707 = vsub.f32 %v705, %v706
        %v708 = vand.u32 %v707, 4294901760
        %709 = vmatprep.mubr.f32.mxu0 %v708
        %v710 = vand.u32 %v258, 4294901760
        %v711 = vsub.f32 %v258, %v710
        %v712 = vand.u32 %v711, 4294901760
        %v713 = vsub.f32 %v711, %v712
        %v714 = vand.u32 %v713, 4294901760
        %715 = vmatmul.mubr.f32.gmra.mrb[0].mxu0 %v714
        %v716 = vpop.f32.mrb[0].mxu0
        %v717 = vadd.f32 %v321, %v716
        %v718 = vpop.f32.mrb[0].mxu0
        %v719 = vand.u32 %v261, 4294901760
        %v720 = vsub.f32 %v261, %v719
        %v721 = vand.u32 %v720, 4294901760
        %v722 = vsub.f32 %v720, %v721
        %v723 = vand.u32 %v722, 4294901760
        %724 = vmatprep.mubr.f32.mxu0 %v723
        %v725 = vand.u32 %v260, 4294901760
        %v726 = vsub.f32 %v260, %v725
        %v727 = vand.u32 %v726, 4294901760
        %v728 = vsub.f32 %v726, %v727
        %v729 = vand.u32 %v728, 4294901760
        %730 = vmatmul.mubr.f32.gmra.mrb[0].mxu0 %v729
        %v731 = vpop.f32.mrb[0].mxu0
        %v732 = vadd.f32 %v321, %v731
        %v733 = vpop.f32.mrb[0].mxu0
        %v734 = vand.u32 %v263, 4294901760
        %v735 = vsub.f32 %v263, %v734
        %v736 = vand.u32 %v735, 4294901760
        %v737 = vsub.f32 %v735, %v736
        %v738 = vand.u32 %v737, 4294901760
        %739 = vmatprep.mubr.f32.mxu0 %v738
        %v740 = vand.u32 %v262, 4294901760
        %v741 = vsub.f32 %v262, %v740
        %v742 = vand.u32 %v741, 4294901760
        %v743 = vsub.f32 %v741, %v742
        %v744 = vand.u32 %v743, 4294901760
        %745 = vmatmul.mubr.f32.gmra.mrb[0].mxu0 %v744
        %v746 = vpop.f32.mrb[0].mxu0
        %v747 = vadd.f32 %v321, %v746
        %v748 = vpop.f32.mrb[0].mxu0
        %v749 = vand.u32 %v265, 4294901760
        %v750 = vsub.f32 %v265, %v749
        %v751 = vand.u32 %v750, 4294901760
        %v752 = vsub.f32 %v750, %v751
        %v753 = vand.u32 %v752, 4294901760
        %754 = vmatprep.mubr.f32.mxu0 %v753
        %v755 = vand.u32 %v264, 4294901760
        %v756 = vsub.f32 %v264, %v755
        %v757 = vand.u32 %v756, 4294901760
        %v758 = vsub.f32 %v756, %v757
        %v759 = vand.u32 %v758, 4294901760
        %760 = vmatmul.mubr.f32.gmra.mrb[0].mxu0 %v759
        %v761 = vpop.f32.mrb[0].mxu0
        %v762 = vadd.f32 %v321, %v761
        %v763 = vpop.f32.mrb[0].mxu0
        %v764 = vand.u32 %v267, 4294901760
        %v765 = vsub.f32 %v267, %v764
        %v766 = vand.u32 %v765, 4294901760
        %v767 = vsub.f32 %v765, %v766
        %v768 = vand.u32 %v767, 4294901760
        %769 = vmatprep.mubr.f32.mxu0 %v768
        %v770 = vand.u32 %v266, 4294901760
        %v771 = vsub.f32 %v266, %v770
        %v772 = vand.u32 %v771, 4294901760
        %v773 = vsub.f32 %v771, %v772
        %v774 = vand.u32 %v773, 4294901760
        %775 = vmatmul.mubr.f32.gmra.mrb[0].mxu0 %v774
        %v776 = vpop.f32.mrb[0].mxu0
        %v777 = vadd.f32 %v321, %v776
        %v778 = vpop.f32.mrb[0].mxu0
        %v779 = vand.u32 %v269, 4294901760
        %v780 = vsub.f32 %v269, %v779
        %v781 = vand.u32 %v780, 4294901760
        %v782 = vsub.f32 %v780, %v781
        %v783 = vand.u32 %v782, 4294901760
        %784 = vmatprep.mubr.f32.mxu0 %v783
        %v785 = vand.u32 %v268, 4294901760
        %v786 = vsub.f32 %v268, %v785
        %v787 = vand.u32 %v786, 4294901760
        %v788 = vsub.f32 %v786, %v787
        %v789 = vand.u32 %v788, 4294901760
        %790 = vmatmul.mubr.f32.gmra.mrb[0].mxu0 %v789
        %v791 = vpop.f32.mrb[0].mxu0
        %v792 = vadd.f32 %v321, %v791
        %v793 = vpop.f32.mrb[0].mxu0
        %v794 = vand.u32 %v271, 4294901760
        %v795 = vsub.f32 %v271, %v794
        %v796 = vand.u32 %v795, 4294901760
        %v797 = vsub.f32 %v795, %v796
        %v798 = vand.u32 %v797, 4294901760
        %799 = vmatprep.mubr.f32.mxu0 %v798
        %v800 = vand.u32 %v270, 4294901760
        %v801 = vsub.f32 %v270, %v800
        %v802 = vand.u32 %v801, 4294901760
        %v803 = vsub.f32 %v801, %v802
        %v804 = vand.u32 %v803, 4294901760
        %805 = vmatmul.mubr.f32.gmra.mrb[0].mxu0 %v804
        %v806 = vpop.f32.mrb[0].mxu0
        %v807 = vadd.f32 %v321, %v806
        %v808 = vpop.f32.mrb[0].mxu0
        %v809 = vand.u32 %v273, 4294901760
        %v810 = vsub.f32 %v273, %v809
        %v811 = vand.u32 %v810, 4294901760
        %v812 = vsub.f32 %v810, %v811
        %v813 = vand.u32 %v812, 4294901760
        %814 = vmatprep.mubr.f32.mxu0 %v813
        %v815 = vand.u32 %v272, 4294901760
        %v816 = vsub.f32 %v272, %v815
        %v817 = vand.u32 %v816, 4294901760
        %v818 = vsub.f32 %v816, %v817
        %v819 = vand.u32 %v818, 4294901760
        %820 = vmatmul.mubr.f32.gmra.mrb[0].mxu0 %v819
        %v821 = vpop.f32.mrb[0].mxu0
        %v822 = vadd.f32 %v321, %v821
        %v823 = vpop.f32.mrb[0].mxu0
        %v824 = vand.u32 %v275, 4294901760
        %v825 = vsub.f32 %v275, %v824
        %v826 = vand.u32 %v825, 4294901760
        %v827 = vsub.f32 %v825, %v826
        %v828 = vand.u32 %v827, 4294901760
        %829 = vmatprep.mubr.f32.mxu0 %v828
        %v830 = vand.u32 %v274, 4294901760
        %v831 = vsub.f32 %v274, %v830
        %v832 = vand.u32 %v831, 4294901760
        %v833 = vsub.f32 %v831, %v832
        %v834 = vand.u32 %v833, 4294901760
        %835 = vmatmul.mubr.f32.gmra.mrb[0].mxu0 %v834
        %v836 = vpop.f32.mrb[0].mxu0
        %v837 = vadd.f32 %v321, %v836
        %v838 = vpop.f32.mrb[0].mxu0
        %v839 = vand.u32 %v277, 4294901760
        %v840 = vsub.f32 %v277, %v839
        %v841 = vand.u32 %v840, 4294901760
        %v842 = vsub.f32 %v840, %v841
        %v843 = vand.u32 %v842, 4294901760
        %844 = vmatprep.mubr.f32.mxu0 %v843
        %v845 = vand.u32 %v276, 4294901760
        %v846 = vsub.f32 %v276, %v845
        %v847 = vand.u32 %v846, 4294901760
        %v848 = vsub.f32 %v846, %v847
        %v849 = vand.u32 %v848, 4294901760
        %850 = vmatmul.mubr.f32.gmra.mrb[0].mxu0 %v849
        %v851 = vpop.f32.mrb[0].mxu0
        %v852 = vadd.f32 %v321, %v851
        %v853 = vpop.f32.mrb[0].mxu0
        %v854 = vand.u32 %v279, 4294901760
        %v855 = vsub.f32 %v279, %v854
        %v856 = vand.u32 %v855, 4294901760
        %v857 = vsub.f32 %v855, %v856
        %v858 = vand.u32 %v857, 4294901760
        %859 = vmatprep.mubr.f32.mxu0 %v858
        %v860 = vand.u32 %v278, 4294901760
        %v861 = vsub.f32 %v278, %v860
        %v862 = vand.u32 %v861, 4294901760
        %v863 = vsub.f32 %v861, %v862
        %v864 = vand.u32 %v863, 4294901760
        %865 = vmatmul.mubr.f32.gmra.mrb[0].mxu0 %v864
        %v866 = vpop.f32.mrb[0].mxu0
        %v867 = vadd.f32 %v321, %v866
        %v868 = vpop.f32.mrb[0].mxu0
        %v869 = vand.u32 %v281, 4294901760
        %v870 = vsub.f32 %v281, %v869
        %v871 = vand.u32 %v870, 4294901760
        %v872 = vsub.f32 %v870, %v871
        %v873 = vand.u32 %v872, 4294901760
        %874 = vmatprep.mubr.f32.mxu0 %v873
        %v875 = vand.u32 %v280, 4294901760
        %v876 = vsub.f32 %v280, %v875
        %v877 = vand.u32 %v876, 4294901760
        %v878 = vsub.f32 %v876, %v877
        %v879 = vand.u32 %v878, 4294901760
        %880 = vmatmul.mubr.f32.gmra.mrb[0].mxu0 %v879
        %v881 = vpop.f32.mrb[0].mxu0
        %v882 = vadd.f32 %v321, %v881
        %v883 = vpop.f32.mrb[0].mxu0
        %v884 = vand.u32 %v283, 4294901760
        %v885 = vsub.f32 %v283, %v884
        %v886 = vand.u32 %v885, 4294901760
        %v887 = vsub.f32 %v885, %v886
        %v888 = vand.u32 %v887, 4294901760
        %889 = vmatprep.mubr.f32.mxu0 %v888
        %v890 = vand.u32 %v282, 4294901760
        %v891 = vsub.f32 %v282, %v890
        %v892 = vand.u32 %v891, 4294901760
        %v893 = vsub.f32 %v891, %v892
        %v894 = vand.u32 %v893, 4294901760
        %895 = vmatmul.mubr.f32.gmra.mrb[0].mxu0 %v894
        %v896 = vpop.f32.mrb[0].mxu0
        %v897 = vadd.f32 %v321, %v896
        %v898 = vpop.f32.mrb[0].mxu0
        %899 = vdwg.mxu0
        %900 = vmatprep.subr.mxu0 0.0
        %v901 = vand.u32 %v284, 4294901760
        %v902 = vsub.f32 %v284, %v901
        %v903 = vand.u32 %v902, 4294901760
        %v904 = vsub.f32 %v902, %v903
        %v905 = vand.u32 %v904, 4294901760
        %906 = vmatpush1.msra.mxu0 %v905
        %907 = vmatprep.subr.mxu0 0.0
        %v908 = vand.u32 %v285, 4294901760
        %v909 = vsub.f32 %v285, %v908
        %v910 = vand.u32 %v909, 4294901760
        %v911 = vsub.f32 %v909, %v910
        %v912 = vand.u32 %v911, 4294901760
        %913 = vmatpush1.msra.mxu0 %v912
        %914 = vmatprep.subr.mxu0 0.0
        %v915 = vand.u32 %v286, 4294901760
        %v916 = vsub.f32 %v286, %v915
        %v917 = vand.u32 %v916, 4294901760
        %v918 = vsub.f32 %v916, %v917
        %v919 = vand.u32 %v918, 4294901760
        %920 = vmatpush1.msra.mxu0 %v919
        %921 = vmatprep.subr.mxu0 0.0
        %v922 = vand.u32 %v287, 4294901760
        %v923 = vsub.f32 %v287, %v922
        %v924 = vand.u32 %v923, 4294901760
        %v925 = vsub.f32 %v923, %v924
        %v926 = vand.u32 %v925, 4294901760
        %927 = vmatpush1.msra.mxu0 %v926
        %928 = vmatprep.subr.mxu0 0.0
        %v929 = vand.u32 %v288, 4294901760
        %v930 = vsub.f32 %v288, %v929
        %v931 = vand.u32 %v930, 4294901760
        %v932 = vsub.f32 %v930, %v931
        %v933 = vand.u32 %v932, 4294901760
        %934 = vmatpush1.msra.mxu0 %v933
        %935 = vmatprep.subr.mxu0 0.0
        %v936 = vand.u32 %v289, 4294901760
        %v937 = vsub.f32 %v289, %v936
        %v938 = vand.u32 %v937, 4294901760
        %v939 = vsub.f32 %v937, %v938
        %v940 = vand.u32 %v939, 4294901760
        %941 = vmatpush1.msra.mxu0 %v940
        %942 = vmatprep.subr.mxu0 0.0
        %v943 = vand.u32 %v290, 4294901760
        %v944 = vsub.f32 %v290, %v943
        %v945 = vand.u32 %v944, 4294901760
        %v946 = vsub.f32 %v944, %v945
        %v947 = vand.u32 %v946, 4294901760
        %948 = vmatpush1.msra.mxu0 %v947
        %949 = vmatprep.subr.mxu0 0.0
        %v950 = vand.u32 %v291, 4294901760
        %v951 = vsub.f32 %v291, %v950
        %v952 = vand.u32 %v951, 4294901760
        %v953 = vsub.f32 %v951, %v952
        %v954 = vand.u32 %v953, 4294901760
        %955 = vmatpush1.msra.mxu0 %v954
        %956 = vmatprep.subr.mxu0 0.0
        %v957 = vand.u32 %v292, 4294901760
        %v958 = vsub.f32 %v292, %v957
        %v959 = vand.u32 %v958, 4294901760
        %v960 = vsub.f32 %v958, %v959
        %v961 = vand.u32 %v960, 4294901760
        %962 = vmatpush1.msra.mxu0 %v961
        %963 = vmatprep.subr.mxu0 0.0
        %v964 = vand.u32 %v293, 4294901760
        %v965 = vsub.f32 %v293, %v964
        %v966 = vand.u32 %v965, 4294901760
        %v967 = vsub.f32 %v965, %v966
        %v968 = vand.u32 %v967, 4294901760
        %969 = vmatpush1.msra.mxu0 %v968
        %970 = vmatprep.subr.mxu0 0.0
        %v971 = vand.u32 %v294, 4294901760
        %v972 = vsub.f32 %v294, %v971
        %v973 = vand.u32 %v972, 4294901760
        %v974 = vsub.f32 %v972, %v973
        %v975 = vand.u32 %v974, 4294901760
        %976 = vmatpush1.msra.mxu0 %v975
        %977 = vmatprep.subr.mxu0 0.0
        %v978 = vand.u32 %v295, 4294901760
        %v979 = vsub.f32 %v295, %v978
        %v980 = vand.u32 %v979, 4294901760
        %v981 = vsub.f32 %v979, %v980
        %v982 = vand.u32 %v981, 4294901760
        %983 = vmatpush1.msra.mxu0 %v982
        %984 = vmatprep.subr.mxu0 0.0
        %v985 = vand.u32 %v296, 4294901760
        %v986 = vsub.f32 %v296, %v985
        %v987 = vand.u32 %v986, 4294901760
        %v988 = vsub.f32 %v986, %v987
        %v989 = vand.u32 %v988, 4294901760
        %990 = vmatpush1.msra.mxu0 %v989
        %991 = vmatprep.subr.mxu0 0.0
        %v992 = vand.u32 %v297, 4294901760
        %v993 = vsub.f32 %v297, %v992
        %v994 = vand.u32 %v993, 4294901760
        %v995 = vsub.f32 %v993, %v994
        %v996 = vand.u32 %v995, 4294901760
        %997 = vmatpush1.msra.mxu0 %v996
        %998 = vmatprep.subr.mxu0 0.0
        %v999 = vand.u32 %v298, 4294901760
        %v1000 = vsub.f32 %v298, %v999
        %v1001 = vand.u32 %v1000, 4294901760
        %v1002 = vsub.f32 %v1000, %v1001
        %v1003 = vand.u32 %v1002, 4294901760
        %1004 = vmatpush1.msra.mxu0 %v1003
        %1005 = vmatprep.subr.mxu0 0.0
        %v1006 = vand.u32 %v299, 4294901760
        %v1007 = vsub.f32 %v299, %v1006
        %v1008 = vand.u32 %v1007, 4294901760
        %v1009 = vsub.f32 %v1007, %v1008
        %v1010 = vand.u32 %v1009, 4294901760
        %1011 = vmatpush1.msra.mxu0 %v1010
        %1012 = vmatprep.subr.mxu0 0.0
        %v1013 = vand.u32 %v300, 4294901760
        %v1014 = vsub.f32 %v300, %v1013
        %v1015 = vand.u32 %v1014, 4294901760
        %v1016 = vsub.f32 %v1014, %v1015
        %v1017 = vand.u32 %v1016, 4294901760
        %1018 = vmatpush1.msra.mxu0 %v1017
        %1019 = vmatprep.subr.mxu0 0.0
        %v1020 = vand.u32 %v301, 4294901760
        %v1021 = vsub.f32 %v301, %v1020
        %v1022 = vand.u32 %v1021, 4294901760
        %v1023 = vsub.f32 %v1021, %v1022
        %v1024 = vand.u32 %v1023, 4294901760
        %1025 = vmatpush1.msra.mxu0 %v1024
        %1026 = vmatprep.subr.mxu0 0.0
        %v1027 = vand.u32 %v302, 4294901760
        %v1028 = vsub.f32 %v302, %v1027
        %v1029 = vand.u32 %v1028, 4294901760
        %v1030 = vsub.f32 %v1028, %v1029
        %v1031 = vand.u32 %v1030, 4294901760
        %1032 = vmatpush1.msra.mxu0 %v1031
        %1033 = vmatprep.subr.mxu0 0.0
        %v1034 = vand.u32 %v303, 4294901760
        %v1035 = vsub.f32 %v303, %v1034
        %v1036 = vand.u32 %v1035, 4294901760
        %v1037 = vsub.f32 %v1035, %v1036
        %v1038 = vand.u32 %v1037, 4294901760
        %1039 = vmatpush1.msra.mxu0 %v1038
        %1040 = vmatprep.subr.mxu0 0.0
        %v1041 = vand.u32 %v304, 4294901760
        %v1042 = vsub.f32 %v304, %v1041
        %v1043 = vand.u32 %v1042, 4294901760
        %v1044 = vsub.f32 %v1042, %v1043
        %v1045 = vand.u32 %v1044, 4294901760
        %1046 = vmatpush1.msra.mxu0 %v1045
        %1047 = vmatprep.subr.mxu0 0.0
        %v1048 = vand.u32 %v305, 4294901760
        %v1049 = vsub.f32 %v305, %v1048
        %v1050 = vand.u32 %v1049, 4294901760
        %v1051 = vsub.f32 %v1049, %v1050
        %v1052 = vand.u32 %v1051, 4294901760
        %1053 = vmatpush1.msra.mxu0 %v1052
        %1054 = vmatprep.subr.mxu0 0.0
        %v1055 = vand.u32 %v306, 4294901760
        %v1056 = vsub.f32 %v306, %v1055
        %v1057 = vand.u32 %v1056, 4294901760
        %v1058 = vsub.f32 %v1056, %v1057
        %v1059 = vand.u32 %v1058, 4294901760
        %1060 = vmatpush1.msra.mxu0 %v1059
        %1061 = vmatprep.subr.mxu0 0.0
        %v1062 = vand.u32 %v307, 4294901760
        %v1063 = vsub.f32 %v307, %v1062
        %v1064 = vand.u32 %v1063, 4294901760
        %v1065 = vsub.f32 %v1063, %v1064
        %v1066 = vand.u32 %v1065, 4294901760
        %1067 = vmatpush1.msra.mxu0 %v1066
        %1068 = vmatprep.subr.mxu0 0.0
        %v1069 = vand.u32 %v308, 4294901760
        %v1070 = vsub.f32 %v308, %v1069
        %v1071 = vand.u32 %v1070, 4294901760
        %v1072 = vsub.f32 %v1070, %v1071
        %v1073 = vand.u32 %v1072, 4294901760
        %1074 = vmatpush1.msra.mxu0 %v1073
        %1075 = vmatprep.subr.mxu0 0.0
        %v1076 = vand.u32 %v309, 4294901760
        %v1077 = vsub.f32 %v309, %v1076
        %v1078 = vand.u32 %v1077, 4294901760
        %v1079 = vsub.f32 %v1077, %v1078
        %v1080 = vand.u32 %v1079, 4294901760
        %1081 = vmatpush1.msra.mxu0 %v1080
        %1082 = vmatprep.subr.mxu0 0.0
        %v1083 = vand.u32 %v310, 4294901760
        %v1084 = vsub.f32 %v310, %v1083
        %v1085 = vand.u32 %v1084, 4294901760
        %v1086 = vsub.f32 %v1084, %v1085
        %v1087 = vand.u32 %v1086, 4294901760
        %1088 = vmatpush1.msra.mxu0 %v1087
        %1089 = vmatprep.subr.mxu0 0.0
        %v1090 = vand.u32 %v311, 4294901760
        %v1091 = vsub.f32 %v311, %v1090
        %v1092 = vand.u32 %v1091, 4294901760
        %v1093 = vsub.f32 %v1091, %v1092
        %v1094 = vand.u32 %v1093, 4294901760
        %1095 = vmatpush1.msra.mxu0 %v1094
        %1096 = vmatprep.subr.mxu0 0.0
        %v1097 = vand.u32 %v312, 4294901760
        %v1098 = vsub.f32 %v312, %v1097
        %v1099 = vand.u32 %v1098, 4294901760
        %v1100 = vsub.f32 %v1098, %v1099
        %v1101 = vand.u32 %v1100, 4294901760
        %1102 = vmatpush1.msra.mxu0 %v1101
        %1103 = vmatprep.subr.mxu0 0.0
        %v1104 = vand.u32 %v313, 4294901760
        %v1105 = vsub.f32 %v313, %v1104
        %v1106 = vand.u32 %v1105, 4294901760
        %v1107 = vsub.f32 %v1105, %v1106
        %v1108 = vand.u32 %v1107, 4294901760
        %1109 = vmatpush1.msra.mxu0 %v1108
        %1110 = vmatprep.subr.mxu0 0.0
        %v1111 = vand.u32 %v314, 4294901760
        %v1112 = vsub.f32 %v314, %v1111
        %v1113 = vand.u32 %v1112, 4294901760
        %v1114 = vsub.f32 %v1112, %v1113
        %v1115 = vand.u32 %v1114, 4294901760
        %1116 = vmatpush1.msra.mxu0 %v1115
        %1117 = vmatprep.subr.mxu0 0.0
        %v1118 = vand.u32 %v315, 4294901760
        %v1119 = vsub.f32 %v315, %v1118
        %v1120 = vand.u32 %v1119, 4294901760
        %v1121 = vsub.f32 %v1119, %v1120
        %v1122 = vand.u32 %v1121, 4294901760
        %1123 = vmatpush1.msra.mxu0 %v1122
        %v1124 = vand.u32 %v221, 4294901760
        %1125 = vmatprep.mubr.f32.mxu0 %v1124
        %v1126 = vand.u32 %v220, 4294901760
        %1127 = vmatmul.mubr.f32.gmra.mrb[0].mxu0 %v1126
        %v1128 = vpop.f32.mrb[0].mxu0
        %v1129 = vadd.f32 %v432, %v1128
        %v1130 = vpop.f32.mrb[0].mxu0
        %v1131 = vand.u32 %v223, 4294901760
        %1132 = vmatprep.mubr.f32.mxu0 %v1131
        %v1133 = vand.u32 %v222, 4294901760
        %1134 = vmatmul.mubr.f32.gmra.mrb[0].mxu0 %v1133
        %v1135 = vpop.f32.mrb[0].mxu0
        %v1136 = vadd.f32 %v447, %v1135
        %v1137 = vpop.f32.mrb[0].mxu0
        %v1138 = vand.u32 %v225, 4294901760
        %1139 = vmatprep.mubr.f32.mxu0 %v1138
        %v1140 = vand.u32 %v224, 4294901760
        %1141 = vmatmul.mubr.f32.gmra.mrb[0].mxu0 %v1140
        %v1142 = vpop.f32.mrb[0].mxu0
        %v1143 = vadd.f32 %v462, %v1142
        %v1144 = vpop.f32.mrb[0].mxu0
        %v1145 = vand.u32 %v227, 4294901760
        %1146 = vmatprep.mubr.f32.mxu0 %v1145
        %v1147 = vand.u32 %v226, 4294901760
        %1148 = vmatmul.mubr.f32.gmra.mrb[0].mxu0 %v1147
        %v1149 = vpop.f32.mrb[0].mxu0
        %v1150 = vadd.f32 %v477, %v1149
        %v1151 = vpop.f32.mrb[0].mxu0
        %v1152 = vand.u32 %v229, 4294901760
        %1153 = vmatprep.mubr.f32.mxu0 %v1152
        %v1154 = vand.u32 %v228, 4294901760
        %1155 = vmatmul.mubr.f32.gmra.mrb[0].mxu0 %v1154
        %v1156 = vpop.f32.mrb[0].mxu0
        %v1157 = vadd.f32 %v492, %v1156
        %v1158 = vpop.f32.mrb[0].mxu0
        %v1159 = vand.u32 %v231, 4294901760
        %1160 = vmatprep.mubr.f32.mxu0 %v1159
        %v1161 = vand.u32 %v230, 4294901760
        %1162 = vmatmul.mubr.f32.gmra.mrb[0].mxu0 %v1161
        %v1163 = vpop.f32.mrb[0].mxu0
        %v1164 = vadd.f32 %v507, %v1163
        %v1165 = vpop.f32.mrb[0].mxu0
        %v1166 = vand.u32 %v233, 4294901760
        %1167 = vmatprep.mubr.f32.mxu0 %v1166
        %v1168 = vand.u32 %v232, 4294901760
        %1169 = vmatmul.mubr.f32.gmra.mrb[0].mxu0 %v1168
        %v1170 = vpop.f32.mrb[0].mxu0
        %v1171 = vadd.f32 %v522, %v1170
        %v1172 = vpop.f32.mrb[0].mxu0
        %v1173 = vand.u32 %v235, 4294901760
        %1174 = vmatprep.mubr.f32.mxu0 %v1173
        %v1175 = vand.u32 %v234, 4294901760
        %1176 = vmatmul.mubr.f32.gmra.mrb[0].mxu0 %v1175
        %v1177 = vpop.f32.mrb[0].mxu0
        %v1178 = vadd.f32 %v537, %v1177
        %v1179 = vpop.f32.mrb[0].mxu0
        %v1180 = vand.u32 %v237, 4294901760
        %1181 = vmatprep.mubr.f32.mxu0 %v1180
        %v1182 = vand.u32 %v236, 4294901760
        %1183 = vmatmul.mubr.f32.gmra.mrb[0].mxu0 %v1182
        %v1184 = vpop.f32.mrb[0].mxu0
        %v1185 = vadd.f32 %v552, %v1184
        %v1186 = vpop.f32.mrb[0].mxu0
        %v1187 = vand.u32 %v239, 4294901760
        %1188 = vmatprep.mubr.f32.mxu0 %v1187
        %v1189 = vand.u32 %v238, 4294901760
        %1190 = vmatmul.mubr.f32.gmra.mrb[0].mxu0 %v1189
        %v1191 = vpop.f32.mrb[0].mxu0
        %v1192 = vadd.f32 %v567, %v1191
        %v1193 = vpop.f32.mrb[0].mxu0
        %v1194 = vand.u32 %v241, 4294901760
        %1195 = vmatprep.mubr.f32.mxu0 %v1194
        %v1196 = vand.u32 %v240, 4294901760
        %1197 = vmatmul.mubr.f32.gmra.mrb[0].mxu0 %v1196
        %v1198 = vpop.f32.mrb[0].mxu0
        %v1199 = vadd.f32 %v582, %v1198
        %v1200 = vpop.f32.mrb[0].mxu0
        %v1201 = vand.u32 %v243, 4294901760
        %1202 = vmatprep.mubr.f32.mxu0 %v1201
        %v1203 = vand.u32 %v242, 4294901760
        %1204 = vmatmul.mubr.f32.gmra.mrb[0].mxu0 %v1203
        %v1205 = vpop.f32.mrb[0].mxu0
        %v1206 = vadd.f32 %v597, %v1205
        %v1207 = vpop.f32.mrb[0].mxu0
        %v1208 = vand.u32 %v245, 4294901760
        %1209 = vmatprep.mubr.f32.mxu0 %v1208
        %v1210 = vand.u32 %v244, 4294901760
        %1211 = vmatmul.mubr.f32.gmra.mrb[0].mxu0 %v1210
        %v1212 = vpop.f32.mrb[0].mxu0
        %v1213 = vadd.f32 %v612, %v1212
        %v1214 = vpop.f32.mrb[0].mxu0
        %v1215 = vand.u32 %v247, 4294901760
        %1216 = vmatprep.mubr.f32.mxu0 %v1215
        %v1217 = vand.u32 %v246, 4294901760
        %1218 = vmatmul.mubr.f32.gmra.mrb[0].mxu0 %v1217
        %v1219 = vpop.f32.mrb[0].mxu0
        %v1220 = vadd.f32 %v627, %v1219
        %v1221 = vpop.f32.mrb[0].mxu0
        %v1222 = vand.u32 %v249, 4294901760
        %1223 = vmatprep.mubr.f32.mxu0 %v1222
        %v1224 = vand.u32 %v248, 4294901760
        %1225 = vmatmul.mubr.f32.gmra.mrb[0].mxu0 %v1224
        %v1226 = vpop.f32.mrb[0].mxu0
        %v1227 = vadd.f32 %v642, %v1226
        %v1228 = vpop.f32.mrb[0].mxu0
        %v1229 = vand.u32 %v251, 4294901760
        %1230 = vmatprep.mubr.f32.mxu0 %v1229
        %v1231 = vand.u32 %v250, 4294901760
        %1232 = vmatmul.mubr.f32.gmra.mrb[0].mxu0 %v1231
        %v1233 = vpop.f32.mrb[0].mxu0
        %v1234 = vadd.f32 %v657, %v1233
        %v1235 = vpop.f32.mrb[0].mxu0
        %v1236 = vand.u32 %v253, 4294901760
        %1237 = vmatprep.mubr.f32.mxu0 %v1236
        %v1238 = vand.u32 %v252, 4294901760
        %1239 = vmatmul.mubr.f32.gmra.mrb[0].mxu0 %v1238
        %v1240 = vpop.f32.mrb[0].mxu0
        %v1241 = vadd.f32 %v672, %v1240
        %v1242 = vpop.f32.mrb[0].mxu0
        %v1243 = vand.u32 %v255, 4294901760
        %1244 = vmatprep.mubr.f32.mxu0 %v1243
        %v1245 = vand.u32 %v254, 4294901760
        %1246 = vmatmul.mubr.f32.gmra.mrb[0].mxu0 %v1245
        %v1247 = vpop.f32.mrb[0].mxu0
        %v1248 = vadd.f32 %v687, %v1247
        %v1249 = vpop.f32.mrb[0].mxu0
        %v1250 = vand.u32 %v257, 4294901760
        %1251 = vmatprep.mubr.f32.mxu0 %v1250
        %v1252 = vand.u32 %v256, 4294901760
        %1253 = vmatmul.mubr.f32.gmra.mrb[0].mxu0 %v1252
        %v1254 = vpop.f32.mrb[0].mxu0
        %v1255 = vadd.f32 %v702, %v1254
        %v1256 = vpop.f32.mrb[0].mxu0
        %v1257 = vand.u32 %v259, 4294901760
        %1258 = vmatprep.mubr.f32.mxu0 %v1257
        %v1259 = vand.u32 %v258, 4294901760
        %1260 = vmatmul.mubr.f32.gmra.mrb[0].mxu0 %v1259
        %v1261 = vpop.f32.mrb[0].mxu0
        %v1262 = vadd.f32 %v717, %v1261
        %v1263 = vpop.f32.mrb[0].mxu0
        %v1264 = vand.u32 %v261, 4294901760
        %1265 = vmatprep.mubr.f32.mxu0 %v1264
        %v1266 = vand.u32 %v260, 4294901760
        %1267 = vmatmul.mubr.f32.gmra.mrb[0].mxu0 %v1266
        %v1268 = vpop.f32.mrb[0].mxu0
        %v1269 = vadd.f32 %v732, %v1268
        %v1270 = vpop.f32.mrb[0].mxu0
        %v1271 = vand.u32 %v263, 4294901760
        %1272 = vmatprep.mubr.f32.mxu0 %v1271
        %v1273 = vand.u32 %v262, 4294901760
        %1274 = vmatmul.mubr.f32.gmra.mrb[0].mxu0 %v1273
        %v1275 = vpop.f32.mrb[0].mxu0
        %v1276 = vadd.f32 %v747, %v1275
        %v1277 = vpop.f32.mrb[0].mxu0
        %v1278 = vand.u32 %v265, 4294901760
        %1279 = vmatprep.mubr.f32.mxu0 %v1278
        %v1280 = vand.u32 %v264, 4294901760
        %1281 = vmatmul.mubr.f32.gmra.mrb[0].mxu0 %v1280
        %v1282 = vpop.f32.mrb[0].mxu0
        %v1283 = vadd.f32 %v762, %v1282
        %v1284 = vpop.f32.mrb[0].mxu0
        %v1285 = vand.u32 %v267, 4294901760
        %1286 = vmatprep.mubr.f32.mxu0 %v1285
        %v1287 = vand.u32 %v266, 4294901760
        %1288 = vmatmul.mubr.f32.gmra.mrb[0].mxu0 %v1287
        %v1289 = vpop.f32.mrb[0].mxu0
        %v1290 = vadd.f32 %v777, %v1289
        %v1291 = vpop.f32.mrb[0].mxu0
        %v1292 = vand.u32 %v269, 4294901760
        %1293 = vmatprep.mubr.f32.mxu0 %v1292
        %v1294 = vand.u32 %v268, 4294901760
        %1295 = vmatmul.mubr.f32.gmra.mrb[0].mxu0 %v1294
        %v1296 = vpop.f32.mrb[0].mxu0
        %v1297 = vadd.f32 %v792, %v1296
        %v1298 = vpop.f32.mrb[0].mxu0
        %v1299 = vand.u32 %v271, 4294901760
        %1300 = vmatprep.mubr.f32.mxu0 %v1299
        %v1301 = vand.u32 %v270, 4294901760
        %1302 = vmatmul.mubr.f32.gmra.mrb[0].mxu0 %v1301
        %v1303 = vpop.f32.mrb[0].mxu0
        %v1304 = vadd.f32 %v807, %v1303
        %v1305 = vpop.f32.mrb[0].mxu0
        %v1306 = vand.u32 %v273, 4294901760
        %1307 = vmatprep.mubr.f32.mxu0 %v1306
        %v1308 = vand.u32 %v272, 4294901760
        %1309 = vmatmul.mubr.f32.gmra.mrb[0].mxu0 %v1308
        %v1310 = vpop.f32.mrb[0].mxu0
        %v1311 = vadd.f32 %v822, %v1310
        %v1312 = vpop.f32.mrb[0].mxu0
        %v1313 = vand.u32 %v275, 4294901760
        %1314 = vmatprep.mubr.f32.mxu0 %v1313
        %v1315 = vand.u32 %v274, 4294901760
        %1316 = vmatmul.mubr.f32.gmra.mrb[0].mxu0 %v1315
        %v1317 = vpop.f32.mrb[0].mxu0
        %v1318 = vadd.f32 %v837, %v1317
        %v1319 = vpop.f32.mrb[0].mxu0
        %v1320 = vand.u32 %v277, 4294901760
        %1321 = vmatprep.mubr.f32.mxu0 %v1320
        %v1322 = vand.u32 %v276, 4294901760
        %1323 = vmatmul.mubr.f32.gmra.mrb[0].mxu0 %v1322
        %v1324 = vpop.f32.mrb[0].mxu0
        %v1325 = vadd.f32 %v852, %v1324
        %v1326 = vpop.f32.mrb[0].mxu0
        %v1327 = vand.u32 %v279, 4294901760
        %1328 = vmatprep.mubr.f32.mxu0 %v1327
        %v1329 = vand.u32 %v278, 4294901760
        %1330 = vmatmul.mubr.f32.gmra.mrb[0].mxu0 %v1329
        %v1331 = vpop.f32.mrb[0].mxu0
        %v1332 = vadd.f32 %v867, %v1331
        %v1333 = vpop.f32.mrb[0].mxu0
        %v1334 = vand.u32 %v281, 4294901760
        %1335 = vmatprep.mubr.f32.mxu0 %v1334
        %v1336 = vand.u32 %v280, 4294901760
        %1337 = vmatmul.mubr.f32.gmra.mrb[0].mxu0 %v1336
        %v1338 = vpop.f32.mrb[0].mxu0
        %v1339 = vadd.f32 %v882, %v1338
        %v1340 = vpop.f32.mrb[0].mxu0
        %v1341 = vand.u32 %v283, 4294901760
        %1342 = vmatprep.mubr.f32.mxu0 %v1341
        %v1343 = vand.u32 %v282, 4294901760
        %1344 = vmatmul.mubr.f32.gmra.mrb[0].mxu0 %v1343
        %v1345 = vpop.f32.mrb[0].mxu0
        %v1346 = vadd.f32 %v897, %v1345
        %v1347 = vpop.f32.mrb[0].mxu0
        %1348 = vdwg.mxu0
        %1349 = vmatprep.subr.mxu0 0.0
        %v1350 = vand.u32 %v284, 4294901760
        %v1351 = vsub.f32 %v284, %v1350
        %1352 = vmatpush1.msra.mxu0 %v1351
        %1353 = vmatprep.subr.mxu0 0.0
        %v1354 = vand.u32 %v285, 4294901760
        %v1355 = vsub.f32 %v285, %v1354
        %1356 = vmatpush1.msra.mxu0 %v1355
        %1357 = vmatprep.subr.mxu0 0.0
        %v1358 = vand.u32 %v286, 4294901760
        %v1359 = vsub.f32 %v286, %v1358
        %1360 = vmatpush1.msra.mxu0 %v1359
        %1361 = vmatprep.subr.mxu0 0.0
        %v1362 = vand.u32 %v287, 4294901760
        %v1363 = vsub.f32 %v287, %v1362
        %1364 = vmatpush1.msra.mxu0 %v1363
        %1365 = vmatprep.subr.mxu0 0.0
        %v1366 = vand.u32 %v288, 4294901760
        %v1367 = vsub.f32 %v288, %v1366
        %1368 = vmatpush1.msra.mxu0 %v1367
        %1369 = vmatprep.subr.mxu0 0.0
        %v1370 = vand.u32 %v289, 4294901760
        %v1371 = vsub.f32 %v289, %v1370
        %1372 = vmatpush1.msra.mxu0 %v1371
        %1373 = vmatprep.subr.mxu0 0.0
        %v1374 = vand.u32 %v290, 4294901760
        %v1375 = vsub.f32 %v290, %v1374
        %1376 = vmatpush1.msra.mxu0 %v1375
        %1377 = vmatprep.subr.mxu0 0.0
        %v1378 = vand.u32 %v291, 4294901760
        %v1379 = vsub.f32 %v291, %v1378
        %1380 = vmatpush1.msra.mxu0 %v1379
        %1381 = vmatprep.subr.mxu0 0.0
        %v1382 = vand.u32 %v292, 4294901760
        %v1383 = vsub.f32 %v292, %v1382
        %1384 = vmatpush1.msra.mxu0 %v1383
        %1385 = vmatprep.subr.mxu0 0.0
        %v1386 = vand.u32 %v293, 4294901760
        %v1387 = vsub.f32 %v293, %v1386
        %1388 = vmatpush1.msra.mxu0 %v1387
        %1389 = vmatprep.subr.mxu0 0.0
        %v1390 = vand.u32 %v294, 4294901760
        %v1391 = vsub.f32 %v294, %v1390
        %1392 = vmatpush1.msra.mxu0 %v1391
        %1393 = vmatprep.subr.mxu0 0.0
        %v1394 = vand.u32 %v295, 4294901760
        %v1395 = vsub.f32 %v295, %v1394
        %1396 = vmatpush1.msra.mxu0 %v1395
        %1397 = vmatprep.subr.mxu0 0.0
        %v1398 = vand.u32 %v296, 4294901760
        %v1399 = vsub.f32 %v296, %v1398
        %1400 = vmatpush1.msra.mxu0 %v1399
        %1401 = vmatprep.subr.mxu0 0.0
        %v1402 = vand.u32 %v297, 4294901760
        %v1403 = vsub.f32 %v297, %v1402
        %1404 = vmatpush1.msra.mxu0 %v1403
        %1405 = vmatprep.subr.mxu0 0.0
        %v1406 = vand.u32 %v298, 4294901760
        %v1407 = vsub.f32 %v298, %v1406
        %1408 = vmatpush1.msra.mxu0 %v1407
        %1409 = vmatprep.subr.mxu0 0.0
        %v1410 = vand.u32 %v299, 4294901760
        %v1411 = vsub.f32 %v299, %v1410
        %1412 = vmatpush1.msra.mxu0 %v1411
        %1413 = vmatprep.subr.mxu0 0.0
        %v1414 = vand.u32 %v300, 4294901760
        %v1415 = vsub.f32 %v300, %v1414
        %1416 = vmatpush1.msra.mxu0 %v1415
        %1417 = vmatprep.subr.mxu0 0.0
        %v1418 = vand.u32 %v301, 4294901760
        %v1419 = vsub.f32 %v301, %v1418
        %1420 = vmatpush1.msra.mxu0 %v1419
        %1421 = vmatprep.subr.mxu0 0.0
        %v1422 = vand.u32 %v302, 4294901760
        %v1423 = vsub.f32 %v302, %v1422
        %1424 = vmatpush1.msra.mxu0 %v1423
        %1425 = vmatprep.subr.mxu0 0.0
        %v1426 = vand.u32 %v303, 4294901760
        %v1427 = vsub.f32 %v303, %v1426
        %1428 = vmatpush1.msra.mxu0 %v1427
        %1429 = vmatprep.subr.mxu0 0.0
        %v1430 = vand.u32 %v304, 4294901760
        %v1431 = vsub.f32 %v304, %v1430
        %1432 = vmatpush1.msra.mxu0 %v1431
        %1433 = vmatprep.subr.mxu0 0.0
        %v1434 = vand.u32 %v305, 4294901760
        %v1435 = vsub.f32 %v305, %v1434
        %1436 = vmatpush1.msra.mxu0 %v1435
        %1437 = vmatprep.subr.mxu0 0.0
        %v1438 = vand.u32 %v306, 4294901760
        %v1439 = vsub.f32 %v306, %v1438
        %1440 = vmatpush1.msra.mxu0 %v1439
        %1441 = vmatprep.subr.mxu0 0.0
        %v1442 = vand.u32 %v307, 4294901760
        %v1443 = vsub.f32 %v307, %v1442
        %1444 = vmatpush1.msra.mxu0 %v1443
        %1445 = vmatprep.subr.mxu0 0.0
        %v1446 = vand.u32 %v308, 4294901760
        %v1447 = vsub.f32 %v308, %v1446
        %1448 = vmatpush1.msra.mxu0 %v1447
        %1449 = vmatprep.subr.mxu0 0.0
        %v1450 = vand.u32 %v309, 4294901760
        %v1451 = vsub.f32 %v309, %v1450
        %1452 = vmatpush1.msra.mxu0 %v1451
        %1453 = vmatprep.subr.mxu0 0.0
        %v1454 = vand.u32 %v310, 4294901760
        %v1455 = vsub.f32 %v310, %v1454
        %1456 = vmatpush1.msra.mxu0 %v1455
        %1457 = vmatprep.subr.mxu0 0.0
        %v1458 = vand.u32 %v311, 4294901760
        %v1459 = vsub.f32 %v311, %v1458
        %1460 = vmatpush1.msra.mxu0 %v1459
        %1461 = vmatprep.subr.mxu0 0.0
        %v1462 = vand.u32 %v312, 4294901760
        %v1463 = vsub.f32 %v312, %v1462
        %1464 = vmatpush1.msra.mxu0 %v1463
        %1465 = vmatprep.subr.mxu0 0.0
        %v1466 = vand.u32 %v313, 4294901760
        %v1467 = vsub.f32 %v313, %v1466
        %1468 = vmatpush1.msra.mxu0 %v1467
        %1469 = vmatprep.subr.mxu0 0.0
        %v1470 = vand.u32 %v314, 4294901760
        %v1471 = vsub.f32 %v314, %v1470
        %1472 = vmatpush1.msra.mxu0 %v1471
        %1473 = vmatprep.subr.mxu0 0.0
        %v1474 = vand.u32 %v315, 4294901760
        %v1475 = vsub.f32 %v315, %v1474
        %1476 = vmatpush1.msra.mxu0 %v1475
        %v1477 = vand.u32 %v221, 4294901760
        %v1478 = vsub.f32 %v221, %v1477
        %1479 = vmatprep.mubr.f32.mxu0 %v1478
        %v1480 = vand.u32 %v220, 4294901760
        %v1481 = vsub.f32 %v220, %v1480
        %1482 = vmatmul.mubr.f32.gmra.mrb[0].mxu0 %v1481
        %v1483 = vpop.f32.mrb[0].mxu0
        %v1484 = vadd.f32 %v1129, %v1483
        %v1485 = vpop.f32.mrb[0].mxu0
        %v1486 = vand.u32 %v223, 4294901760
        %v1487 = vsub.f32 %v223, %v1486
        %1488 = vmatprep.mubr.f32.mxu0 %v1487
        %v1489 = vand.u32 %v222, 4294901760
        %v1490 = vsub.f32 %v222, %v1489
        %1491 = vmatmul.mubr.f32.gmra.mrb[0].mxu0 %v1490
        %v1492 = vpop.f32.mrb[0].mxu0
        %v1493 = vadd.f32 %v1136, %v1492
        %v1494 = vpop.f32.mrb[0].mxu0
        %v1495 = vand.u32 %v225, 4294901760
        %v1496 = vsub.f32 %v225, %v1495
        %1497 = vmatprep.mubr.f32.mxu0 %v1496
        %v1498 = vand.u32 %v224, 4294901760
        %v1499 = vsub.f32 %v224, %v1498
        %1500 = vmatmul.mubr.f32.gmra.mrb[0].mxu0 %v1499
        %v1501 = vpop.f32.mrb[0].mxu0
        %v1502 = vadd.f32 %v1143, %v1501
        %v1503 = vpop.f32.mrb[0].mxu0
        %v1504 = vand.u32 %v227, 4294901760
        %v1505 = vsub.f32 %v227, %v1504
        %1506 = vmatprep.mubr.f32.mxu0 %v1505
        %v1507 = vand.u32 %v226, 4294901760
        %v1508 = vsub.f32 %v226, %v1507
        %1509 = vmatmul.mubr.f32.gmra.mrb[0].mxu0 %v1508
        %v1510 = vpop.f32.mrb[0].mxu0
        %v1511 = vadd.f32 %v1150, %v1510
        %v1512 = vpop.f32.mrb[0].mxu0
        %v1513 = vand.u32 %v229, 4294901760
        %v1514 = vsub.f32 %v229, %v1513
        %1515 = vmatprep.mubr.f32.mxu0 %v1514
        %v1516 = vand.u32 %v228, 4294901760
        %v1517 = vsub.f32 %v228, %v1516
        %1518 = vmatmul.mubr.f32.gmra.mrb[0].mxu0 %v1517
        %v1519 = vpop.f32.mrb[0].mxu0
        %v1520 = vadd.f32 %v1157, %v1519
        %v1521 = vpop.f32.mrb[0].mxu0
        %v1522 = vand.u32 %v231, 4294901760
        %v1523 = vsub.f32 %v231, %v1522
        %1524 = vmatprep.mubr.f32.mxu0 %v1523
        %v1525 = vand.u32 %v230, 4294901760
        %v1526 = vsub.f32 %v230, %v1525
        %1527 = vmatmul.mubr.f32.gmra.mrb[0].mxu0 %v1526
        %v1528 = vpop.f32.mrb[0].mxu0
        %v1529 = vadd.f32 %v1164, %v1528
        %v1530 = vpop.f32.mrb[0].mxu0
        %v1531 = vand.u32 %v233, 4294901760
        %v1532 = vsub.f32 %v233, %v1531
        %1533 = vmatprep.mubr.f32.mxu0 %v1532
        %v1534 = vand.u32 %v232, 4294901760
        %v1535 = vsub.f32 %v232, %v1534
        %1536 = vmatmul.mubr.f32.gmra.mrb[0].mxu0 %v1535
        %v1537 = vpop.f32.mrb[0].mxu0
        %v1538 = vadd.f32 %v1171, %v1537
        %v1539 = vpop.f32.mrb[0].mxu0
        %v1540 = vand.u32 %v235, 4294901760
        %v1541 = vsub.f32 %v235, %v1540
        %1542 = vmatprep.mubr.f32.mxu0 %v1541
        %v1543 = vand.u32 %v234, 4294901760
        %v1544 = vsub.f32 %v234, %v1543
        %1545 = vmatmul.mubr.f32.gmra.mrb[0].mxu0 %v1544
        %v1546 = vpop.f32.mrb[0].mxu0
        %v1547 = vadd.f32 %v1178, %v1546
        %v1548 = vpop.f32.mrb[0].mxu0
        %v1549 = vand.u32 %v237, 4294901760
        %v1550 = vsub.f32 %v237, %v1549
        %1551 = vmatprep.mubr.f32.mxu0 %v1550
        %v1552 = vand.u32 %v236, 4294901760
        %v1553 = vsub.f32 %v236, %v1552
        %1554 = vmatmul.mubr.f32.gmra.mrb[0].mxu0 %v1553
        %v1555 = vpop.f32.mrb[0].mxu0
        %v1556 = vadd.f32 %v1185, %v1555
        %v1557 = vpop.f32.mrb[0].mxu0
        %v1558 = vand.u32 %v239, 4294901760
        %v1559 = vsub.f32 %v239, %v1558
        %1560 = vmatprep.mubr.f32.mxu0 %v1559
        %v1561 = vand.u32 %v238, 4294901760
        %v1562 = vsub.f32 %v238, %v1561
        %1563 = vmatmul.mubr.f32.gmra.mrb[0].mxu0 %v1562
        %v1564 = vpop.f32.mrb[0].mxu0
        %v1565 = vadd.f32 %v1192, %v1564
        %v1566 = vpop.f32.mrb[0].mxu0
        %v1567 = vand.u32 %v241, 4294901760
        %v1568 = vsub.f32 %v241, %v1567
        %1569 = vmatprep.mubr.f32.mxu0 %v1568
        %v1570 = vand.u32 %v240, 4294901760
        %v1571 = vsub.f32 %v240, %v1570
        %1572 = vmatmul.mubr.f32.gmra.mrb[0].mxu0 %v1571
        %v1573 = vpop.f32.mrb[0].mxu0
        %v1574 = vadd.f32 %v1199, %v1573
        %v1575 = vpop.f32.mrb[0].mxu0
        %v1576 = vand.u32 %v243, 4294901760
        %v1577 = vsub.f32 %v243, %v1576
        %1578 = vmatprep.mubr.f32.mxu0 %v1577
        %v1579 = vand.u32 %v242, 4294901760
        %v1580 = vsub.f32 %v242, %v1579
        %1581 = vmatmul.mubr.f32.gmra.mrb[0].mxu0 %v1580
        %v1582 = vpop.f32.mrb[0].mxu0
        %v1583 = vadd.f32 %v1206, %v1582
        %v1584 = vpop.f32.mrb[0].mxu0
        %v1585 = vand.u32 %v245, 4294901760
        %v1586 = vsub.f32 %v245, %v1585
        %1587 = vmatprep.mubr.f32.mxu0 %v1586
        %v1588 = vand.u32 %v244, 4294901760
        %v1589 = vsub.f32 %v244, %v1588
        %1590 = vmatmul.mubr.f32.gmra.mrb[0].mxu0 %v1589
        %v1591 = vpop.f32.mrb[0].mxu0
        %v1592 = vadd.f32 %v1213, %v1591
        %v1593 = vpop.f32.mrb[0].mxu0
        %v1594 = vand.u32 %v247, 4294901760
        %v1595 = vsub.f32 %v247, %v1594
        %1596 = vmatprep.mubr.f32.mxu0 %v1595
        %v1597 = vand.u32 %v246, 4294901760
        %v1598 = vsub.f32 %v246, %v1597
        %1599 = vmatmul.mubr.f32.gmra.mrb[0].mxu0 %v1598
        %v1600 = vpop.f32.mrb[0].mxu0
        %v1601 = vadd.f32 %v1220, %v1600
        %v1602 = vpop.f32.mrb[0].mxu0
        %v1603 = vand.u32 %v249, 4294901760
        %v1604 = vsub.f32 %v249, %v1603
        %1605 = vmatprep.mubr.f32.mxu0 %v1604
        %v1606 = vand.u32 %v248, 4294901760
        %v1607 = vsub.f32 %v248, %v1606
        %1608 = vmatmul.mubr.f32.gmra.mrb[0].mxu0 %v1607
        %v1609 = vpop.f32.mrb[0].mxu0
        %v1610 = vadd.f32 %v1227, %v1609
        %v1611 = vpop.f32.mrb[0].mxu0
        %v1612 = vand.u32 %v251, 4294901760
        %v1613 = vsub.f32 %v251, %v1612
        %1614 = vmatprep.mubr.f32.mxu0 %v1613
        %v1615 = vand.u32 %v250, 4294901760
        %v1616 = vsub.f32 %v250, %v1615
        %1617 = vmatmul.mubr.f32.gmra.mrb[0].mxu0 %v1616
        %v1618 = vpop.f32.mrb[0].mxu0
        %v1619 = vadd.f32 %v1234, %v1618
        %v1620 = vpop.f32.mrb[0].mxu0
        %v1621 = vand.u32 %v253, 4294901760
        %v1622 = vsub.f32 %v253, %v1621
        %1623 = vmatprep.mubr.f32.mxu0 %v1622
        %v1624 = vand.u32 %v252, 4294901760
        %v1625 = vsub.f32 %v252, %v1624
        %1626 = vmatmul.mubr.f32.gmra.mrb[0].mxu0 %v1625
        %v1627 = vpop.f32.mrb[0].mxu0
        %v1628 = vadd.f32 %v1241, %v1627
        %v1629 = vpop.f32.mrb[0].mxu0
        %v1630 = vand.u32 %v255, 4294901760
        %v1631 = vsub.f32 %v255, %v1630
        %1632 = vmatprep.mubr.f32.mxu0 %v1631
        %v1633 = vand.u32 %v254, 4294901760
        %v1634 = vsub.f32 %v254, %v1633
        %1635 = vmatmul.mubr.f32.gmra.mrb[0].mxu0 %v1634
        %v1636 = vpop.f32.mrb[0].mxu0
        %v1637 = vadd.f32 %v1248, %v1636
        %v1638 = vpop.f32.mrb[0].mxu0
        %v1639 = vand.u32 %v257, 4294901760
        %v1640 = vsub.f32 %v257, %v1639
        %1641 = vmatprep.mubr.f32.mxu0 %v1640
        %v1642 = vand.u32 %v256, 4294901760
        %v1643 = vsub.f32 %v256, %v1642
        %1644 = vmatmul.mubr.f32.gmra.mrb[0].mxu0 %v1643
        %v1645 = vpop.f32.mrb[0].mxu0
        %v1646 = vadd.f32 %v1255, %v1645
        %v1647 = vpop.f32.mrb[0].mxu0
        %v1648 = vand.u32 %v259, 4294901760
        %v1649 = vsub.f32 %v259, %v1648
        %1650 = vmatprep.mubr.f32.mxu0 %v1649
        %v1651 = vand.u32 %v258, 4294901760
        %v1652 = vsub.f32 %v258, %v1651
        %1653 = vmatmul.mubr.f32.gmra.mrb[0].mxu0 %v1652
        %v1654 = vpop.f32.mrb[0].mxu0
        %v1655 = vadd.f32 %v1262, %v1654
        %v1656 = vpop.f32.mrb[0].mxu0
        %v1657 = vand.u32 %v261, 4294901760
        %v1658 = vsub.f32 %v261, %v1657
        %1659 = vmatprep.mubr.f32.mxu0 %v1658
        %v1660 = vand.u32 %v260, 4294901760
        %v1661 = vsub.f32 %v260, %v1660
        %1662 = vmatmul.mubr.f32.gmra.mrb[0].mxu0 %v1661
        %v1663 = vpop.f32.mrb[0].mxu0
        %v1664 = vadd.f32 %v1269, %v1663
        %v1665 = vpop.f32.mrb[0].mxu0
        %v1666 = vand.u32 %v263, 4294901760
        %v1667 = vsub.f32 %v263, %v1666
        %1668 = vmatprep.mubr.f32.mxu0 %v1667
        %v1669 = vand.u32 %v262, 4294901760
        %v1670 = vsub.f32 %v262, %v1669
        %1671 = vmatmul.mubr.f32.gmra.mrb[0].mxu0 %v1670
        %v1672 = vpop.f32.mrb[0].mxu0
        %v1673 = vadd.f32 %v1276, %v1672
        %v1674 = vpop.f32.mrb[0].mxu0
        %v1675 = vand.u32 %v265, 4294901760
        %v1676 = vsub.f32 %v265, %v1675
        %1677 = vmatprep.mubr.f32.mxu0 %v1676
        %v1678 = vand.u32 %v264, 4294901760
        %v1679 = vsub.f32 %v264, %v1678
        %1680 = vmatmul.mubr.f32.gmra.mrb[0].mxu0 %v1679
        %v1681 = vpop.f32.mrb[0].mxu0
        %v1682 = vadd.f32 %v1283, %v1681
        %v1683 = vpop.f32.mrb[0].mxu0
        %v1684 = vand.u32 %v267, 4294901760
        %v1685 = vsub.f32 %v267, %v1684
        %1686 = vmatprep.mubr.f32.mxu0 %v1685
        %v1687 = vand.u32 %v266, 4294901760
        %v1688 = vsub.f32 %v266, %v1687
        %1689 = vmatmul.mubr.f32.gmra.mrb[0].mxu0 %v1688
        %v1690 = vpop.f32.mrb[0].mxu0
        %v1691 = vadd.f32 %v1290, %v1690
        %v1692 = vpop.f32.mrb[0].mxu0
        %v1693 = vand.u32 %v269, 4294901760
        %v1694 = vsub.f32 %v269, %v1693
        %1695 = vmatprep.mubr.f32.mxu0 %v1694
        %v1696 = vand.u32 %v268, 4294901760
        %v1697 = vsub.f32 %v268, %v1696
        %1698 = vmatmul.mubr.f32.gmra.mrb[0].mxu0 %v1697
        %v1699 = vpop.f32.mrb[0].mxu0
        %v1700 = vadd.f32 %v1297, %v1699
        %v1701 = vpop.f32.mrb[0].mxu0
        %v1702 = vand.u32 %v271, 4294901760
        %v1703 = vsub.f32 %v271, %v1702
        %1704 = vmatprep.mubr.f32.mxu0 %v1703
        %v1705 = vand.u32 %v270, 4294901760
        %v1706 = vsub.f32 %v270, %v1705
        %1707 = vmatmul.mubr.f32.gmra.mrb[0].mxu0 %v1706
        %v1708 = vpop.f32.mrb[0].mxu0
        %v1709 = vadd.f32 %v1304, %v1708
        %v1710 = vpop.f32.mrb[0].mxu0
        %v1711 = vand.u32 %v273, 4294901760
        %v1712 = vsub.f32 %v273, %v1711
        %1713 = vmatprep.mubr.f32.mxu0 %v1712
        %v1714 = vand.u32 %v272, 4294901760
        %v1715 = vsub.f32 %v272, %v1714
        %1716 = vmatmul.mubr.f32.gmra.mrb[0].mxu0 %v1715
        %v1717 = vpop.f32.mrb[0].mxu0
        %v1718 = vadd.f32 %v1311, %v1717
        %v1719 = vpop.f32.mrb[0].mxu0
        %v1720 = vand.u32 %v275, 4294901760
        %v1721 = vsub.f32 %v275, %v1720
        %1722 = vmatprep.mubr.f32.mxu0 %v1721
        %v1723 = vand.u32 %v274, 4294901760
        %v1724 = vsub.f32 %v274, %v1723
        %1725 = vmatmul.mubr.f32.gmra.mrb[0].mxu0 %v1724
        %v1726 = vpop.f32.mrb[0].mxu0
        %v1727 = vadd.f32 %v1318, %v1726
        %v1728 = vpop.f32.mrb[0].mxu0
        %v1729 = vand.u32 %v277, 4294901760
        %v1730 = vsub.f32 %v277, %v1729
        %1731 = vmatprep.mubr.f32.mxu0 %v1730
        %v1732 = vand.u32 %v276, 4294901760
        %v1733 = vsub.f32 %v276, %v1732
        %1734 = vmatmul.mubr.f32.gmra.mrb[0].mxu0 %v1733
        %v1735 = vpop.f32.mrb[0].mxu0
        %v1736 = vadd.f32 %v1325, %v1735
        %v1737 = vpop.f32.mrb[0].mxu0
        %v1738 = vand.u32 %v279, 4294901760
        %v1739 = vsub.f32 %v279, %v1738
        %1740 = vmatprep.mubr.f32.mxu0 %v1739
        %v1741 = vand.u32 %v278, 4294901760
        %v1742 = vsub.f32 %v278, %v1741
        %1743 = vmatmul.mubr.f32.gmra.mrb[0].mxu0 %v1742
        %v1744 = vpop.f32.mrb[0].mxu0
        %v1745 = vadd.f32 %v1332, %v1744
        %v1746 = vpop.f32.mrb[0].mxu0
        %v1747 = vand.u32 %v281, 4294901760
        %v1748 = vsub.f32 %v281, %v1747
        %1749 = vmatprep.mubr.f32.mxu0 %v1748
        %v1750 = vand.u32 %v280, 4294901760
        %v1751 = vsub.f32 %v280, %v1750
        %1752 = vmatmul.mubr.f32.gmra.mrb[0].mxu0 %v1751
        %v1753 = vpop.f32.mrb[0].mxu0
        %v1754 = vadd.f32 %v1339, %v1753
        %v1755 = vpop.f32.mrb[0].mxu0
        %v1756 = vand.u32 %v283, 4294901760
        %v1757 = vsub.f32 %v283, %v1756
        %1758 = vmatprep.mubr.f32.mxu0 %v1757
        %v1759 = vand.u32 %v282, 4294901760
        %v1760 = vsub.f32 %v282, %v1759
        %1761 = vmatmul.mubr.f32.gmra.mrb[0].mxu0 %v1760
        %v1762 = vpop.f32.mrb[0].mxu0
        %v1763 = vadd.f32 %v1346, %v1762
        %v1764 = vpop.f32.mrb[0].mxu0
        %1765 = vdwg.mxu0
        %1766 = vmatprep.subr.mxu0 0.0
        %v1767 = vand.u32 %v284, 4294901760
        %1768 = vmatpush1.msra.mxu0 %v1767
        %1769 = vmatprep.subr.mxu0 0.0
        %v1770 = vand.u32 %v285, 4294901760
        %1771 = vmatpush1.msra.mxu0 %v1770
        %1772 = vmatprep.subr.mxu0 0.0
        %v1773 = vand.u32 %v286, 4294901760
        %1774 = vmatpush1.msra.mxu0 %v1773
        %1775 = vmatprep.subr.mxu0 0.0
        %v1776 = vand.u32 %v287, 4294901760
        %1777 = vmatpush1.msra.mxu0 %v1776
        %1778 = vmatprep.subr.mxu0 0.0
        %v1779 = vand.u32 %v288, 4294901760
        %1780 = vmatpush1.msra.mxu0 %v1779
        %1781 = vmatprep.subr.mxu0 0.0
        %v1782 = vand.u32 %v289, 4294901760
        %1783 = vmatpush1.msra.mxu0 %v1782
        %1784 = vmatprep.subr.mxu0 0.0
        %v1785 = vand.u32 %v290, 4294901760
        %1786 = vmatpush1.msra.mxu0 %v1785
        %1787 = vmatprep.subr.mxu0 0.0
        %v1788 = vand.u32 %v291, 4294901760
        %1789 = vmatpush1.msra.mxu0 %v1788
        %1790 = vmatprep.subr.mxu0 0.0
        %v1791 = vand.u32 %v292, 4294901760
        %1792 = vmatpush1.msra.mxu0 %v1791
        %1793 = vmatprep.subr.mxu0 0.0
        %v1794 = vand.u32 %v293, 4294901760
        %1795 = vmatpush1.msra.mxu0 %v1794
        %1796 = vmatprep.subr.mxu0 0.0
        %v1797 = vand.u32 %v294, 4294901760
        %1798 = vmatpush1.msra.mxu0 %v1797
        %1799 = vmatprep.subr.mxu0 0.0
        %v1800 = vand.u32 %v295, 4294901760
        %1801 = vmatpush1.msra.mxu0 %v1800
        %1802 = vmatprep.subr.mxu0 0.0
        %v1803 = vand.u32 %v296, 4294901760
        %1804 = vmatpush1.msra.mxu0 %v1803
        %1805 = vmatprep.subr.mxu0 0.0
        %v1806 = vand.u32 %v297, 4294901760
        %1807 = vmatpush1.msra.mxu0 %v1806
        %1808 = vmatprep.subr.mxu0 0.0
        %v1809 = vand.u32 %v298, 4294901760
        %1810 = vmatpush1.msra.mxu0 %v1809
        %1811 = vmatprep.subr.mxu0 0.0
        %v1812 = vand.u32 %v299, 4294901760
        %1813 = vmatpush1.msra.mxu0 %v1812
        %1814 = vmatprep.subr.mxu0 0.0
        %v1815 = vand.u32 %v300, 4294901760
        %1816 = vmatpush1.msra.mxu0 %v1815
        %1817 = vmatprep.subr.mxu0 0.0
        %v1818 = vand.u32 %v301, 4294901760
        %1819 = vmatpush1.msra.mxu0 %v1818
        %1820 = vmatprep.subr.mxu0 0.0
        %v1821 = vand.u32 %v302, 4294901760
        %1822 = vmatpush1.msra.mxu0 %v1821
        %1823 = vmatprep.subr.mxu0 0.0
        %v1824 = vand.u32 %v303, 4294901760
        %1825 = vmatpush1.msra.mxu0 %v1824
        %1826 = vmatprep.subr.mxu0 0.0
        %v1827 = vand.u32 %v304, 4294901760
        %1828 = vmatpush1.msra.mxu0 %v1827
        %1829 = vmatprep.subr.mxu0 0.0
        %v1830 = vand.u32 %v305, 4294901760
        %1831 = vmatpush1.msra.mxu0 %v1830
        %1832 = vmatprep.subr.mxu0 0.0
        %v1833 = vand.u32 %v306, 4294901760
        %1834 = vmatpush1.msra.mxu0 %v1833
        %1835 = vmatprep.subr.mxu0 0.0
        %v1836 = vand.u32 %v307, 4294901760
        %1837 = vmatpush1.msra.mxu0 %v1836
        %1838 = vmatprep.subr.mxu0 0.0
        %v1839 = vand.u32 %v308, 4294901760
        %1840 = vmatpush1.msra.mxu0 %v1839
        %1841 = vmatprep.subr.mxu0 0.0
        %v1842 = vand.u32 %v309, 4294901760
        %1843 = vmatpush1.msra.mxu0 %v1842
        %1844 = vmatprep.subr.mxu0 0.0
        %v1845 = vand.u32 %v310, 4294901760
        %1846 = vmatpush1.msra.mxu0 %v1845
        %1847 = vmatprep.subr.mxu0 0.0
        %v1848 = vand.u32 %v311, 4294901760
        %1849 = vmatpush1.msra.mxu0 %v1848
        %1850 = vmatprep.subr.mxu0 0.0
        %v1851 = vand.u32 %v312, 4294901760
        %1852 = vmatpush1.msra.mxu0 %v1851
        %1853 = vmatprep.subr.mxu0 0.0
        %v1854 = vand.u32 %v313, 4294901760
        %1855 = vmatpush1.msra.mxu0 %v1854
        %1856 = vmatprep.subr.mxu0 0.0
        %v1857 = vand.u32 %v314, 4294901760
        %1858 = vmatpush1.msra.mxu0 %v1857
        %1859 = vmatprep.subr.mxu0 0.0
        %v1860 = vand.u32 %v315, 4294901760
        %1861 = vmatpush1.msra.mxu0 %v1860
        %v1862 = vand.u32 %v221, 4294901760
        %v1863 = vsub.f32 %v221, %v1862
        %v1864 = vand.u32 %v1863, 4294901760
        %1865 = vmatprep.mubr.f32.mxu0 %v1864
        %v1866 = vand.u32 %v220, 4294901760
        %v1867 = vsub.f32 %v220, %v1866
        %v1868 = vand.u32 %v1867, 4294901760
        %1869 = vmatmul.mubr.f32.gmra.mrb[0].mxu0 %v1868
        %v1870 = vpop.f32.mrb[0].mxu0
        %v1871 = vadd.f32 %v1484, %v1870
        %v1872 = vpop.f32.mrb[0].mxu0
        %v1873 = vand.u32 %v223, 4294901760
        %v1874 = vsub.f32 %v223, %v1873
        %v1875 = vand.u32 %v1874, 4294901760
        %1876 = vmatprep.mubr.f32.mxu0 %v1875
        %v1877 = vand.u32 %v222, 4294901760
        %v1878 = vsub.f32 %v222, %v1877
        %v1879 = vand.u32 %v1878, 4294901760
        %1880 = vmatmul.mubr.f32.gmra.mrb[0].mxu0 %v1879
        %v1881 = vpop.f32.mrb[0].mxu0
        %v1882 = vadd.f32 %v1493, %v1881
        %v1883 = vpop.f32.mrb[0].mxu0
        %v1884 = vand.u32 %v225, 4294901760
        %v1885 = vsub.f32 %v225, %v1884
        %v1886 = vand.u32 %v1885, 4294901760
        %1887 = vmatprep.mubr.f32.mxu0 %v1886
        %v1888 = vand.u32 %v224, 4294901760
        %v1889 = vsub.f32 %v224, %v1888
        %v1890 = vand.u32 %v1889, 4294901760
        %1891 = vmatmul.mubr.f32.gmra.mrb[0].mxu0 %v1890
        %v1892 = vpop.f32.mrb[0].mxu0
        %v1893 = vadd.f32 %v1502, %v1892
        %v1894 = vpop.f32.mrb[0].mxu0
        %v1895 = vand.u32 %v227, 4294901760
        %v1896 = vsub.f32 %v227, %v1895
        %v1897 = vand.u32 %v1896, 4294901760
        %1898 = vmatprep.mubr.f32.mxu0 %v1897
        %v1899 = vand.u32 %v226, 4294901760
        %v1900 = vsub.f32 %v226, %v1899
        %v1901 = vand.u32 %v1900, 4294901760
        %1902 = vmatmul.mubr.f32.gmra.mrb[0].mxu0 %v1901
        %v1903 = vpop.f32.mrb[0].mxu0
        %v1904 = vadd.f32 %v1511, %v1903
        %v1905 = vpop.f32.mrb[0].mxu0
        %v1906 = vand.u32 %v229, 4294901760
        %v1907 = vsub.f32 %v229, %v1906
        %v1908 = vand.u32 %v1907, 4294901760
        %1909 = vmatprep.mubr.f32.mxu0 %v1908
        %v1910 = vand.u32 %v228, 4294901760
        %v1911 = vsub.f32 %v228, %v1910
        %v1912 = vand.u32 %v1911, 4294901760
        %1913 = vmatmul.mubr.f32.gmra.mrb[0].mxu0 %v1912
        %v1914 = vpop.f32.mrb[0].mxu0
        %v1915 = vadd.f32 %v1520, %v1914
        %v1916 = vpop.f32.mrb[0].mxu0
        %v1917 = vand.u32 %v231, 4294901760
        %v1918 = vsub.f32 %v231, %v1917
        %v1919 = vand.u32 %v1918, 4294901760
        %1920 = vmatprep.mubr.f32.mxu0 %v1919
        %v1921 = vand.u32 %v230, 4294901760
        %v1922 = vsub.f32 %v230, %v1921
        %v1923 = vand.u32 %v1922, 4294901760
        %1924 = vmatmul.mubr.f32.gmra.mrb[0].mxu0 %v1923
        %v1925 = vpop.f32.mrb[0].mxu0
        %v1926 = vadd.f32 %v1529, %v1925
        %v1927 = vpop.f32.mrb[0].mxu0
        %v1928 = vand.u32 %v233, 4294901760
        %v1929 = vsub.f32 %v233, %v1928
        %v1930 = vand.u32 %v1929, 4294901760
        %1931 = vmatprep.mubr.f32.mxu0 %v1930
        %v1932 = vand.u32 %v232, 4294901760
        %v1933 = vsub.f32 %v232, %v1932
        %v1934 = vand.u32 %v1933, 4294901760
        %1935 = vmatmul.mubr.f32.gmra.mrb[0].mxu0 %v1934
        %v1936 = vpop.f32.mrb[0].mxu0
        %v1937 = vadd.f32 %v1538, %v1936
        %v1938 = vpop.f32.mrb[0].mxu0
        %v1939 = vand.u32 %v235, 4294901760
        %v1940 = vsub.f32 %v235, %v1939
        %v1941 = vand.u32 %v1940, 4294901760
        %1942 = vmatprep.mubr.f32.mxu0 %v1941
        %v1943 = vand.u32 %v234, 4294901760
        %v1944 = vsub.f32 %v234, %v1943
        %v1945 = vand.u32 %v1944, 4294901760
        %1946 = vmatmul.mubr.f32.gmra.mrb[0].mxu0 %v1945
        %v1947 = vpop.f32.mrb[0].mxu0
        %v1948 = vadd.f32 %v1547, %v1947
        %v1949 = vpop.f32.mrb[0].mxu0
        %v1950 = vand.u32 %v237, 4294901760
        %v1951 = vsub.f32 %v237, %v1950
        %v1952 = vand.u32 %v1951, 4294901760
        %1953 = vmatprep.mubr.f32.mxu0 %v1952
        %v1954 = vand.u32 %v236, 4294901760
        %v1955 = vsub.f32 %v236, %v1954
        %v1956 = vand.u32 %v1955, 4294901760
        %1957 = vmatmul.mubr.f32.gmra.mrb[0].mxu0 %v1956
        %v1958 = vpop.f32.mrb[0].mxu0
        %v1959 = vadd.f32 %v1556, %v1958
        %v1960 = vpop.f32.mrb[0].mxu0
        %v1961 = vand.u32 %v239, 4294901760
        %v1962 = vsub.f32 %v239, %v1961
        %v1963 = vand.u32 %v1962, 4294901760
        %1964 = vmatprep.mubr.f32.mxu0 %v1963
        %v1965 = vand.u32 %v238, 4294901760
        %v1966 = vsub.f32 %v238, %v1965
        %v1967 = vand.u32 %v1966, 4294901760
        %1968 = vmatmul.mubr.f32.gmra.mrb[0].mxu0 %v1967
        %v1969 = vpop.f32.mrb[0].mxu0
        %v1970 = vadd.f32 %v1565, %v1969
        %v1971 = vpop.f32.mrb[0].mxu0
        %v1972 = vand.u32 %v241, 4294901760
        %v1973 = vsub.f32 %v241, %v1972
        %v1974 = vand.u32 %v1973, 4294901760
        %1975 = vmatprep.mubr.f32.mxu0 %v1974
        %v1976 = vand.u32 %v240, 4294901760
        %v1977 = vsub.f32 %v240, %v1976
        %v1978 = vand.u32 %v1977, 4294901760
        %1979 = vmatmul.mubr.f32.gmra.mrb[0].mxu0 %v1978
        %v1980 = vpop.f32.mrb[0].mxu0
        %v1981 = vadd.f32 %v1574, %v1980
        %v1982 = vpop.f32.mrb[0].mxu0
        %v1983 = vand.u32 %v243, 4294901760
        %v1984 = vsub.f32 %v243, %v1983
        %v1985 = vand.u32 %v1984, 4294901760
        %1986 = vmatprep.mubr.f32.mxu0 %v1985
        %v1987 = vand.u32 %v242, 4294901760
        %v1988 = vsub.f32 %v242, %v1987
        %v1989 = vand.u32 %v1988, 4294901760
        %1990 = vmatmul.mubr.f32.gmra.mrb[0].mxu0 %v1989
        %v1991 = vpop.f32.mrb[0].mxu0
        %v1992 = vadd.f32 %v1583, %v1991
        %v1993 = vpop.f32.mrb[0].mxu0
        %v1994 = vand.u32 %v245, 4294901760
        %v1995 = vsub.f32 %v245, %v1994
        %v1996 = vand.u32 %v1995, 4294901760
        %1997 = vmatprep.mubr.f32.mxu0 %v1996
        %v1998 = vand.u32 %v244, 4294901760
        %v1999 = vsub.f32 %v244, %v1998
        %v2000 = vand.u32 %v1999, 4294901760
        %2001 = vmatmul.mubr.f32.gmra.mrb[0].mxu0 %v2000
        %v2002 = vpop.f32.mrb[0].mxu0
        %v2003 = vadd.f32 %v1592, %v2002
        %v2004 = vpop.f32.mrb[0].mxu0
        %v2005 = vand.u32 %v247, 4294901760
        %v2006 = vsub.f32 %v247, %v2005
        %v2007 = vand.u32 %v2006, 4294901760
        %2008 = vmatprep.mubr.f32.mxu0 %v2007
        %v2009 = vand.u32 %v246, 4294901760
        %v2010 = vsub.f32 %v246, %v2009
        %v2011 = vand.u32 %v2010, 4294901760
        %2012 = vmatmul.mubr.f32.gmra.mrb[0].mxu0 %v2011
        %v2013 = vpop.f32.mrb[0].mxu0
        %v2014 = vadd.f32 %v1601, %v2013
        %v2015 = vpop.f32.mrb[0].mxu0
        %v2016 = vand.u32 %v249, 4294901760
        %v2017 = vsub.f32 %v249, %v2016
        %v2018 = vand.u32 %v2017, 4294901760
        %2019 = vmatprep.mubr.f32.mxu0 %v2018
        %v2020 = vand.u32 %v248, 4294901760
        %v2021 = vsub.f32 %v248, %v2020
        %v2022 = vand.u32 %v2021, 4294901760
        %2023 = vmatmul.mubr.f32.gmra.mrb[0].mxu0 %v2022
        %v2024 = vpop.f32.mrb[0].mxu0
        %v2025 = vadd.f32 %v1610, %v2024
        %v2026 = vpop.f32.mrb[0].mxu0
        %v2027 = vand.u32 %v251, 4294901760
        %v2028 = vsub.f32 %v251, %v2027
        %v2029 = vand.u32 %v2028, 4294901760
        %2030 = vmatprep.mubr.f32.mxu0 %v2029
        %v2031 = vand.u32 %v250, 4294901760
        %v2032 = vsub.f32 %v250, %v2031
        %v2033 = vand.u32 %v2032, 4294901760
        %2034 = vmatmul.mubr.f32.gmra.mrb[0].mxu0 %v2033
        %v2035 = vpop.f32.mrb[0].mxu0
        %v2036 = vadd.f32 %v1619, %v2035
        %v2037 = vpop.f32.mrb[0].mxu0
        %v2038 = vand.u32 %v253, 4294901760
        %v2039 = vsub.f32 %v253, %v2038
        %v2040 = vand.u32 %v2039, 4294901760
        %2041 = vmatprep.mubr.f32.mxu0 %v2040
        %v2042 = vand.u32 %v252, 4294901760
        %v2043 = vsub.f32 %v252, %v2042
        %v2044 = vand.u32 %v2043, 4294901760
        %2045 = vmatmul.mubr.f32.gmra.mrb[0].mxu0 %v2044
        %v2046 = vpop.f32.mrb[0].mxu0
        %v2047 = vadd.f32 %v1628, %v2046
        %v2048 = vpop.f32.mrb[0].mxu0
        %v2049 = vand.u32 %v255, 4294901760
        %v2050 = vsub.f32 %v255, %v2049
        %v2051 = vand.u32 %v2050, 4294901760
        %2052 = vmatprep.mubr.f32.mxu0 %v2051
        %v2053 = vand.u32 %v254, 4294901760
        %v2054 = vsub.f32 %v254, %v2053
        %v2055 = vand.u32 %v2054, 4294901760
        %2056 = vmatmul.mubr.f32.gmra.mrb[0].mxu0 %v2055
        %v2057 = vpop.f32.mrb[0].mxu0
        %v2058 = vadd.f32 %v1637, %v2057
        %v2059 = vpop.f32.mrb[0].mxu0
        %v2060 = vand.u32 %v257, 4294901760
        %v2061 = vsub.f32 %v257, %v2060
        %v2062 = vand.u32 %v2061, 4294901760
        %2063 = vmatprep.mubr.f32.mxu0 %v2062
        %v2064 = vand.u32 %v256, 4294901760
        %v2065 = vsub.f32 %v256, %v2064
        %v2066 = vand.u32 %v2065, 4294901760
        %2067 = vmatmul.mubr.f32.gmra.mrb[0].mxu0 %v2066
        %v2068 = vpop.f32.mrb[0].mxu0
        %v2069 = vadd.f32 %v1646, %v2068
        %v2070 = vpop.f32.mrb[0].mxu0
        %v2071 = vand.u32 %v259, 4294901760
        %v2072 = vsub.f32 %v259, %v2071
        %v2073 = vand.u32 %v2072, 4294901760
        %2074 = vmatprep.mubr.f32.mxu0 %v2073
        %v2075 = vand.u32 %v258, 4294901760
        %v2076 = vsub.f32 %v258, %v2075
        %v2077 = vand.u32 %v2076, 4294901760
        %2078 = vmatmul.mubr.f32.gmra.mrb[0].mxu0 %v2077
        %v2079 = vpop.f32.mrb[0].mxu0
        %v2080 = vadd.f32 %v1655, %v2079
        %v2081 = vpop.f32.mrb[0].mxu0
        %v2082 = vand.u32 %v261, 4294901760
        %v2083 = vsub.f32 %v261, %v2082
        %v2084 = vand.u32 %v2083, 4294901760
        %2085 = vmatprep.mubr.f32.mxu0 %v2084
        %v2086 = vand.u32 %v260, 4294901760
        %v2087 = vsub.f32 %v260, %v2086
        %v2088 = vand.u32 %v2087, 4294901760
        %2089 = vmatmul.mubr.f32.gmra.mrb[0].mxu0 %v2088
        %v2090 = vpop.f32.mrb[0].mxu0
        %v2091 = vadd.f32 %v1664, %v2090
        %v2092 = vpop.f32.mrb[0].mxu0
        %v2093 = vand.u32 %v263, 4294901760
        %v2094 = vsub.f32 %v263, %v2093
        %v2095 = vand.u32 %v2094, 4294901760
        %2096 = vmatprep.mubr.f32.mxu0 %v2095
        %v2097 = vand.u32 %v262, 4294901760
        %v2098 = vsub.f32 %v262, %v2097
        %v2099 = vand.u32 %v2098, 4294901760
        %2100 = vmatmul.mubr.f32.gmra.mrb[0].mxu0 %v2099
        %v2101 = vpop.f32.mrb[0].mxu0
        %v2102 = vadd.f32 %v1673, %v2101
        %v2103 = vpop.f32.mrb[0].mxu0
        %v2104 = vand.u32 %v265, 4294901760
        %v2105 = vsub.f32 %v265, %v2104
        %v2106 = vand.u32 %v2105, 4294901760
        %2107 = vmatprep.mubr.f32.mxu0 %v2106
        %v2108 = vand.u32 %v264, 4294901760
        %v2109 = vsub.f32 %v264, %v2108
        %v2110 = vand.u32 %v2109, 4294901760
        %2111 = vmatmul.mubr.f32.gmra.mrb[0].mxu0 %v2110
        %v2112 = vpop.f32.mrb[0].mxu0
        %v2113 = vadd.f32 %v1682, %v2112
        %v2114 = vpop.f32.mrb[0].mxu0
        %v2115 = vand.u32 %v267, 4294901760
        %v2116 = vsub.f32 %v267, %v2115
        %v2117 = vand.u32 %v2116, 4294901760
        %2118 = vmatprep.mubr.f32.mxu0 %v2117
        %v2119 = vand.u32 %v266, 4294901760
        %v2120 = vsub.f32 %v266, %v2119
        %v2121 = vand.u32 %v2120, 4294901760
        %2122 = vmatmul.mubr.f32.gmra.mrb[0].mxu0 %v2121
        %v2123 = vpop.f32.mrb[0].mxu0
        %v2124 = vadd.f32 %v1691, %v2123
        %v2125 = vpop.f32.mrb[0].mxu0
        %v2126 = vand.u32 %v269, 4294901760
        %v2127 = vsub.f32 %v269, %v2126
        %v2128 = vand.u32 %v2127, 4294901760
        %2129 = vmatprep.mubr.f32.mxu0 %v2128
        %v2130 = vand.u32 %v268, 4294901760
        %v2131 = vsub.f32 %v268, %v2130
        %v2132 = vand.u32 %v2131, 4294901760
        %2133 = vmatmul.mubr.f32.gmra.mrb[0].mxu0 %v2132
        %v2134 = vpop.f32.mrb[0].mxu0
        %v2135 = vadd.f32 %v1700, %v2134
        %v2136 = vpop.f32.mrb[0].mxu0
        %v2137 = vand.u32 %v271, 4294901760
        %v2138 = vsub.f32 %v271, %v2137
        %v2139 = vand.u32 %v2138, 4294901760
        %2140 = vmatprep.mubr.f32.mxu0 %v2139
        %v2141 = vand.u32 %v270, 4294901760
        %v2142 = vsub.f32 %v270, %v2141
        %v2143 = vand.u32 %v2142, 4294901760
        %2144 = vmatmul.mubr.f32.gmra.mrb[0].mxu0 %v2143
        %v2145 = vpop.f32.mrb[0].mxu0
        %v2146 = vadd.f32 %v1709, %v2145
        %v2147 = vpop.f32.mrb[0].mxu0
        %v2148 = vand.u32 %v273, 4294901760
        %v2149 = vsub.f32 %v273, %v2148
        %v2150 = vand.u32 %v2149, 4294901760
        %2151 = vmatprep.mubr.f32.mxu0 %v2150
        %v2152 = vand.u32 %v272, 4294901760
        %v2153 = vsub.f32 %v272, %v2152
        %v2154 = vand.u32 %v2153, 4294901760
        %2155 = vmatmul.mubr.f32.gmra.mrb[0].mxu0 %v2154
        %v2156 = vpop.f32.mrb[0].mxu0
        %v2157 = vadd.f32 %v1718, %v2156
        %v2158 = vpop.f32.mrb[0].mxu0
        %v2159 = vand.u32 %v275, 4294901760
        %v2160 = vsub.f32 %v275, %v2159
        %v2161 = vand.u32 %v2160, 4294901760
        %2162 = vmatprep.mubr.f32.mxu0 %v2161
        %v2163 = vand.u32 %v274, 4294901760
        %v2164 = vsub.f32 %v274, %v2163
        %v2165 = vand.u32 %v2164, 4294901760
        %2166 = vmatmul.mubr.f32.gmra.mrb[0].mxu0 %v2165
        %v2167 = vpop.f32.mrb[0].mxu0
        %v2168 = vadd.f32 %v1727, %v2167
        %v2169 = vpop.f32.mrb[0].mxu0
        %v2170 = vand.u32 %v277, 4294901760
        %v2171 = vsub.f32 %v277, %v2170
        %v2172 = vand.u32 %v2171, 4294901760
        %2173 = vmatprep.mubr.f32.mxu0 %v2172
        %v2174 = vand.u32 %v276, 4294901760
        %v2175 = vsub.f32 %v276, %v2174
        %v2176 = vand.u32 %v2175, 4294901760
        %2177 = vmatmul.mubr.f32.gmra.mrb[0].mxu0 %v2176
        %v2178 = vpop.f32.mrb[0].mxu0
        %v2179 = vadd.f32 %v1736, %v2178
        %v2180 = vpop.f32.mrb[0].mxu0
        %v2181 = vand.u32 %v279, 4294901760
        %v2182 = vsub.f32 %v279, %v2181
        %v2183 = vand.u32 %v2182, 4294901760
        %2184 = vmatprep.mubr.f32.mxu0 %v2183
        %v2185 = vand.u32 %v278, 4294901760
        %v2186 = vsub.f32 %v278, %v2185
        %v2187 = vand.u32 %v2186, 4294901760
        %2188 = vmatmul.mubr.f32.gmra.mrb[0].mxu0 %v2187
        %v2189 = vpop.f32.mrb[0].mxu0
        %v2190 = vadd.f32 %v1745, %v2189
        %v2191 = vpop.f32.mrb[0].mxu0
        %v2192 = vand.u32 %v281, 4294901760
        %v2193 = vsub.f32 %v281, %v2192
        %v2194 = vand.u32 %v2193, 4294901760
        %2195 = vmatprep.mubr.f32.mxu0 %v2194
        %v2196 = vand.u32 %v280, 4294901760
        %v2197 = vsub.f32 %v280, %v2196
        %v2198 = vand.u32 %v2197, 4294901760
        %2199 = vmatmul.mubr.f32.gmra.mrb[0].mxu0 %v2198
        %v2200 = vpop.f32.mrb[0].mxu0
        %v2201 = vadd.f32 %v1754, %v2200
        %v2202 = vpop.f32.mrb[0].mxu0
        %v2203 = vand.u32 %v283, 4294901760
        %v2204 = vsub.f32 %v283, %v2203
        %v2205 = vand.u32 %v2204, 4294901760
        %2206 = vmatprep.mubr.f32.mxu0 %v2205
        %v2207 = vand.u32 %v282, 4294901760
        %v2208 = vsub.f32 %v282, %v2207
        %v2209 = vand.u32 %v2208, 4294901760
        %2210 = vmatmul.mubr.f32.gmra.mrb[0].mxu0 %v2209
        %v2211 = vpop.f32.mrb[0].mxu0
        %v2212 = vadd.f32 %v1763, %v2211
        %v2213 = vpop.f32.mrb[0].mxu0
        %2214 = vdwg.mxu0
        %2215 = vmatprep.subr.mxu0 0.0
        %v2216 = vand.u32 %v284, 4294901760
        %v2217 = vsub.f32 %v284, %v2216
        %v2218 = vand.u32 %v2217, 4294901760
        %2219 = vmatpush1.msra.mxu0 %v2218
        %2220 = vmatprep.subr.mxu0 0.0
        %v2221 = vand.u32 %v285, 4294901760
        %v2222 = vsub.f32 %v285, %v2221
        %v2223 = vand.u32 %v2222, 4294901760
        %2224 = vmatpush1.msra.mxu0 %v2223
        %2225 = vmatprep.subr.mxu0 0.0
        %v2226 = vand.u32 %v286, 4294901760
        %v2227 = vsub.f32 %v286, %v2226
        %v2228 = vand.u32 %v2227, 4294901760
        %2229 = vmatpush1.msra.mxu0 %v2228
        %2230 = vmatprep.subr.mxu0 0.0
        %v2231 = vand.u32 %v287, 4294901760
        %v2232 = vsub.f32 %v287, %v2231
        %v2233 = vand.u32 %v2232, 4294901760
        %2234 = vmatpush1.msra.mxu0 %v2233
        %2235 = vmatprep.subr.mxu0 0.0
        %v2236 = vand.u32 %v288, 4294901760
        %v2237 = vsub.f32 %v288, %v2236
        %v2238 = vand.u32 %v2237, 4294901760
        %2239 = vmatpush1.msra.mxu0 %v2238
        %2240 = vmatprep.subr.mxu0 0.0
        %v2241 = vand.u32 %v289, 4294901760
        %v2242 = vsub.f32 %v289, %v2241
        %v2243 = vand.u32 %v2242, 4294901760
        %2244 = vmatpush1.msra.mxu0 %v2243
        %2245 = vmatprep.subr.mxu0 0.0
        %v2246 = vand.u32 %v290, 4294901760
        %v2247 = vsub.f32 %v290, %v2246
        %v2248 = vand.u32 %v2247, 4294901760
        %2249 = vmatpush1.msra.mxu0 %v2248
        %2250 = vmatprep.subr.mxu0 0.0
        %v2251 = vand.u32 %v291, 4294901760
        %v2252 = vsub.f32 %v291, %v2251
        %v2253 = vand.u32 %v2252, 4294901760
        %2254 = vmatpush1.msra.mxu0 %v2253
        %2255 = vmatprep.subr.mxu0 0.0
        %v2256 = vand.u32 %v292, 4294901760
        %v2257 = vsub.f32 %v292, %v2256
        %v2258 = vand.u32 %v2257, 4294901760
        %2259 = vmatpush1.msra.mxu0 %v2258
        %2260 = vmatprep.subr.mxu0 0.0
        %v2261 = vand.u32 %v293, 4294901760
        %v2262 = vsub.f32 %v293, %v2261
        %v2263 = vand.u32 %v2262, 4294901760
        %2264 = vmatpush1.msra.mxu0 %v2263
        %2265 = vmatprep.subr.mxu0 0.0
        %v2266 = vand.u32 %v294, 4294901760
        %v2267 = vsub.f32 %v294, %v2266
        %v2268 = vand.u32 %v2267, 4294901760
        %2269 = vmatpush1.msra.mxu0 %v2268
        %2270 = vmatprep.subr.mxu0 0.0
        %v2271 = vand.u32 %v295, 4294901760
        %v2272 = vsub.f32 %v295, %v2271
        %v2273 = vand.u32 %v2272, 4294901760
        %2274 = vmatpush1.msra.mxu0 %v2273
        %2275 = vmatprep.subr.mxu0 0.0
        %v2276 = vand.u32 %v296, 4294901760
        %v2277 = vsub.f32 %v296, %v2276
        %v2278 = vand.u32 %v2277, 4294901760
        %2279 = vmatpush1.msra.mxu0 %v2278
        %2280 = vmatprep.subr.mxu0 0.0
        %v2281 = vand.u32 %v297, 4294901760
        %v2282 = vsub.f32 %v297, %v2281
        %v2283 = vand.u32 %v2282, 4294901760
        %2284 = vmatpush1.msra.mxu0 %v2283
        %2285 = vmatprep.subr.mxu0 0.0
        %v2286 = vand.u32 %v298, 4294901760
        %v2287 = vsub.f32 %v298, %v2286
        %v2288 = vand.u32 %v2287, 4294901760
        %2289 = vmatpush1.msra.mxu0 %v2288
        %2290 = vmatprep.subr.mxu0 0.0
        %v2291 = vand.u32 %v299, 4294901760
        %v2292 = vsub.f32 %v299, %v2291
        %v2293 = vand.u32 %v2292, 4294901760
        %2294 = vmatpush1.msra.mxu0 %v2293
        %2295 = vmatprep.subr.mxu0 0.0
        %v2296 = vand.u32 %v300, 4294901760
        %v2297 = vsub.f32 %v300, %v2296
        %v2298 = vand.u32 %v2297, 4294901760
        %2299 = vmatpush1.msra.mxu0 %v2298
        %2300 = vmatprep.subr.mxu0 0.0
        %v2301 = vand.u32 %v301, 4294901760
        %v2302 = vsub.f32 %v301, %v2301
        %v2303 = vand.u32 %v2302, 4294901760
        %2304 = vmatpush1.msra.mxu0 %v2303
        %2305 = vmatprep.subr.mxu0 0.0
        %v2306 = vand.u32 %v302, 4294901760
        %v2307 = vsub.f32 %v302, %v2306
        %v2308 = vand.u32 %v2307, 4294901760
        %2309 = vmatpush1.msra.mxu0 %v2308
        %2310 = vmatprep.subr.mxu0 0.0
        %v2311 = vand.u32 %v303, 4294901760
        %v2312 = vsub.f32 %v303, %v2311
        %v2313 = vand.u32 %v2312, 4294901760
        %2314 = vmatpush1.msra.mxu0 %v2313
        %2315 = vmatprep.subr.mxu0 0.0
        %v2316 = vand.u32 %v304, 4294901760
        %v2317 = vsub.f32 %v304, %v2316
        %v2318 = vand.u32 %v2317, 4294901760
        %2319 = vmatpush1.msra.mxu0 %v2318
        %2320 = vmatprep.subr.mxu0 0.0
        %v2321 = vand.u32 %v305, 4294901760
        %v2322 = vsub.f32 %v305, %v2321
        %v2323 = vand.u32 %v2322, 4294901760
        %2324 = vmatpush1.msra.mxu0 %v2323
        %2325 = vmatprep.subr.mxu0 0.0
        %v2326 = vand.u32 %v306, 4294901760
        %v2327 = vsub.f32 %v306, %v2326
        %v2328 = vand.u32 %v2327, 4294901760
        %2329 = vmatpush1.msra.mxu0 %v2328
        %2330 = vmatprep.subr.mxu0 0.0
        %v2331 = vand.u32 %v307, 4294901760
        %v2332 = vsub.f32 %v307, %v2331
        %v2333 = vand.u32 %v2332, 4294901760
        %2334 = vmatpush1.msra.mxu0 %v2333
        %2335 = vmatprep.subr.mxu0 0.0
        %v2336 = vand.u32 %v308, 4294901760
        %v2337 = vsub.f32 %v308, %v2336
        %v2338 = vand.u32 %v2337, 4294901760
        %2339 = vmatpush1.msra.mxu0 %v2338
        %2340 = vmatprep.subr.mxu0 0.0
        %v2341 = vand.u32 %v309, 4294901760
        %v2342 = vsub.f32 %v309, %v2341
        %v2343 = vand.u32 %v2342, 4294901760
        %2344 = vmatpush1.msra.mxu0 %v2343
        %2345 = vmatprep.subr.mxu0 0.0
        %v2346 = vand.u32 %v310, 4294901760
        %v2347 = vsub.f32 %v310, %v2346
        %v2348 = vand.u32 %v2347, 4294901760
        %2349 = vmatpush1.msra.mxu0 %v2348
        %2350 = vmatprep.subr.mxu0 0.0
        %v2351 = vand.u32 %v311, 4294901760
        %v2352 = vsub.f32 %v311, %v2351
        %v2353 = vand.u32 %v2352, 4294901760
        %2354 = vmatpush1.msra.mxu0 %v2353
        %2355 = vmatprep.subr.mxu0 0.0
        %v2356 = vand.u32 %v312, 4294901760
        %v2357 = vsub.f32 %v312, %v2356
        %v2358 = vand.u32 %v2357, 4294901760
        %2359 = vmatpush1.msra.mxu0 %v2358
        %2360 = vmatprep.subr.mxu0 0.0
        %v2361 = vand.u32 %v313, 4294901760
        %v2362 = vsub.f32 %v313, %v2361
        %v2363 = vand.u32 %v2362, 4294901760
        %2364 = vmatpush1.msra.mxu0 %v2363
        %2365 = vmatprep.subr.mxu0 0.0
        %v2366 = vand.u32 %v314, 4294901760
        %v2367 = vsub.f32 %v314, %v2366
        %v2368 = vand.u32 %v2367, 4294901760
        %2369 = vmatpush1.msra.mxu0 %v2368
        %2370 = vmatprep.subr.mxu0 0.0
        %v2371 = vand.u32 %v315, 4294901760
        %v2372 = vsub.f32 %v315, %v2371
        %v2373 = vand.u32 %v2372, 4294901760
        %2374 = vmatpush1.msra.mxu0 %v2373
        %v2375 = vand.u32 %v221, 4294901760
        %2376 = vmatprep.mubr.f32.mxu0 %v2375
        %v2377 = vand.u32 %v220, 4294901760
        %2378 = vmatmul.mubr.f32.gmra.mrb[0].mxu0 %v2377
        %v2379 = vpop.f32.mrb[0].mxu0
        %v2380 = vadd.f32 %v1871, %v2379
        %v2381 = vpop.f32.mrb[0].mxu0
        %v2382 = vand.u32 %v223, 4294901760
        %2383 = vmatprep.mubr.f32.mxu0 %v2382
        %v2384 = vand.u32 %v222, 4294901760
        %2385 = vmatmul.mubr.f32.gmra.mrb[0].mxu0 %v2384
        %v2386 = vpop.f32.mrb[0].mxu0
        %v2387 = vadd.f32 %v1882, %v2386
        %v2388 = vpop.f32.mrb[0].mxu0
        %v2389 = vand.u32 %v225, 4294901760
        %2390 = vmatprep.mubr.f32.mxu0 %v2389
        %v2391 = vand.u32 %v224, 4294901760
        %2392 = vmatmul.mubr.f32.gmra.mrb[0].mxu0 %v2391
        %v2393 = vpop.f32.mrb[0].mxu0
        %v2394 = vadd.f32 %v1893, %v2393
        %v2395 = vpop.f32.mrb[0].mxu0
        %v2396 = vand.u32 %v227, 4294901760
        %2397 = vmatprep.mubr.f32.mxu0 %v2396
        %v2398 = vand.u32 %v226, 4294901760
        %2399 = vmatmul.mubr.f32.gmra.mrb[0].mxu0 %v2398
        %v2400 = vpop.f32.mrb[0].mxu0
        %v2401 = vadd.f32 %v1904, %v2400
        %v2402 = vpop.f32.mrb[0].mxu0
        %v2403 = vand.u32 %v229, 4294901760
        %2404 = vmatprep.mubr.f32.mxu0 %v2403
        %v2405 = vand.u32 %v228, 4294901760
        %2406 = vmatmul.mubr.f32.gmra.mrb[0].mxu0 %v2405
        %v2407 = vpop.f32.mrb[0].mxu0
        %v2408 = vadd.f32 %v1915, %v2407
        %v2409 = vpop.f32.mrb[0].mxu0
        %v2410 = vand.u32 %v231, 4294901760
        %2411 = vmatprep.mubr.f32.mxu0 %v2410
        %v2412 = vand.u32 %v230, 4294901760
        %2413 = vmatmul.mubr.f32.gmra.mrb[0].mxu0 %v2412
        %v2414 = vpop.f32.mrb[0].mxu0
        %v2415 = vadd.f32 %v1926, %v2414
        %v2416 = vpop.f32.mrb[0].mxu0
        %v2417 = vand.u32 %v233, 4294901760
        %2418 = vmatprep.mubr.f32.mxu0 %v2417
        %v2419 = vand.u32 %v232, 4294901760
        %2420 = vmatmul.mubr.f32.gmra.mrb[0].mxu0 %v2419
        %v2421 = vpop.f32.mrb[0].mxu0
        %v2422 = vadd.f32 %v1937, %v2421
        %v2423 = vpop.f32.mrb[0].mxu0
        %v2424 = vand.u32 %v235, 4294901760
        %2425 = vmatprep.mubr.f32.mxu0 %v2424
        %v2426 = vand.u32 %v234, 4294901760
        %2427 = vmatmul.mubr.f32.gmra.mrb[0].mxu0 %v2426
        %v2428 = vpop.f32.mrb[0].mxu0
        %v2429 = vadd.f32 %v1948, %v2428
        %v2430 = vpop.f32.mrb[0].mxu0
        %v2431 = vand.u32 %v237, 4294901760
        %2432 = vmatprep.mubr.f32.mxu0 %v2431
        %v2433 = vand.u32 %v236, 4294901760
        %2434 = vmatmul.mubr.f32.gmra.mrb[0].mxu0 %v2433
        %v2435 = vpop.f32.mrb[0].mxu0
        %v2436 = vadd.f32 %v1959, %v2435
        %v2437 = vpop.f32.mrb[0].mxu0
        %v2438 = vand.u32 %v239, 4294901760
        %2439 = vmatprep.mubr.f32.mxu0 %v2438
        %v2440 = vand.u32 %v238, 4294901760
        %2441 = vmatmul.mubr.f32.gmra.mrb[0].mxu0 %v2440
        %v2442 = vpop.f32.mrb[0].mxu0
        %v2443 = vadd.f32 %v1970, %v2442
        %v2444 = vpop.f32.mrb[0].mxu0
        %v2445 = vand.u32 %v241, 4294901760
        %2446 = vmatprep.mubr.f32.mxu0 %v2445
        %v2447 = vand.u32 %v240, 4294901760
        %2448 = vmatmul.mubr.f32.gmra.mrb[0].mxu0 %v2447
        %v2449 = vpop.f32.mrb[0].mxu0
        %v2450 = vadd.f32 %v1981, %v2449
        %v2451 = vpop.f32.mrb[0].mxu0
        %v2452 = vand.u32 %v243, 4294901760
        %2453 = vmatprep.mubr.f32.mxu0 %v2452
        %v2454 = vand.u32 %v242, 4294901760
        %2455 = vmatmul.mubr.f32.gmra.mrb[0].mxu0 %v2454
        %v2456 = vpop.f32.mrb[0].mxu0
        %v2457 = vadd.f32 %v1992, %v2456
        %v2458 = vpop.f32.mrb[0].mxu0
        %v2459 = vand.u32 %v245, 4294901760
        %2460 = vmatprep.mubr.f32.mxu0 %v2459
        %v2461 = vand.u32 %v244, 4294901760
        %2462 = vmatmul.mubr.f32.gmra.mrb[0].mxu0 %v2461
        %v2463 = vpop.f32.mrb[0].mxu0
        %v2464 = vadd.f32 %v2003, %v2463
        %v2465 = vpop.f32.mrb[0].mxu0
        %v2466 = vand.u32 %v247, 4294901760
        %2467 = vmatprep.mubr.f32.mxu0 %v2466
        %v2468 = vand.u32 %v246, 4294901760
        %2469 = vmatmul.mubr.f32.gmra.mrb[0].mxu0 %v2468
        %v2470 = vpop.f32.mrb[0].mxu0
        %v2471 = vadd.f32 %v2014, %v2470
        %v2472 = vpop.f32.mrb[0].mxu0
        %v2473 = vand.u32 %v249, 4294901760
        %2474 = vmatprep.mubr.f32.mxu0 %v2473
        %v2475 = vand.u32 %v248, 4294901760
        %2476 = vmatmul.mubr.f32.gmra.mrb[0].mxu0 %v2475
        %v2477 = vpop.f32.mrb[0].mxu0
        %v2478 = vadd.f32 %v2025, %v2477
        %v2479 = vpop.f32.mrb[0].mxu0
        %v2480 = vand.u32 %v251, 4294901760
        %2481 = vmatprep.mubr.f32.mxu0 %v2480
        %v2482 = vand.u32 %v250, 4294901760
        %2483 = vmatmul.mubr.f32.gmra.mrb[0].mxu0 %v2482
        %v2484 = vpop.f32.mrb[0].mxu0
        %v2485 = vadd.f32 %v2036, %v2484
        %v2486 = vpop.f32.mrb[0].mxu0
        %v2487 = vand.u32 %v253, 4294901760
        %2488 = vmatprep.mubr.f32.mxu0 %v2487
        %v2489 = vand.u32 %v252, 4294901760
        %2490 = vmatmul.mubr.f32.gmra.mrb[0].mxu0 %v2489
        %v2491 = vpop.f32.mrb[0].mxu0
        %v2492 = vadd.f32 %v2047, %v2491
        %v2493 = vpop.f32.mrb[0].mxu0
        %v2494 = vand.u32 %v255, 4294901760
        %2495 = vmatprep.mubr.f32.mxu0 %v2494
        %v2496 = vand.u32 %v254, 4294901760
        %2497 = vmatmul.mubr.f32.gmra.mrb[0].mxu0 %v2496
        %v2498 = vpop.f32.mrb[0].mxu0
        %v2499 = vadd.f32 %v2058, %v2498
        %v2500 = vpop.f32.mrb[0].mxu0
        %v2501 = vand.u32 %v257, 4294901760
        %2502 = vmatprep.mubr.f32.mxu0 %v2501
        %v2503 = vand.u32 %v256, 4294901760
        %2504 = vmatmul.mubr.f32.gmra.mrb[0].mxu0 %v2503
        %v2505 = vpop.f32.mrb[0].mxu0
        %v2506 = vadd.f32 %v2069, %v2505
        %v2507 = vpop.f32.mrb[0].mxu0
        %v2508 = vand.u32 %v259, 4294901760
        %2509 = vmatprep.mubr.f32.mxu0 %v2508
        %v2510 = vand.u32 %v258, 4294901760
        %2511 = vmatmul.mubr.f32.gmra.mrb[0].mxu0 %v2510
        %v2512 = vpop.f32.mrb[0].mxu0
        %v2513 = vadd.f32 %v2080, %v2512
        %v2514 = vpop.f32.mrb[0].mxu0
        %v2515 = vand.u32 %v261, 4294901760
        %2516 = vmatprep.mubr.f32.mxu0 %v2515
        %v2517 = vand.u32 %v260, 4294901760
        %2518 = vmatmul.mubr.f32.gmra.mrb[0].mxu0 %v2517
        %v2519 = vpop.f32.mrb[0].mxu0
        %v2520 = vadd.f32 %v2091, %v2519
        %v2521 = vpop.f32.mrb[0].mxu0
        %v2522 = vand.u32 %v263, 4294901760
        %2523 = vmatprep.mubr.f32.mxu0 %v2522
        %v2524 = vand.u32 %v262, 4294901760
        %2525 = vmatmul.mubr.f32.gmra.mrb[0].mxu0 %v2524
        %v2526 = vpop.f32.mrb[0].mxu0
        %v2527 = vadd.f32 %v2102, %v2526
        %v2528 = vpop.f32.mrb[0].mxu0
        %v2529 = vand.u32 %v265, 4294901760
        %2530 = vmatprep.mubr.f32.mxu0 %v2529
        %v2531 = vand.u32 %v264, 4294901760
        %2532 = vmatmul.mubr.f32.gmra.mrb[0].mxu0 %v2531
        %v2533 = vpop.f32.mrb[0].mxu0
        %v2534 = vadd.f32 %v2113, %v2533
        %v2535 = vpop.f32.mrb[0].mxu0
        %v2536 = vand.u32 %v267, 4294901760
        %2537 = vmatprep.mubr.f32.mxu0 %v2536
        %v2538 = vand.u32 %v266, 4294901760
        %2539 = vmatmul.mubr.f32.gmra.mrb[0].mxu0 %v2538
        %v2540 = vpop.f32.mrb[0].mxu0
        %v2541 = vadd.f32 %v2124, %v2540
        %v2542 = vpop.f32.mrb[0].mxu0
        %v2543 = vand.u32 %v269, 4294901760
        %2544 = vmatprep.mubr.f32.mxu0 %v2543
        %v2545 = vand.u32 %v268, 4294901760
        %2546 = vmatmul.mubr.f32.gmra.mrb[0].mxu0 %v2545
        %v2547 = vpop.f32.mrb[0].mxu0
        %v2548 = vadd.f32 %v2135, %v2547
        %v2549 = vpop.f32.mrb[0].mxu0
        %v2550 = vand.u32 %v271, 4294901760
        %2551 = vmatprep.mubr.f32.mxu0 %v2550
        %v2552 = vand.u32 %v270, 4294901760
        %2553 = vmatmul.mubr.f32.gmra.mrb[0].mxu0 %v2552
        %v2554 = vpop.f32.mrb[0].mxu0
        %v2555 = vadd.f32 %v2146, %v2554
        %v2556 = vpop.f32.mrb[0].mxu0
        %v2557 = vand.u32 %v273, 4294901760
        %2558 = vmatprep.mubr.f32.mxu0 %v2557
        %v2559 = vand.u32 %v272, 4294901760
        %2560 = vmatmul.mubr.f32.gmra.mrb[0].mxu0 %v2559
        %v2561 = vpop.f32.mrb[0].mxu0
        %v2562 = vadd.f32 %v2157, %v2561
        %v2563 = vpop.f32.mrb[0].mxu0
        %v2564 = vand.u32 %v275, 4294901760
        %2565 = vmatprep.mubr.f32.mxu0 %v2564
        %v2566 = vand.u32 %v274, 4294901760
        %2567 = vmatmul.mubr.f32.gmra.mrb[0].mxu0 %v2566
        %v2568 = vpop.f32.mrb[0].mxu0
        %v2569 = vadd.f32 %v2168, %v2568
        %v2570 = vpop.f32.mrb[0].mxu0
        %v2571 = vand.u32 %v277, 4294901760
        %2572 = vmatprep.mubr.f32.mxu0 %v2571
        %v2573 = vand.u32 %v276, 4294901760
        %2574 = vmatmul.mubr.f32.gmra.mrb[0].mxu0 %v2573
        %v2575 = vpop.f32.mrb[0].mxu0
        %v2576 = vadd.f32 %v2179, %v2575
        %v2577 = vpop.f32.mrb[0].mxu0
        %v2578 = vand.u32 %v279, 4294901760
        %2579 = vmatprep.mubr.f32.mxu0 %v2578
        %v2580 = vand.u32 %v278, 4294901760
        %2581 = vmatmul.mubr.f32.gmra.mrb[0].mxu0 %v2580
        %v2582 = vpop.f32.mrb[0].mxu0
        %v2583 = vadd.f32 %v2190, %v2582
        %v2584 = vpop.f32.mrb[0].mxu0
        %v2585 = vand.u32 %v281, 4294901760
        %2586 = vmatprep.mubr.f32.mxu0 %v2585
        %v2587 = vand.u32 %v280, 4294901760
        %2588 = vmatmul.mubr.f32.gmra.mrb[0].mxu0 %v2587
        %v2589 = vpop.f32.mrb[0].mxu0
        %v2590 = vadd.f32 %v2201, %v2589
        %v2591 = vpop.f32.mrb[0].mxu0
        %v2592 = vand.u32 %v283, 4294901760
        %2593 = vmatprep.mubr.f32.mxu0 %v2592
        %v2594 = vand.u32 %v282, 4294901760
        %2595 = vmatmul.mubr.f32.gmra.mrb[0].mxu0 %v2594
        %v2596 = vpop.f32.mrb[0].mxu0
        %v2597 = vadd.f32 %v2212, %v2596
        %v2598 = vpop.f32.mrb[0].mxu0
        %2599 = vdwg.mxu0
        %2600 = vmatprep.subr.mxu0 0.0
        %v2601 = vand.u32 %v284, 4294901760
        %2602 = vmatpush1.msra.mxu0 %v2601
        %2603 = vmatprep.subr.mxu0 0.0
        %v2604 = vand.u32 %v285, 4294901760
        %2605 = vmatpush1.msra.mxu0 %v2604
        %2606 = vmatprep.subr.mxu0 0.0
        %v2607 = vand.u32 %v286, 4294901760
        %2608 = vmatpush1.msra.mxu0 %v2607
        %2609 = vmatprep.subr.mxu0 0.0
        %v2610 = vand.u32 %v287, 4294901760
        %2611 = vmatpush1.msra.mxu0 %v2610
        %2612 = vmatprep.subr.mxu0 0.0
        %v2613 = vand.u32 %v288, 4294901760
        %2614 = vmatpush1.msra.mxu0 %v2613
        %2615 = vmatprep.subr.mxu0 0.0
        %v2616 = vand.u32 %v289, 4294901760
        %2617 = vmatpush1.msra.mxu0 %v2616
        %2618 = vmatprep.subr.mxu0 0.0
        %v2619 = vand.u32 %v290, 4294901760
        %2620 = vmatpush1.msra.mxu0 %v2619
        %2621 = vmatprep.subr.mxu0 0.0
        %v2622 = vand.u32 %v291, 4294901760
        %2623 = vmatpush1.msra.mxu0 %v2622
        %2624 = vmatprep.subr.mxu0 0.0
        %v2625 = vand.u32 %v292, 4294901760
        %2626 = vmatpush1.msra.mxu0 %v2625
        %2627 = vmatprep.subr.mxu0 0.0
        %v2628 = vand.u32 %v293, 4294901760
        %2629 = vmatpush1.msra.mxu0 %v2628
        %2630 = vmatprep.subr.mxu0 0.0
        %v2631 = vand.u32 %v294, 4294901760
        %2632 = vmatpush1.msra.mxu0 %v2631
        %2633 = vmatprep.subr.mxu0 0.0
        %v2634 = vand.u32 %v295, 4294901760
        %2635 = vmatpush1.msra.mxu0 %v2634
        %2636 = vmatprep.subr.mxu0 0.0
        %v2637 = vand.u32 %v296, 4294901760
        %2638 = vmatpush1.msra.mxu0 %v2637
        %2639 = vmatprep.subr.mxu0 0.0
        %v2640 = vand.u32 %v297, 4294901760
        %2641 = vmatpush1.msra.mxu0 %v2640
        %2642 = vmatprep.subr.mxu0 0.0
        %v2643 = vand.u32 %v298, 4294901760
        %2644 = vmatpush1.msra.mxu0 %v2643
        %2645 = vmatprep.subr.mxu0 0.0
        %v2646 = vand.u32 %v299, 4294901760
        %2647 = vmatpush1.msra.mxu0 %v2646
        %2648 = vmatprep.subr.mxu0 0.0
        %v2649 = vand.u32 %v300, 4294901760
        %2650 = vmatpush1.msra.mxu0 %v2649
        %2651 = vmatprep.subr.mxu0 0.0
        %v2652 = vand.u32 %v301, 4294901760
        %2653 = vmatpush1.msra.mxu0 %v2652
        %2654 = vmatprep.subr.mxu0 0.0
        %v2655 = vand.u32 %v302, 4294901760
        %2656 = vmatpush1.msra.mxu0 %v2655
        %2657 = vmatprep.subr.mxu0 0.0
        %v2658 = vand.u32 %v303, 4294901760
        %2659 = vmatpush1.msra.mxu0 %v2658
        %2660 = vmatprep.subr.mxu0 0.0
        %v2661 = vand.u32 %v304, 4294901760
        %2662 = vmatpush1.msra.mxu0 %v2661
        %2663 = vmatprep.subr.mxu0 0.0
        %v2664 = vand.u32 %v305, 4294901760
        %2665 = vmatpush1.msra.mxu0 %v2664
        %2666 = vmatprep.subr.mxu0 0.0
        %v2667 = vand.u32 %v306, 4294901760
        %2668 = vmatpush1.msra.mxu0 %v2667
        %2669 = vmatprep.subr.mxu0 0.0
        %v2670 = vand.u32 %v307, 4294901760
        %2671 = vmatpush1.msra.mxu0 %v2670
        %2672 = vmatprep.subr.mxu0 0.0
        %v2673 = vand.u32 %v308, 4294901760
        %2674 = vmatpush1.msra.mxu0 %v2673
        %2675 = vmatprep.subr.mxu0 0.0
        %v2676 = vand.u32 %v309, 4294901760
        %2677 = vmatpush1.msra.mxu0 %v2676
        %2678 = vmatprep.subr.mxu0 0.0
        %v2679 = vand.u32 %v310, 4294901760
        %2680 = vmatpush1.msra.mxu0 %v2679
        %2681 = vmatprep.subr.mxu0 0.0
        %v2682 = vand.u32 %v311, 4294901760
        %2683 = vmatpush1.msra.mxu0 %v2682
        %2684 = vmatprep.subr.mxu0 0.0
        %v2685 = vand.u32 %v312, 4294901760
        %2686 = vmatpush1.msra.mxu0 %v2685
        %2687 = vmatprep.subr.mxu0 0.0
        %v2688 = vand.u32 %v313, 4294901760
        %2689 = vmatpush1.msra.mxu0 %v2688
        %2690 = vmatprep.subr.mxu0 0.0
        %v2691 = vand.u32 %v314, 4294901760
        %2692 = vmatpush1.msra.mxu0 %v2691
        %2693 = vmatprep.subr.mxu0 0.0
        %v2694 = vand.u32 %v315, 4294901760
        %2695 = vmatpush1.msra.mxu0 %v2694
        %v2696 = vand.u32 %v221, 4294901760
        %2697 = vmatprep.mubr.f32.mxu0 %v2696
        %v2698 = vand.u32 %v220, 4294901760
        %2699 = vmatmul.mubr.f32.gmra.mrb[0].mxu0 %v2698
        %v2700 = vpop.f32.mrb[0].mxu0
        %v2701 = vadd.f32 %v2380, %v2700
        %v2702 = vpop.f32.mrb[0].mxu0
        %v2703 = vand.u32 %v223, 4294901760
        %2704 = vmatprep.mubr.f32.mxu0 %v2703
        %v2705 = vand.u32 %v222, 4294901760
        %2706 = vmatmul.mubr.f32.gmra.mrb[0].mxu0 %v2705
        %v2707 = vpop.f32.mrb[0].mxu0
        %v2708 = vadd.f32 %v2387, %v2707
        %v2709 = vpop.f32.mrb[0].mxu0
        %v2710 = vand.u32 %v225, 4294901760
        %2711 = vmatprep.mubr.f32.mxu0 %v2710
        %v2712 = vand.u32 %v224, 4294901760
        %2713 = vmatmul.mubr.f32.gmra.mrb[0].mxu0 %v2712
        %v2714 = vpop.f32.mrb[0].mxu0
        %v2715 = vadd.f32 %v2394, %v2714
        %v2716 = vpop.f32.mrb[0].mxu0
        %v2717 = vand.u32 %v227, 4294901760
        %2718 = vmatprep.mubr.f32.mxu0 %v2717
        %v2719 = vand.u32 %v226, 4294901760
        %2720 = vmatmul.mubr.f32.gmra.mrb[0].mxu0 %v2719
        %v2721 = vpop.f32.mrb[0].mxu0
        %v2722 = vadd.f32 %v2401, %v2721
        %v2723 = vpop.f32.mrb[0].mxu0
        %v2724 = vand.u32 %v229, 4294901760
        %2725 = vmatprep.mubr.f32.mxu0 %v2724
        %v2726 = vand.u32 %v228, 4294901760
        %2727 = vmatmul.mubr.f32.gmra.mrb[0].mxu0 %v2726
        %v2728 = vpop.f32.mrb[0].mxu0
        %v2729 = vadd.f32 %v2408, %v2728
        %v2730 = vpop.f32.mrb[0].mxu0
        %v2731 = vand.u32 %v231, 4294901760
        %2732 = vmatprep.mubr.f32.mxu0 %v2731
        %v2733 = vand.u32 %v230, 4294901760
        %2734 = vmatmul.mubr.f32.gmra.mrb[0].mxu0 %v2733
        %v2735 = vpop.f32.mrb[0].mxu0
        %v2736 = vadd.f32 %v2415, %v2735
        %v2737 = vpop.f32.mrb[0].mxu0
        %v2738 = vand.u32 %v233, 4294901760
        %2739 = vmatprep.mubr.f32.mxu0 %v2738
        %v2740 = vand.u32 %v232, 4294901760
        %2741 = vmatmul.mubr.f32.gmra.mrb[0].mxu0 %v2740
        %v2742 = vpop.f32.mrb[0].mxu0
        %v2743 = vadd.f32 %v2422, %v2742
        %v2744 = vpop.f32.mrb[0].mxu0
        %v2745 = vand.u32 %v235, 4294901760
        %2746 = vmatprep.mubr.f32.mxu0 %v2745
        %v2747 = vand.u32 %v234, 4294901760
        %2748 = vmatmul.mubr.f32.gmra.mrb[0].mxu0 %v2747
        %v2749 = vpop.f32.mrb[0].mxu0
        %v2750 = vadd.f32 %v2429, %v2749
        %v2751 = vpop.f32.mrb[0].mxu0
        %v2752 = vand.u32 %v237, 4294901760
        %2753 = vmatprep.mubr.f32.mxu0 %v2752
        %v2754 = vand.u32 %v236, 4294901760
        %2755 = vmatmul.mubr.f32.gmra.mrb[0].mxu0 %v2754
        %v2756 = vpop.f32.mrb[0].mxu0
        %v2757 = vadd.f32 %v2436, %v2756
        %v2758 = vpop.f32.mrb[0].mxu0
        %v2759 = vand.u32 %v239, 4294901760
        %2760 = vmatprep.mubr.f32.mxu0 %v2759
        %v2761 = vand.u32 %v238, 4294901760
        %2762 = vmatmul.mubr.f32.gmra.mrb[0].mxu0 %v2761
        %v2763 = vpop.f32.mrb[0].mxu0
        %v2764 = vadd.f32 %v2443, %v2763
        %v2765 = vpop.f32.mrb[0].mxu0
        %v2766 = vand.u32 %v241, 4294901760
        %2767 = vmatprep.mubr.f32.mxu0 %v2766
        %v2768 = vand.u32 %v240, 4294901760
        %2769 = vmatmul.mubr.f32.gmra.mrb[0].mxu0 %v2768
        %v2770 = vpop.f32.mrb[0].mxu0
        %v2771 = vadd.f32 %v2450, %v2770
        %v2772 = vpop.f32.mrb[0].mxu0
        %v2773 = vand.u32 %v243, 4294901760
        %2774 = vmatprep.mubr.f32.mxu0 %v2773
        %v2775 = vand.u32 %v242, 4294901760
        %2776 = vmatmul.mubr.f32.gmra.mrb[0].mxu0 %v2775
        %v2777 = vpop.f32.mrb[0].mxu0
        %v2778 = vadd.f32 %v2457, %v2777
        %v2779 = vpop.f32.mrb[0].mxu0
        %v2780 = vand.u32 %v245, 4294901760
        %2781 = vmatprep.mubr.f32.mxu0 %v2780
        %v2782 = vand.u32 %v244, 4294901760
        %2783 = vmatmul.mubr.f32.gmra.mrb[0].mxu0 %v2782
        %v2784 = vpop.f32.mrb[0].mxu0
        %v2785 = vadd.f32 %v2464, %v2784
        %v2786 = vpop.f32.mrb[0].mxu0
        %v2787 = vand.u32 %v247, 4294901760
        %2788 = vmatprep.mubr.f32.mxu0 %v2787
        %v2789 = vand.u32 %v246, 4294901760
        %2790 = vmatmul.mubr.f32.gmra.mrb[0].mxu0 %v2789
        %v2791 = vpop.f32.mrb[0].mxu0
        %v2792 = vadd.f32 %v2471, %v2791
        %v2793 = vpop.f32.mrb[0].mxu0
        %v2794 = vand.u32 %v249, 4294901760
        %2795 = vmatprep.mubr.f32.mxu0 %v2794
        %v2796 = vand.u32 %v248, 4294901760
        %2797 = vmatmul.mubr.f32.gmra.mrb[0].mxu0 %v2796
        %v2798 = vpop.f32.mrb[0].mxu0
        %v2799 = vadd.f32 %v2478, %v2798
        %v2800 = vpop.f32.mrb[0].mxu0
        %v2801 = vand.u32 %v251, 4294901760
        %2802 = vmatprep.mubr.f32.mxu0 %v2801
        %v2803 = vand.u32 %v250, 4294901760
        %2804 = vmatmul.mubr.f32.gmra.mrb[0].mxu0 %v2803
        %v2805 = vpop.f32.mrb[0].mxu0
        %v2806 = vadd.f32 %v2485, %v2805
        %v2807 = vpop.f32.mrb[0].mxu0
        %v2808 = vand.u32 %v253, 4294901760
        %2809 = vmatprep.mubr.f32.mxu0 %v2808
        %v2810 = vand.u32 %v252, 4294901760
        %2811 = vmatmul.mubr.f32.gmra.mrb[0].mxu0 %v2810
        %v2812 = vpop.f32.mrb[0].mxu0
        %v2813 = vadd.f32 %v2492, %v2812
        %v2814 = vpop.f32.mrb[0].mxu0
        %v2815 = vand.u32 %v255, 4294901760
        %2816 = vmatprep.mubr.f32.mxu0 %v2815
        %v2817 = vand.u32 %v254, 4294901760
        %2818 = vmatmul.mubr.f32.gmra.mrb[0].mxu0 %v2817
        %v2819 = vpop.f32.mrb[0].mxu0
        %v2820 = vadd.f32 %v2499, %v2819
        %v2821 = vpop.f32.mrb[0].mxu0
        %v2822 = vand.u32 %v257, 4294901760
        %2823 = vmatprep.mubr.f32.mxu0 %v2822
        %v2824 = vand.u32 %v256, 4294901760
        %2825 = vmatmul.mubr.f32.gmra.mrb[0].mxu0 %v2824
        %v2826 = vpop.f32.mrb[0].mxu0
        %v2827 = vadd.f32 %v2506, %v2826
        %v2828 = vpop.f32.mrb[0].mxu0
        %v2829 = vand.u32 %v259, 4294901760
        %2830 = vmatprep.mubr.f32.mxu0 %v2829
        %v2831 = vand.u32 %v258, 4294901760
        %2832 = vmatmul.mubr.f32.gmra.mrb[0].mxu0 %v2831
        %v2833 = vpop.f32.mrb[0].mxu0
        %v2834 = vadd.f32 %v2513, %v2833
        %v2835 = vpop.f32.mrb[0].mxu0
        %v2836 = vand.u32 %v261, 4294901760
        %2837 = vmatprep.mubr.f32.mxu0 %v2836
        %v2838 = vand.u32 %v260, 4294901760
        %2839 = vmatmul.mubr.f32.gmra.mrb[0].mxu0 %v2838
        %v2840 = vpop.f32.mrb[0].mxu0
        %v2841 = vadd.f32 %v2520, %v2840
        %v2842 = vpop.f32.mrb[0].mxu0
        %v2843 = vand.u32 %v263, 4294901760
        %2844 = vmatprep.mubr.f32.mxu0 %v2843
        %v2845 = vand.u32 %v262, 4294901760
        %2846 = vmatmul.mubr.f32.gmra.mrb[0].mxu0 %v2845
        %v2847 = vpop.f32.mrb[0].mxu0
        %v2848 = vadd.f32 %v2527, %v2847
        %v2849 = vpop.f32.mrb[0].mxu0
        %v2850 = vand.u32 %v265, 4294901760
        %2851 = vmatprep.mubr.f32.mxu0 %v2850
        %v2852 = vand.u32 %v264, 4294901760
        %2853 = vmatmul.mubr.f32.gmra.mrb[0].mxu0 %v2852
        %v2854 = vpop.f32.mrb[0].mxu0
        %v2855 = vadd.f32 %v2534, %v2854
        %v2856 = vpop.f32.mrb[0].mxu0
        %v2857 = vand.u32 %v267, 4294901760
        %2858 = vmatprep.mubr.f32.mxu0 %v2857
        %v2859 = vand.u32 %v266, 4294901760
        %2860 = vmatmul.mubr.f32.gmra.mrb[0].mxu0 %v2859
        %v2861 = vpop.f32.mrb[0].mxu0
        %v2862 = vadd.f32 %v2541, %v2861
        %v2863 = vpop.f32.mrb[0].mxu0
        %v2864 = vand.u32 %v269, 4294901760
        %2865 = vmatprep.mubr.f32.mxu0 %v2864
        %v2866 = vand.u32 %v268, 4294901760
        %2867 = vmatmul.mubr.f32.gmra.mrb[0].mxu0 %v2866
        %v2868 = vpop.f32.mrb[0].mxu0
        %v2869 = vadd.f32 %v2548, %v2868
        %v2870 = vpop.f32.mrb[0].mxu0
        %v2871 = vand.u32 %v271, 4294901760
        %2872 = vmatprep.mubr.f32.mxu0 %v2871
        %v2873 = vand.u32 %v270, 4294901760
        %2874 = vmatmul.mubr.f32.gmra.mrb[0].mxu0 %v2873
        %v2875 = vpop.f32.mrb[0].mxu0
        %v2876 = vadd.f32 %v2555, %v2875
        %v2877 = vpop.f32.mrb[0].mxu0
        %v2878 = vand.u32 %v273, 4294901760
        %2879 = vmatprep.mubr.f32.mxu0 %v2878
        %v2880 = vand.u32 %v272, 4294901760
        %2881 = vmatmul.mubr.f32.gmra.mrb[0].mxu0 %v2880
        %v2882 = vpop.f32.mrb[0].mxu0
        %v2883 = vadd.f32 %v2562, %v2882
        %v2884 = vpop.f32.mrb[0].mxu0
        %v2885 = vand.u32 %v275, 4294901760
        %2886 = vmatprep.mubr.f32.mxu0 %v2885
        %v2887 = vand.u32 %v274, 4294901760
        %2888 = vmatmul.mubr.f32.gmra.mrb[0].mxu0 %v2887
        %v2889 = vpop.f32.mrb[0].mxu0
        %v2890 = vadd.f32 %v2569, %v2889
        %v2891 = vpop.f32.mrb[0].mxu0
        %v2892 = vand.u32 %v277, 4294901760
        %2893 = vmatprep.mubr.f32.mxu0 %v2892
        %v2894 = vand.u32 %v276, 4294901760
        %2895 = vmatmul.mubr.f32.gmra.mrb[0].mxu0 %v2894
        %v2896 = vpop.f32.mrb[0].mxu0
        %v2897 = vadd.f32 %v2576, %v2896
        %v2898 = vpop.f32.mrb[0].mxu0
        %v2899 = vand.u32 %v279, 4294901760
        %2900 = vmatprep.mubr.f32.mxu0 %v2899
        %v2901 = vand.u32 %v278, 4294901760
        %2902 = vmatmul.mubr.f32.gmra.mrb[0].mxu0 %v2901
        %v2903 = vpop.f32.mrb[0].mxu0
        %v2904 = vadd.f32 %v2583, %v2903
        %v2905 = vpop.f32.mrb[0].mxu0
        %v2906 = vand.u32 %v281, 4294901760
        %2907 = vmatprep.mubr.f32.mxu0 %v2906
        %v2908 = vand.u32 %v280, 4294901760
        %2909 = vmatmul.mubr.f32.gmra.mrb[0].mxu0 %v2908
        %v2910 = vpop.f32.mrb[0].mxu0
        %v2911 = vadd.f32 %v2590, %v2910
        %v2912 = vpop.f32.mrb[0].mxu0
        %v2913 = vand.u32 %v283, 4294901760
        %2914 = vmatprep.mubr.f32.mxu0 %v2913
        %v2915 = vand.u32 %v282, 4294901760
        %2916 = vmatmul.mubr.f32.gmra.mrb[0].mxu0 %v2915
        %v2917 = vpop.f32.mrb[0].mxu0
        %v2918 = vadd.f32 %v2597, %v2917
        %v2919 = vpop.f32.mrb[0].mxu0
        %2920 = vdwg.mxu0
        %2921 = vst [vmem:[%s204] sm:$0xff] %v2701
        %2922 = vst [vmem:[%s204 + $0x8] sm:$0xff] %v2708
        %2923 = vst [vmem:[%s204 + $0x10] sm:$0xff] %v2715
        %2924 = vst [vmem:[%s204 + $0x18] sm:$0xff] %v2722
        %2925 = vst [vmem:[%s204 + $0x20] sm:$0xff] %v2729
        %2926 = vst [vmem:[%s204 + $0x28] sm:$0xff] %v2736
        %2927 = vst [vmem:[%s204 + $0x30] sm:$0xff] %v2743
        %2928 = vst [vmem:[%s204 + $0x38] sm:$0xff] %v2750
        %2929 = vst [vmem:[%s204 + $0x40] sm:$0xff] %v2757
        %2930 = vst [vmem:[%s204 + $0x48] sm:$0xff] %v2764
        %2931 = vst [vmem:[%s204 + $0x50] sm:$0xff] %v2771
        %2932 = vst [vmem:[%s204 + $0x58] sm:$0xff] %v2778
        %2933 = vst [vmem:[%s204 + $0x60] sm:$0xff] %v2785
        %2934 = vst [vmem:[%s204 + $0x68] sm:$0xff] %v2792
        %2935 = vst [vmem:[%s204 + $0x70] sm:$0xff] %v2799
        %2936 = vst [vmem:[%s204 + $0x78] sm:$0xff] %v2806
        %2937 = vst [vmem:[%s204 + $0x80] sm:$0xff] %v2813
        %2938 = vst [vmem:[%s204 + $0x88] sm:$0xff] %v2820
        %2939 = vst [vmem:[%s204 + $0x90] sm:$0xff] %v2827
        %2940 = vst [vmem:[%s204 + $0x98] sm:$0xff] %v2834
        %2941 = vst [vmem:[%s204 + $0xa0] sm:$0xff] %v2841
        %2942 = vst [vmem:[%s204 + $0xa8] sm:$0xff] %v2848
        %2943 = vst [vmem:[%s204 + $0xb0] sm:$0xff] %v2855
        %2944 = vst [vmem:[%s204 + $0xb8] sm:$0xff] %v2862
        %2945 = vst [vmem:[%s204 + $0xc0] sm:$0xff] %v2869
        %2946 = vst [vmem:[%s204 + $0xc8] sm:$0xff] %v2876
        %2947 = vst [vmem:[%s204 + $0xd0] sm:$0xff] %v2883
        %2948 = vst [vmem:[%s204 + $0xd8] sm:$0xff] %v2890
        %2949 = vst [vmem:[%s204 + $0xe0] sm:$0xff] %v2897
        %2950 = vst [vmem:[%s204 + $0xe8] sm:$0xff] %v2904
        %2951 = vst [vmem:[%s204 + $0xf0] sm:$0xff] %v2911
        %2952 = vst [vmem:[%s204 + $0xf8] sm:$0xff] %v2918
        %s2953 = sand.u32 %s117, 1
        %s2954 = scalar_lea.sflag [#allocation3], %s2953
        %s2955 = sand.u32 %s117, 1
        %s2956 = smul.addr %s2955, 256
        %s2957 = scalar_lea.vmem [#allocation2], %s2956
        // Predicated region
        $region33: #{_forward_core.1} parent=31 // pred_check
          %p2958 = pneg %p127
        $region34: #{_forward_core.1} parent=31 // pred_check_branch
          %2960 = sbr.rel (%p2958) target = $region36
        $region35: #{_forward_core.1} parent=31 // pred_region
          %s2961 = smul.u32 32, %s21
          %s2963 = ssub.s32 4096, 4096
          %2964 = vsyncadd %s2954, %s2963
          %s2965 = sadd.s32 %s22, %s2961
          %s2966 = smul.addr %s2965, 128
          %s2967 = scalar_lea.hbm %s3, %s2966
          %s2968 = sshll.u32 %s2957, 4
          %s2969 = int_to_ptr.vmem [resolvable:$true] %s2968
          %2974 = dma.vmem_to_hbm [thread:$0]  %s2969, 4096, %s2967, %s2954, 128, 128, 8
        $region36: #{_forward_core.1} parent=31 // pred_fallthru
          _
      $region32: #{_forward_core.1} parent=5 // pred_fallthru
        _
      %p2975 = scmp.le.s32.totalorder 2, %s12
      // Predicated region
      $region37: #{_forward_core.1} parent=5 // pred_check
        %p2976 = pneg %p2975
      $region38: #{_forward_core.1} parent=5 // pred_check_branch
        %2978 = sbr.rel (%p2976) target = $region40
      $region39: #{_forward_core.1} parent=5 // pred_region
        %s2979 = ssub.s32 %s12, 2
        // Predicated region
        $region41: #{_forward_core.1} parent=39 // pred_check
          %p2980 = pneg %p133
        $region42: #{_forward_core.1} parent=39 // pred_check_branch
          %2982 = sbr.rel (%p2980) target = $region44
        $region43: #{_forward_core.1} parent=39 // pred_region
          %s2983 = sand.u32 %s118, 1
          %s2984 = scalar_lea.sflag [#allocation3], %s2983
          %s2985 = sand.u32 %s118, 1
          %s2986 = smul.addr %s2985, 256
          %s2987 = scalar_lea.vmem [#allocation2], %s2986
          %2988 = dma.done %s2984, 4096
        $region44: #{_forward_core.1} parent=39 // pred_fallthru
          _
      $region40: #{_forward_core.1} parent=5 // pred_fallthru
        _
    $region6: #{_forward_core.1} parent=1 // loop_footer
      %s16 = sadd.s32 1, %s12
    $region7: #{_forward_core.1} parent=1 // loop_footer_branch
      %11 = sbr.rel target = $region3
    $region8: #{_forward_core.1} parent=1 // loop_exit
      _
    %2989 = vsyncpa [#allocation3], 1
    %s2990 = scalar_lea.sflag [#allocation3], 1
    %2991 = vsyncpa %s2990, 1

// kernel: _forward_core.1
$region0: #{_forward_core.1}
  #allocation0 [shape = 'u32[]', space=smem, size = 0x4, offset = 0x4, fixed_abs, tag = 'smem constant byte address 0x4 - core index']
  #allocation1 [shape = 'u32[144,128]{1,0:T(1,128)}', space=vmem, size = 0x12000, scoped, tag = 'internal scratch']
  %s0 = inlined_call_operand.vmem [shape: f32[2048,256], index: 0, kind: input, shape index: {}]
  %s1 = inlined_call_operand.vmem [shape: f32[256,128], index: 1, kind: input, shape index: {}]
  %s2 = inlined_call_operand.vmem [shape: f32[1,128], index: 2, kind: input, shape index: {}]
  %s3 = inlined_call_operand.hbm [shape: f32[2048,128], index: 3, kind: output, shape index: {}]
  %s4 = sld [smem:[#allocation0]]
  $region45: #{_forward_core.1} parent=0
    _
  %s6 = ssub.s32 1, %s4
  %s7 = scalar_select 0, %s6, %s4
  $region1: #{_forward_core.1} parent=0
    #allocation2 [shape = 'u8[262144]{0}', space=vmem, size = 0x40000, scoped, tag = 'output window, operand 0']
    #allocation3 [shape = 's32[2]{0}', space=sflag, size = 0x8, scoped, tag = 'scoped memory for _forward_core.1']
    %8 = vsyncpa [#allocation3], 0
    %s9 = scalar_lea.sflag [#allocation3], 1
    %10 = vsyncpa %s9, 0
    loop: start=0, step=1, limit=10
    $region2: #{_forward_core.1} parent=1 // loop_pre_header
      _
    $region3: #{_forward_core.1} parent=1 // loop_header
      %s12 = sphi 0, %s16
      %p13 = scmp.ge.s32.totalorder %s12, 10
      %s19 = sphi 0, %s31
      %s20 = sphi 0, %s27
      %s21 = sphi 0, %s19
      %s22 = sphi 0, %s20
      %s23 = sphi 0, %s21
      %s24 = sphi 0, %s22
      %s34 = sphi 0, %s36
      %s37 = sphi 0, %s34
      %s38 = sphi 0, %s37
      %s54 = sphi 0, %s38
      %s60 = sphi 0, %s62
      %s63 = sphi 0, %s60
      %s64 = sphi 0, %s63
      %s80 = sphi 0, %s64
      %s86 = sphi 0, %s88
      %s89 = sphi 0, %s86
      %s90 = sphi 0, %s89
      %s106 = sphi 0, %s90
      %s114 = sphi 0, %s116
      %s117 = sphi 0, %s114
      %s118 = sphi 0, %s117
      %s134 = sphi 0, %s118
    $region4: #{_forward_core.1} parent=1 // loop_header_branch
      %15 = sbr.rel (%p13) target = $region8
    $region5: #{_forward_core.1} parent=1 // loop_body
      %s17 = ssub.s32 %s12, 1
      %s18 = ssub.s32 %s12, 2
      %s25 = sadd.s32 1, %s20
      %p26 = scmp.ge.s32.totalorder %s25, 1
      %s27 = scalar_select %p26, 0, %s25
      %s28 = sadd.s32 1, %s19
      %s29 = scalar_select %p26, %s28, %s19
      %p30 = scmp.ge.s32.totalorder %s29, 8
      %s31 = scalar_select %p30, 0, %s29
      %s32 = ssub.s32 %s19, %s31
      %p33 = scmp.eq.s32.totalorder %s32, 0
      %s35 = sadd.s32 %s34, 1
      %s36 = scalar_select %p33, %s34, %s35
      %p39 = pneg %p33
      %p40 = scmp.eq.s32.totalorder %s12, 7
      %p41 = por %p39, %p40
      %p42 = scmp.ne.s32.totalorder %s34, %s37
      %p43 = scmp.eq.s32.totalorder %s12, 0
      %p44 = por %p42, %p43
      %p45 = scmp.ne.s32.totalorder %s34, %s37
      %p46 = scmp.eq.s32.totalorder %s17, 7
      %p47 = por %p45, %p46
      %p48 = scmp.ne.s32.totalorder %s37, %s38
      %p49 = scmp.eq.s32.totalorder %s17, 0
      %p50 = por %p48, %p49
      %p51 = scmp.ne.s32.totalorder %s37, %s38
      %p52 = scmp.eq.s32.totalorder %s18, 7
      %p53 = por %p51, %p52
      %p55 = scmp.ne.s32.totalorder %s38, %s54
      %p56 = scmp.eq.s32.totalorder %s18, 0
      %p57 = por %p55, %p56
      %s58 = ssub.s32 %s20, %s27
      %p59 = scmp.eq.s32.totalorder %s58, 0
      %s61 = sadd.s32 %s60, 1
      %s62 = scalar_select %p59, %s60, %s61
      %p65 = pneg %p59
      %p66 = scmp.eq.s32.totalorder %s12, 7
      %p67 = por %p65, %p66
      %p68 = scmp.ne.s32.totalorder %s60, %s63
      %p69 = scmp.eq.s32.totalorder %s12, 0
      %p70 = por %p68, %p69
      %p71 = scmp.ne.s32.totalorder %s60, %s63
      %p72 = scmp.eq.s32.totalorder %s17, 7
      %p73 = por %p71, %p72
      %p74 = scmp.ne.s32.totalorder %s63, %s64
      %p75 = scmp.eq.s32.totalorder %s17, 0
      %p76 = por %p74, %p75
      %p77 = scmp.ne.s32.totalorder %s63, %s64
      %p78 = scmp.eq.s32.totalorder %s18, 7
      %p79 = por %p77, %p78
      %p81 = scmp.ne.s32.totalorder %s64, %s80
      %p82 = scmp.eq.s32.totalorder %s18, 0
      %p83 = por %p81, %p82
      %s84 = ssub.s32 %s20, %s27
      %p85 = scmp.eq.s32.totalorder %s84, 0
      %s87 = sadd.s32 %s86, 1
      %s88 = scalar_select %p85, %s86, %s87
      %p91 = pneg %p85
      %p92 = scmp.eq.s32.totalorder %s12, 7
      %p93 = por %p91, %p92
      %p94 = scmp.ne.s32.totalorder %s86, %s89
      %p95 = scmp.eq.s32.totalorder %s12, 0
      %p96 = por %p94, %p95
      %p97 = scmp.ne.s32.totalorder %s86, %s89
      %p98 = scmp.eq.s32.totalorder %s17, 7
      %p99 = por %p97, %p98
      %p100 = scmp.ne.s32.totalorder %s89, %s90
      %p101 = scmp.eq.s32.totalorder %s17, 0
      %p102 = por %p100, %p101
      %p103 = scmp.ne.s32.totalorder %s89, %s90
      %p104 = scmp.eq.s32.totalorder %s18, 7
      %p105 = por %p103, %p104
      %p107 = scmp.ne.s32.totalorder %s90, %s106
      %p108 = scmp.eq.s32.totalorder %s18, 0
      %p109 = por %p107, %p108
      %s110 = ssub.s32 %s19, %s31
      %s111 = ssub.s32 %s20, %s27
      %s112 = sor.u32 %s110, %s111
      %p113 = scmp.eq.s32.totalorder %s112, 0
      %s115 = sadd.s32 %s114, 1
      %s116 = scalar_select %p113, %s114, %s115
      %p119 = pneg %p113
      %p120 = scmp.eq.s32.totalorder %s12, 7
      %p121 = por %p119, %p120
      %p122 = scmp.ne.s32.totalorder %s114, %s117
      %p123 = scmp.eq.s32.totalorder %s12, 0
      %p124 = por %p122, %p123
      %p125 = scmp.ne.s32.totalorder %s114, %s117
      %p126 = scmp.eq.s32.totalorder %s17, 7
      %p127 = por %p125, %p126
      %p128 = scmp.ne.s32.totalorder %s117, %s118
      %p129 = scmp.eq.s32.totalorder %s17, 0
      %p130 = por %p128, %p129
      %p131 = scmp.ne.s32.totalorder %s117, %s118
      %p132 = scmp.eq.s32.totalorder %s18, 7
      %p133 = por %p131, %p132
      %p135 = scmp.ne.s32.totalorder %s118, %s134
      %p136 = scmp.eq.s32.totalorder %s18, 0
      %p137 = por %p135, %p136
      %p138 = scmp.le.s32.totalorder 1, %s12
      %p139 = scmp.lt.s32.totalorder %s12, 9
      %p140 = pnand %p138, %p139
      %p141 = pneg %p140
      // Predicated region
      $region9: #{_forward_core.1} parent=5 // pred_check
        _
      $region10: #{_forward_core.1} parent=5 // pred_check_branch
        %143 = sbr.rel (%p140) target = $region12
      $region11: #{_forward_core.1} parent=5 // pred_region
        %s144 = ssub.s32 %s12, 1
        // Predicated region
        $region13: #{_forward_core.1} parent=11 // pred_check
          %p145 = pneg %p76
        $region14: #{_forward_core.1} parent=11 // pred_check_branch
          %147 = sbr.rel (%p145) target = $region16
        $region15: #{_forward_core.1} parent=11 // pred_region
          %p148 = scmp.lt.s32.totalorder %s22, 0
          %s149 = scalar_select %p148, %s22, 0
          %s150 = smul.addr %s149, 8
          %s151 = scalar_lea.vmem %s1, %s150
        $region16: #{_forward_core.1} parent=11 // pred_fallthru
          _
        // Predicated region
        $region17: #{_forward_core.1} parent=11 // pred_check
          %p152 = pneg %p102
        $region18: #{_forward_core.1} parent=11 // pred_check_branch
          %154 = sbr.rel (%p152) target = $region20
        $region19: #{_forward_core.1} parent=11 // pred_region
          %p155 = scmp.lt.s32.totalorder %s22, 0
          %s156 = scalar_select %p155, %s22, 0
          %s157 = scalar_lea.vmem %s2, %s156
        $region20: #{_forward_core.1} parent=11 // pred_fallthru
          _
      $region12: #{_forward_core.1} parent=5 // pred_fallthru
        _
      %p158 = scmp.lt.s32.totalorder %s12, 8
      // Predicated region
      $region21: #{_forward_core.1} parent=5 // pred_check
        %p159 = pneg %p158
      $region22: #{_forward_core.1} parent=5 // pred_check_branch
        %161 = sbr.rel (%p159) target = $region24
      $region23: #{_forward_core.1} parent=5 // pred_region
        // Predicated region
        $region25: #{_forward_core.1} parent=23 // pred_check
          %p162 = pneg %p44
        $region26: #{_forward_core.1} parent=23 // pred_check_branch
          %164 = sbr.rel (%p162) target = $region28
        $region27: #{_forward_core.1} parent=23 // pred_region
          %s165 = smul.u32 32, %s19
          %p166 = scmp.lt.s32.totalorder %s165, 255
          %s167 = scalar_select %p166, %s165, 255
          %s168 = smul.addr %s167, 2
          %s169 = smul.addr %s168, 8
          %s170 = scalar_lea.vmem %s0, %s169
          %s171 = smul.u32 32, %s19
        $region28: #{_forward_core.1} parent=23 // pred_fallthru
          _
      $region24: #{_forward_core.1} parent=5 // pred_fallthru
        _
      %p172 = scmp.le.s32.totalorder 1, %s12
      %p173 = scmp.lt.s32.totalorder %s12, 9
      %p174 = pnand %p172, %p173
      %p175 = pneg %p174
      // Predicated region
      $region29: #{_forward_core.1} parent=5 // pred_check
        _
      $region30: #{_forward_core.1} parent=5 // pred_check_branch
        %177 = sbr.rel (%p174) target = $region32
      $region31: #{_forward_core.1} parent=5 // pred_region
        %s178 = ssub.s32 %s12, 1
        %s179 = smul.u32 32, %s21
        %p180 = scmp.lt.s32.totalorder %s179, 255
        %s181 = scalar_select %p180, %s179, 255
        %s182 = smul.addr %s181, 2
        %s183 = smul.addr %s182, 8
        %s184 = scalar_lea.vmem %s0, %s183
        %p185 = pneg %p50
        %p186 = pneg %p47
        %p187 = scmp.lt.s32.totalorder %s22, 0
        %s188 = scalar_select %p187, %s22, 0
        %s189 = smul.addr %s188, 8
        %s190 = scalar_lea.vmem %s1, %s189
        %p191 = pneg %p76
        %p192 = pneg %p73
        %p193 = scmp.lt.s32.totalorder %s22, 0
        %s194 = scalar_select %p193, %s22, 0
        %s195 = scalar_lea.vmem %s2, %s194
        %p196 = pneg %p102
        %p197 = pneg %p99
        %p198 = pneg %p130
        %p199 = pneg %p127
        %s200 = sand.u32 %s117, 1
        %s201 = scalar_lea.sflag [#allocation3], %s200
        %s202 = sand.u32 %s117, 1
        %s203 = smul.addr %s202, 256
        %s204 = scalar_lea.vmem [#allocation2], %s203
        %s205 = smul.u32 32, %s21
        %p206 = scmp.lt.s32.totalorder %s205, 255
        %s207 = scalar_select %p206, %s205, 255
        %s208 = smul.addr %s207, 2
        %s209 = smul.addr %s208, 8
        %s210 = scalar_lea.vmem %s0, %s209
        %s211 = smul.u32 32, %s21
        %p212 = scmp.lt.s32.totalorder %s22, 0
        %s213 = scalar_select %p212, %s22, 0
        %s214 = smul.addr %s213, 8
        %s215 = scalar_lea.vmem %s1, %s214
        %p216 = scmp.lt.s32.totalorder %s22, 0
        %s217 = scalar_select %p216, %s22, 0
        %s218 = scalar_lea.vmem %s2, %s217
        %s219 = smul.u32 32, %s21
        %v220 = vld [vmem:[%s210] sm:$0xff]
        %v221 = vld [vmem:[%s210 + $0x8] sm:$0xff]
        %v222 = vld [vmem:[%s210 + $0x10] sm:$0xff]
        %v223 = vld [vmem:[%s210 + $0x18] sm:$0xff]
        %v224 = vld [vmem:[%s210 + $0x20] sm:$0xff]
        %v225 = vld [vmem:[%s210 + $0x28] sm:$0xff]
        %v226 = vld [vmem:[%s210 + $0x30] sm:$0xff]
        %v227 = vld [vmem:[%s210 + $0x38] sm:$0xff]
        %v228 = vld [vmem:[%s210 + $0x40] sm:$0xff]
        %v229 = vld [vmem:[%s210 + $0x48] sm:$0xff]
        %v230 = vld [vmem:[%s210 + $0x50] sm:$0xff]
        %v231 = vld [vmem:[%s210 + $0x58] sm:$0xff]
        %v232 = vld [vmem:[%s210 + $0x60] sm:$0xff]
        %v233 = vld [vmem:[%s210 + $0x68] sm:$0xff]
        %v234 = vld [vmem:[%s210 + $0x70] sm:$0xff]
        %v235 = vld [vmem:[%s210 + $0x78] sm:$0xff]
        %v236 = vld [vmem:[%s210 + $0x80] sm:$0xff]
        %v237 = vld [vmem:[%s210 + $0x88] sm:$0xff]
        %v238 = vld [vmem:[%s210 + $0x90] sm:$0xff]
        %v239 = vld [vmem:[%s210 + $0x98] sm:$0xff]
        %v240 = vld [vmem:[%s210 + $0xa0] sm:$0xff]
        %v241 = vld [vmem:[%s210 + $0xa8] sm:$0xff]
        %v242 = vld [vmem:[%s210 + $0xb0] sm:$0xff]
        %v243 = vld [vmem:[%s210 + $0xb8] sm:$0xff]
        %v244 = vld [vmem:[%s210 + $0xc0] sm:$0xff]
        %v245 = vld [vmem:[%s210 + $0xc8] sm:$0xff]
        %v246 = vld [vmem:[%s210 + $0xd0] sm:$0xff]
        %v247 = vld [vmem:[%s210 + $0xd8] sm:$0xff]
        %v248 = vld [vmem:[%s210 + $0xe0] sm:$0xff]
        %v249 = vld [vmem:[%s210 + $0xe8] sm:$0xff]
        %v250 = vld [vmem:[%s210 + $0xf0] sm:$0xff]
        %v251 = vld [vmem:[%s210 + $0xf8] sm:$0xff]
        %v252 = vld [vmem:[%s210 + $0x100] sm:$0xff]
        %v253 = vld [vmem:[%s210 + $0x108] sm:$0xff]
        %v254 = vld [vmem:[%s210 + $0x110] sm:$0xff]
        %v255 = vld [vmem:[%s210 + $0x118] sm:$0xff]
        %v256 = vld [vmem:[%s210 + $0x120] sm:$0xff]
        %v257 = vld [vmem:[%s210 + $0x128] sm:$0xff]
        %v258 = vld [vmem:[%s210 + $0x130] sm:$0xff]
        %v259 = vld [vmem:[%s210 + $0x138] sm:$0xff]
        %v260 = vld [vmem:[%s210 + $0x140] sm:$0xff]
        %v261 = vld [vmem:[%s210 + $0x148] sm:$0xff]
        %v262 = vld [vmem:[%s210 + $0x150] sm:$0xff]
        %v263 = vld [vmem:[%s210 + $0x158] sm:$0xff]
        %v264 = vld [vmem:[%s210 + $0x160] sm:$0xff]
        %v265 = vld [vmem:[%s210 + $0x168] sm:$0xff]
        %v266 = vld [vmem:[%s210 + $0x170] sm:$0xff]
        %v267 = vld [vmem:[%s210 + $0x178] sm:$0xff]
        %v268 = vld [vmem:[%s210 + $0x180] sm:$0xff]
        %v269 = vld [vmem:[%s210 + $0x188] sm:$0xff]
        %v270 = vld [vmem:[%s210 + $0x190] sm:$0xff]
        %v271 = vld [vmem:[%s210 + $0x198] sm:$0xff]
        %v272 = vld [vmem:[%s210 + $0x1a0] sm:$0xff]
        %v273 = vld [vmem:[%s210 + $0x1a8] sm:$0xff]
        %v274 = vld [vmem:[%s210 + $0x1b0] sm:$0xff]
        %v275 = vld [vmem:[%s210 + $0x1b8] sm:$0xff]
        %v276 = vld [vmem:[%s210 + $0x1c0] sm:$0xff]
        %v277 = vld [vmem:[%s210 + $0x1c8] sm:$0xff]
        %v278 = vld [vmem:[%s210 + $0x1d0] sm:$0xff]
        %v279 = vld [vmem:[%s210 + $0x1d8] sm:$0xff]
        %v280 = vld [vmem:[%s210 + $0x1e0] sm:$0xff]
        %v281 = vld [vmem:[%s210 + $0x1e8] sm:$0xff]
        %v282 = vld [vmem:[%s210 + $0x1f0] sm:$0xff]
        %v283 = vld [vmem:[%s210 + $0x1f8] sm:$0xff]
        %v284 = vld [vmem:[%s215] sm:$0xff]
        %v285 = vld [vmem:[%s215 + $0x8] sm:$0xff]
        %v286 = vld [vmem:[%s215 + $0x10] sm:$0xff]
        %v287 = vld [vmem:[%s215 + $0x18] sm:$0xff]
        %v288 = vld [vmem:[%s215 + $0x20] sm:$0xff]
        %v289 = vld [vmem:[%s215 + $0x28] sm:$0xff]
        %v290 = vld [vmem:[%s215 + $0x30] sm:$0xff]
        %v291 = vld [vmem:[%s215 + $0x38] sm:$0xff]
        %v292 = vld [vmem:[%s215 + $0x40] sm:$0xff]
        %v293 = vld [vmem:[%s215 + $0x48] sm:$0xff]
        %v294 = vld [vmem:[%s215 + $0x50] sm:$0xff]
        %v295 = vld [vmem:[%s215 + $0x58] sm:$0xff]
        %v296 = vld [vmem:[%s215 + $0x60] sm:$0xff]
        %v297 = vld [vmem:[%s215 + $0x68] sm:$0xff]
        %v298 = vld [vmem:[%s215 + $0x70] sm:$0xff]
        %v299 = vld [vmem:[%s215 + $0x78] sm:$0xff]
        %v300 = vld [vmem:[%s215 + $0x80] sm:$0xff]
        %v301 = vld [vmem:[%s215 + $0x88] sm:$0xff]
        %v302 = vld [vmem:[%s215 + $0x90] sm:$0xff]
        %v303 = vld [vmem:[%s215 + $0x98] sm:$0xff]
        %v304 = vld [vmem:[%s215 + $0xa0] sm:$0xff]
        %v305 = vld [vmem:[%s215 + $0xa8] sm:$0xff]
        %v306 = vld [vmem:[%s215 + $0xb0] sm:$0xff]
        %v307 = vld [vmem:[%s215 + $0xb8] sm:$0xff]
        %v308 = vld [vmem:[%s215 + $0xc0] sm:$0xff]
        %v309 = vld [vmem:[%s215 + $0xc8] sm:$0xff]
        %v310 = vld [vmem:[%s215 + $0xd0] sm:$0xff]
        %v311 = vld [vmem:[%s215 + $0xd8] sm:$0xff]
        %v312 = vld [vmem:[%s215 + $0xe0] sm:$0xff]
        %v313 = vld [vmem:[%s215 + $0xe8] sm:$0xff]
        %v314 = vld [vmem:[%s215 + $0xf0] sm:$0xff]
        %v315 = vld [vmem:[%s215 + $0xf8] sm:$0xff]
        %v316 = vld [vmem:[%s218] sm:$0x1]
        %v318 = vlaneseq
        %v319 = vshrl.u32 %v318, 7
        %v320 = vsub.s32 0, %v319
        %v321 = vrot.slane %v316, %v320
        %323 = vmatprep.subr.mxu0 0.0
        %v324 = vand.u32 %v284, 4294901760
        %325 = vmatpush1.msra.mxu0 %v324
        %326 = vmatprep.subr.mxu0 0.0
        %v327 = vand.u32 %v285, 4294901760
        %328 = vmatpush1.msra.mxu0 %v327
        %329 = vmatprep.subr.mxu0 0.0
        %v330 = vand.u32 %v286, 4294901760
        %331 = vmatpush1.msra.mxu0 %v330
        %332 = vmatprep.subr.mxu0 0.0
        %v333 = vand.u32 %v287, 4294901760
        %334 = vmatpush1.msra.mxu0 %v333
        %335 = vmatprep.subr.mxu0 0.0
        %v336 = vand.u32 %v288, 4294901760
        %337 = vmatpush1.msra.mxu0 %v336
        %338 = vmatprep.subr.mxu0 0.0
        %v339 = vand.u32 %v289, 4294901760
        %340 = vmatpush1.msra.mxu0 %v339
        %341 = vmatprep.subr.mxu0 0.0
        %v342 = vand.u32 %v290, 4294901760
        %343 = vmatpush1.msra.mxu0 %v342
        %344 = vmatprep.subr.mxu0 0.0
        %v345 = vand.u32 %v291, 4294901760
        %346 = vmatpush1.msra.mxu0 %v345
        %347 = vmatprep.subr.mxu0 0.0
        %v348 = vand.u32 %v292, 4294901760
        %349 = vmatpush1.msra.mxu0 %v348
        %350 = vmatprep.subr.mxu0 0.0
        %v351 = vand.u32 %v293, 4294901760
        %352 = vmatpush1.msra.mxu0 %v351
        %353 = vmatprep.subr.mxu0 0.0
        %v354 = vand.u32 %v294, 4294901760
        %355 = vmatpush1.msra.mxu0 %v354
        %356 = vmatprep.subr.mxu0 0.0
        %v357 = vand.u32 %v295, 4294901760
        %358 = vmatpush1.msra.mxu0 %v357
        %359 = vmatprep.subr.mxu0 0.0
        %v360 = vand.u32 %v296, 4294901760
        %361 = vmatpush1.msra.mxu0 %v360
        %362 = vmatprep.subr.mxu0 0.0
        %v363 = vand.u32 %v297, 4294901760
        %364 = vmatpush1.msra.mxu0 %v363
        %365 = vmatprep.subr.mxu0 0.0
        %v366 = vand.u32 %v298, 4294901760
        %367 = vmatpush1.msra.mxu0 %v366
        %368 = vmatprep.subr.mxu0 0.0
        %v369 = vand.u32 %v299, 4294901760
        %370 = vmatpush1.msra.mxu0 %v369
        %371 = vmatprep.subr.mxu0 0.0
        %v372 = vand.u32 %v300, 4294901760
        %373 = vmatpush1.msra.mxu0 %v372
        %374 = vmatprep.subr.mxu0 0.0
        %v375 = vand.u32 %v301, 4294901760
        %376 = vmatpush1.msra.mxu0 %v375
        %377 = vmatprep.subr.mxu0 0.0
        %v378 = vand.u32 %v302, 4294901760
        %379 = vmatpush1.msra.mxu0 %v378
        %380 = vmatprep.subr.mxu0 0.0
        %v381 = vand.u32 %v303, 4294901760
        %382 = vmatpush1.msra.mxu0 %v381
        %383 = vmatprep.subr.mxu0 0.0
        %v384 = vand.u32 %v304, 4294901760
        %385 = vmatpush1.msra.mxu0 %v384
        %386 = vmatprep.subr.mxu0 0.0
        %v387 = vand.u32 %v305, 4294901760
        %388 = vmatpush1.msra.mxu0 %v387
        %389 = vmatprep.subr.mxu0 0.0
        %v390 = vand.u32 %v306, 4294901760
        %391 = vmatpush1.msra.mxu0 %v390
        %392 = vmatprep.subr.mxu0 0.0
        %v393 = vand.u32 %v307, 4294901760
        %394 = vmatpush1.msra.mxu0 %v393
        %395 = vmatprep.subr.mxu0 0.0
        %v396 = vand.u32 %v308, 4294901760
        %397 = vmatpush1.msra.mxu0 %v396
        %398 = vmatprep.subr.mxu0 0.0
        %v399 = vand.u32 %v309, 4294901760
        %400 = vmatpush1.msra.mxu0 %v399
        %401 = vmatprep.subr.mxu0 0.0
        %v402 = vand.u32 %v310, 4294901760
        %403 = vmatpush1.msra.mxu0 %v402
        %404 = vmatprep.subr.mxu0 0.0
        %v405 = vand.u32 %v311, 4294901760
        %406 = vmatpush1.msra.mxu0 %v405
        %407 = vmatprep.subr.mxu0 0.0
        %v408 = vand.u32 %v312, 4294901760
        %409 = vmatpush1.msra.mxu0 %v408
        %410 = vmatprep.subr.mxu0 0.0
        %v411 = vand.u32 %v313, 4294901760
        %412 = vmatpush1.msra.mxu0 %v411
        %413 = vmatprep.subr.mxu0 0.0
        %v414 = vand.u32 %v314, 4294901760
        %415 = vmatpush1.msra.mxu0 %v414
        %416 = vmatprep.subr.mxu0 0.0
        %v417 = vand.u32 %v315, 4294901760
        %418 = vmatpush1.msra.mxu0 %v417
        %v419 = vand.u32 %v221, 4294901760
        %v420 = vsub.f32 %v221, %v419
        %v421 = vand.u32 %v420, 4294901760
        %v422 = vsub.f32 %v420, %v421
        %v423 = vand.u32 %v422, 4294901760
        %424 = vmatprep.mubr.f32.mxu0 %v423
        %v425 = vand.u32 %v220, 4294901760
        %v426 = vsub.f32 %v220, %v425
        %v427 = vand.u32 %v426, 4294901760
        %v428 = vsub.f32 %v426, %v427
        %v429 = vand.u32 %v428, 4294901760
        %430 = vmatmul.mubr.f32.gmra.mrb[0].mxu0 %v429
        %v431 = vpop.f32.mrb[0].mxu0
        %v432 = vadd.f32 %v321, %v431
        %v433 = vpop.f32.mrb[0].mxu0
        %v434 = vand.u32 %v223, 4294901760
        %v435 = vsub.f32 %v223, %v434
        %v436 = vand.u32 %v435, 4294901760
        %v437 = vsub.f32 %v435, %v436
        %v438 = vand.u32 %v437, 4294901760
        %439 = vmatprep.mubr.f32.mxu0 %v438
        %v440 = vand.u32 %v222, 4294901760
        %v441 = vsub.f32 %v222, %v440
        %v442 = vand.u32 %v441, 4294901760
        %v443 = vsub.f32 %v441, %v442
        %v444 = vand.u32 %v443, 4294901760
        %445 = vmatmul.mubr.f32.gmra.mrb[0].mxu0 %v444
        %v446 = vpop.f32.mrb[0].mxu0
        %v447 = vadd.f32 %v321, %v446
        %v448 = vpop.f32.mrb[0].mxu0
        %v449 = vand.u32 %v225, 4294901760
        %v450 = vsub.f32 %v225, %v449
        %v451 = vand.u32 %v450, 4294901760
        %v452 = vsub.f32 %v450, %v451
        %v453 = vand.u32 %v452, 4294901760
        %454 = vmatprep.mubr.f32.mxu0 %v453
        %v455 = vand.u32 %v224, 4294901760
        %v456 = vsub.f32 %v224, %v455
        %v457 = vand.u32 %v456, 4294901760
        %v458 = vsub.f32 %v456, %v457
        %v459 = vand.u32 %v458, 4294901760
        %460 = vmatmul.mubr.f32.gmra.mrb[0].mxu0 %v459
        %v461 = vpop.f32.mrb[0].mxu0
        %v462 = vadd.f32 %v321, %v461
        %v463 = vpop.f32.mrb[0].mxu0
        %v464 = vand.u32 %v227, 4294901760
        %v465 = vsub.f32 %v227, %v464
        %v466 = vand.u32 %v465, 4294901760
        %v467 = vsub.f32 %v465, %v466
        %v468 = vand.u32 %v467, 4294901760
        %469 = vmatprep.mubr.f32.mxu0 %v468
        %v470 = vand.u32 %v226, 4294901760
        %v471 = vsub.f32 %v226, %v470
        %v472 = vand.u32 %v471, 4294901760
        %v473 = vsub.f32 %v471, %v472
        %v474 = vand.u32 %v473, 4294901760
        %475 = vmatmul.mubr.f32.gmra.mrb[0].mxu0 %v474
        %v476 = vpop.f32.mrb[0].mxu0
        %v477 = vadd.f32 %v321, %v476
        %v478 = vpop.f32.mrb[0].mxu0
        %v479 = vand.u32 %v229, 4294901760
        %v480 = vsub.f32 %v229, %v479
        %v481 = vand.u32 %v480, 4294901760
        %v482 = vsub.f32 %v480, %v481
        %v483 = vand.u32 %v482, 4294901760
        %484 = vmatprep.mubr.f32.mxu0 %v483
        %v485 = vand.u32 %v228, 4294901760
        %v486 = vsub.f32 %v228, %v485
        %v487 = vand.u32 %v486, 4294901760
        %v488 = vsub.f32 %v486, %v487
        %v489 = vand.u32 %v488, 4294901760
        %490 = vmatmul.mubr.f32.gmra.mrb[0].mxu0 %v489
        %v491 = vpop.f32.mrb[0].mxu0
        %v492 = vadd.f32 %v321, %v491
        %v493 = vpop.f32.mrb[0].mxu0
        %v494 = vand.u32 %v231, 4294901760
        %v495 = vsub.f32 %v231, %v494
        %v496 = vand.u32 %v495, 4294901760
        %v497 = vsub.f32 %v495, %v496
        %v498 = vand.u32 %v497, 4294901760
        %499 = vmatprep.mubr.f32.mxu0 %v498
        %v500 = vand.u32 %v230, 4294901760
        %v501 = vsub.f32 %v230, %v500
        %v502 = vand.u32 %v501, 4294901760
        %v503 = vsub.f32 %v501, %v502
        %v504 = vand.u32 %v503, 4294901760
        %505 = vmatmul.mubr.f32.gmra.mrb[0].mxu0 %v504
        %v506 = vpop.f32.mrb[0].mxu0
        %v507 = vadd.f32 %v321, %v506
        %v508 = vpop.f32.mrb[0].mxu0
        %v509 = vand.u32 %v233, 4294901760
        %v510 = vsub.f32 %v233, %v509
        %v511 = vand.u32 %v510, 4294901760
        %v512 = vsub.f32 %v510, %v511
        %v513 = vand.u32 %v512, 4294901760
        %514 = vmatprep.mubr.f32.mxu0 %v513
        %v515 = vand.u32 %v232, 4294901760
        %v516 = vsub.f32 %v232, %v515
        %v517 = vand.u32 %v516, 4294901760
        %v518 = vsub.f32 %v516, %v517
        %v519 = vand.u32 %v518, 4294901760
        %520 = vmatmul.mubr.f32.gmra.mrb[0].mxu0 %v519
        %v521 = vpop.f32.mrb[0].mxu0
        %v522 = vadd.f32 %v321, %v521
        %v523 = vpop.f32.mrb[0].mxu0
        %v524 = vand.u32 %v235, 4294901760
        %v525 = vsub.f32 %v235, %v524
        %v526 = vand.u32 %v525, 4294901760
        %v527 = vsub.f32 %v525, %v526
        %v528 = vand.u32 %v527, 4294901760
        %529 = vmatprep.mubr.f32.mxu0 %v528
        %v530 = vand.u32 %v234, 4294901760
        %v531 = vsub.f32 %v234, %v530
        %v532 = vand.u32 %v531, 4294901760
        %v533 = vsub.f32 %v531, %v532
        %v534 = vand.u32 %v533, 4294901760
        %535 = vmatmul.mubr.f32.gmra.mrb[0].mxu0 %v534
        %v536 = vpop.f32.mrb[0].mxu0
        %v537 = vadd.f32 %v321, %v536
        %v538 = vpop.f32.mrb[0].mxu0
        %v539 = vand.u32 %v237, 4294901760
        %v540 = vsub.f32 %v237, %v539
        %v541 = vand.u32 %v540, 4294901760
        %v542 = vsub.f32 %v540, %v541
        %v543 = vand.u32 %v542, 4294901760
        %544 = vmatprep.mubr.f32.mxu0 %v543
        %v545 = vand.u32 %v236, 4294901760
        %v546 = vsub.f32 %v236, %v545
        %v547 = vand.u32 %v546, 4294901760
        %v548 = vsub.f32 %v546, %v547
        %v549 = vand.u32 %v548, 4294901760
        %550 = vmatmul.mubr.f32.gmra.mrb[0].mxu0 %v549
        %v551 = vpop.f32.mrb[0].mxu0
        %v552 = vadd.f32 %v321, %v551
        %v553 = vpop.f32.mrb[0].mxu0
        %v554 = vand.u32 %v239, 4294901760
        %v555 = vsub.f32 %v239, %v554
        %v556 = vand.u32 %v555, 4294901760
        %v557 = vsub.f32 %v555, %v556
        %v558 = vand.u32 %v557, 4294901760
        %559 = vmatprep.mubr.f32.mxu0 %v558
        %v560 = vand.u32 %v238, 4294901760
        %v561 = vsub.f32 %v238, %v560
        %v562 = vand.u32 %v561, 4294901760
        %v563 = vsub.f32 %v561, %v562
        %v564 = vand.u32 %v563, 4294901760
        %565 = vmatmul.mubr.f32.gmra.mrb[0].mxu0 %v564
        %v566 = vpop.f32.mrb[0].mxu0
        %v567 = vadd.f32 %v321, %v566
        %v568 = vpop.f32.mrb[0].mxu0
        %v569 = vand.u32 %v241, 4294901760
        %v570 = vsub.f32 %v241, %v569
        %v571 = vand.u32 %v570, 4294901760
        %v572 = vsub.f32 %v570, %v571
        %v573 = vand.u32 %v572, 4294901760
        %574 = vmatprep.mubr.f32.mxu0 %v573
        %v575 = vand.u32 %v240, 4294901760
        %v576 = vsub.f32 %v240, %v575
        %v577 = vand.u32 %v576, 4294901760
        %v578 = vsub.f32 %v576, %v577
        %v579 = vand.u32 %v578, 4294901760
        %580 = vmatmul.mubr.f32.gmra.mrb[0].mxu0 %v579
        %v581 = vpop.f32.mrb[0].mxu0
        %v582 = vadd.f32 %v321, %v581
        %v583 = vpop.f32.mrb[0].mxu0
        %v584 = vand.u32 %v243, 4294901760
        %v585 = vsub.f32 %v243, %v584
        %v586 = vand.u32 %v585, 4294901760
        %v587 = vsub.f32 %v585, %v586
        %v588 = vand.u32 %v587, 4294901760
        %589 = vmatprep.mubr.f32.mxu0 %v588
        %v590 = vand.u32 %v242, 4294901760
        %v591 = vsub.f32 %v242, %v590
        %v592 = vand.u32 %v591, 4294901760
        %v593 = vsub.f32 %v591, %v592
        %v594 = vand.u32 %v593, 4294901760
        %595 = vmatmul.mubr.f32.gmra.mrb[0].mxu0 %v594
        %v596 = vpop.f32.mrb[0].mxu0
        %v597 = vadd.f32 %v321, %v596
        %v598 = vpop.f32.mrb[0].mxu0
        %v599 = vand.u32 %v245, 4294901760
        %v600 = vsub.f32 %v245, %v599
        %v601 = vand.u32 %v600, 4294901760
        %v602 = vsub.f32 %v600, %v601
        %v603 = vand.u32 %v602, 4294901760
        %604 = vmatprep.mubr.f32.mxu0 %v603
        %v605 = vand.u32 %v244, 4294901760
        %v606 = vsub.f32 %v244, %v605
        %v607 = vand.u32 %v606, 4294901760
        %v608 = vsub.f32 %v606, %v607
        %v609 = vand.u32 %v608, 4294901760
        %610 = vmatmul.mubr.f32.gmra.mrb[0].mxu0 %v609
        %v611 = vpop.f32.mrb[0].mxu0
        %v612 = vadd.f32 %v321, %v611
        %v613 = vpop.f32.mrb[0].mxu0
        %v614 = vand.u32 %v247, 4294901760
        %v615 = vsub.f32 %v247, %v614
        %v616 = vand.u32 %v615, 4294901760
        %v617 = vsub.f32 %v615, %v616
        %v618 = vand.u32 %v617, 4294901760
        %619 = vmatprep.mubr.f32.mxu0 %v618
        %v620 = vand.u32 %v246, 4294901760
        %v621 = vsub.f32 %v246, %v620
        %v622 = vand.u32 %v621, 4294901760
        %v623 = vsub.f32 %v621, %v622
        %v624 = vand.u32 %v623, 4294901760
        %625 = vmatmul.mubr.f32.gmra.mrb[0].mxu0 %v624
        %v626 = vpop.f32.mrb[0].mxu0
        %v627 = vadd.f32 %v321, %v626
        %v628 = vpop.f32.mrb[0].mxu0
        %v629 = vand.u32 %v249, 4294901760
        %v630 = vsub.f32 %v249, %v629
        %v631 = vand.u32 %v630, 4294901760
        %v632 = vsub.f32 %v630, %v631
        %v633 = vand.u32 %v632, 4294901760
        %634 = vmatprep.mubr.f32.mxu0 %v633
        %v635 = vand.u32 %v248, 4294901760
        %v636 = vsub.f32 %v248, %v635
        %v637 = vand.u32 %v636, 4294901760
        %v638 = vsub.f32 %v636, %v637
        %v639 = vand.u32 %v638, 4294901760
        %640 = vmatmul.mubr.f32.gmra.mrb[0].mxu0 %v639
        %v641 = vpop.f32.mrb[0].mxu0
        %v642 = vadd.f32 %v321, %v641
        %v643 = vpop.f32.mrb[0].mxu0
        %v644 = vand.u32 %v251, 4294901760
        %v645 = vsub.f32 %v251, %v644
        %v646 = vand.u32 %v645, 4294901760
        %v647 = vsub.f32 %v645, %v646
        %v648 = vand.u32 %v647, 4294901760
        %649 = vmatprep.mubr.f32.mxu0 %v648
        %v650 = vand.u32 %v250, 4294901760
        %v651 = vsub.f32 %v250, %v650
        %v652 = vand.u32 %v651, 4294901760
        %v653 = vsub.f32 %v651, %v652
        %v654 = vand.u32 %v653, 4294901760
        %655 = vmatmul.mubr.f32.gmra.mrb[0].mxu0 %v654
        %v656 = vpop.f32.mrb[0].mxu0
        %v657 = vadd.f32 %v321, %v656
        %v658 = vpop.f32.mrb[0].mxu0
        %v659 = vand.u32 %v253, 4294901760
        %v660 = vsub.f32 %v253, %v659
        %v661 = vand.u32 %v660, 4294901760
        %v662 = vsub.f32 %v660, %v661
        %v663 = vand.u32 %v662, 4294901760
        %664 = vmatprep.mubr.f32.mxu0 %v663
        %v665 = vand.u32 %v252, 4294901760
        %v666 = vsub.f32 %v252, %v665
        %v667 = vand.u32 %v666, 4294901760
        %v668 = vsub.f32 %v666, %v667
        %v669 = vand.u32 %v668, 4294901760
        %670 = vmatmul.mubr.f32.gmra.mrb[0].mxu0 %v669
        %v671 = vpop.f32.mrb[0].mxu0
        %v672 = vadd.f32 %v321, %v671
        %v673 = vpop.f32.mrb[0].mxu0
        %v674 = vand.u32 %v255, 4294901760
        %v675 = vsub.f32 %v255, %v674
        %v676 = vand.u32 %v675, 4294901760
        %v677 = vsub.f32 %v675, %v676
        %v678 = vand.u32 %v677, 4294901760
        %679 = vmatprep.mubr.f32.mxu0 %v678
        %v680 = vand.u32 %v254, 4294901760
        %v681 = vsub.f32 %v254, %v680
        %v682 = vand.u32 %v681, 4294901760
        %v683 = vsub.f32 %v681, %v682
        %v684 = vand.u32 %v683, 4294901760
        %685 = vmatmul.mubr.f32.gmra.mrb[0].mxu0 %v684
        %v686 = vpop.f32.mrb[0].mxu0
        %v687 = vadd.f32 %v321, %v686
        %v688 = vpop.f32.mrb[0].mxu0
        %v689 = vand.u32 %v257, 4294901760
        %v690 = vsub.f32 %v257, %v689
        %v691 = vand.u32 %v690, 4294901760
        %v692 = vsub.f32 %v690, %v691
        %v693 = vand.u32 %v692, 4294901760
        %694 = vmatprep.mubr.f32.mxu0 %v693
        %v695 = vand.u32 %v256, 4294901760
        %v696 = vsub.f32 %v256, %v695
        %v697 = vand.u32 %v696, 4294901760
        %v698 = vsub.f32 %v696, %v697
        %v699 = vand.u32 %v698, 4294901760
        %700 = vmatmul.mubr.f32.gmra.mrb[0].mxu0 %v699
        %v701 = vpop.f32.mrb[0].mxu0
        %v702 = vadd.f32 %v321, %v701
        %v703 = vpop.f32.mrb[0].mxu0
        %v704 = vand.u32 %v259, 4294901760
        %v705 = vsub.f32 %v259, %v704
        %v706 = vand.u32 %v705, 4294901760
        %v707 = vsub.f32 %v705, %v706
        %v708 = vand.u32 %v707, 4294901760
        %709 = vmatprep.mubr.f32.mxu0 %v708
        %v710 = vand.u32 %v258, 4294901760
        %v711 = vsub.f32 %v258, %v710
        %v712 = vand.u32 %v711, 4294901760
        %v713 = vsub.f32 %v711, %v712
        %v714 = vand.u32 %v713, 4294901760
        %715 = vmatmul.mubr.f32.gmra.mrb[0].mxu0 %v714
        %v716 = vpop.f32.mrb[0].mxu0
        %v717 = vadd.f32 %v321, %v716
        %v718 = vpop.f32.mrb[0].mxu0
        %v719 = vand.u32 %v261, 4294901760
        %v720 = vsub.f32 %v261, %v719
        %v721 = vand.u32 %v720, 4294901760
        %v722 = vsub.f32 %v720, %v721
        %v723 = vand.u32 %v722, 4294901760
        %724 = vmatprep.mubr.f32.mxu0 %v723
        %v725 = vand.u32 %v260, 4294901760
        %v726 = vsub.f32 %v260, %v725
        %v727 = vand.u32 %v726, 4294901760
        %v728 = vsub.f32 %v726, %v727
        %v729 = vand.u32 %v728, 4294901760
        %730 = vmatmul.mubr.f32.gmra.mrb[0].mxu0 %v729
        %v731 = vpop.f32.mrb[0].mxu0
        %v732 = vadd.f32 %v321, %v731
        %v733 = vpop.f32.mrb[0].mxu0
        %v734 = vand.u32 %v263, 4294901760
        %v735 = vsub.f32 %v263, %v734
        %v736 = vand.u32 %v735, 4294901760
        %v737 = vsub.f32 %v735, %v736
        %v738 = vand.u32 %v737, 4294901760
        %739 = vmatprep.mubr.f32.mxu0 %v738
        %v740 = vand.u32 %v262, 4294901760
        %v741 = vsub.f32 %v262, %v740
        %v742 = vand.u32 %v741, 4294901760
        %v743 = vsub.f32 %v741, %v742
        %v744 = vand.u32 %v743, 4294901760
        %745 = vmatmul.mubr.f32.gmra.mrb[0].mxu0 %v744
        %v746 = vpop.f32.mrb[0].mxu0
        %v747 = vadd.f32 %v321, %v746
        %v748 = vpop.f32.mrb[0].mxu0
        %v749 = vand.u32 %v265, 4294901760
        %v750 = vsub.f32 %v265, %v749
        %v751 = vand.u32 %v750, 4294901760
        %v752 = vsub.f32 %v750, %v751
        %v753 = vand.u32 %v752, 4294901760
        %754 = vmatprep.mubr.f32.mxu0 %v753
        %v755 = vand.u32 %v264, 4294901760
        %v756 = vsub.f32 %v264, %v755
        %v757 = vand.u32 %v756, 4294901760
        %v758 = vsub.f32 %v756, %v757
        %v759 = vand.u32 %v758, 4294901760
        %760 = vmatmul.mubr.f32.gmra.mrb[0].mxu0 %v759
        %v761 = vpop.f32.mrb[0].mxu0
        %v762 = vadd.f32 %v321, %v761
        %v763 = vpop.f32.mrb[0].mxu0
        %v764 = vand.u32 %v267, 4294901760
        %v765 = vsub.f32 %v267, %v764
        %v766 = vand.u32 %v765, 4294901760
        %v767 = vsub.f32 %v765, %v766
        %v768 = vand.u32 %v767, 4294901760
        %769 = vmatprep.mubr.f32.mxu0 %v768
        %v770 = vand.u32 %v266, 4294901760
        %v771 = vsub.f32 %v266, %v770
        %v772 = vand.u32 %v771, 4294901760
        %v773 = vsub.f32 %v771, %v772
        %v774 = vand.u32 %v773, 4294901760
        %775 = vmatmul.mubr.f32.gmra.mrb[0].mxu0 %v774
        %v776 = vpop.f32.mrb[0].mxu0
        %v777 = vadd.f32 %v321, %v776
        %v778 = vpop.f32.mrb[0].mxu0
        %v779 = vand.u32 %v269, 4294901760
        %v780 = vsub.f32 %v269, %v779
        %v781 = vand.u32 %v780, 4294901760
        %v782 = vsub.f32 %v780, %v781
        %v783 = vand.u32 %v782, 4294901760
        %784 = vmatprep.mubr.f32.mxu0 %v783
        %v785 = vand.u32 %v268, 4294901760
        %v786 = vsub.f32 %v268, %v785
        %v787 = vand.u32 %v786, 4294901760
        %v788 = vsub.f32 %v786, %v787
        %v789 = vand.u32 %v788, 4294901760
        %790 = vmatmul.mubr.f32.gmra.mrb[0].mxu0 %v789
        %v791 = vpop.f32.mrb[0].mxu0
        %v792 = vadd.f32 %v321, %v791
        %v793 = vpop.f32.mrb[0].mxu0
        %v794 = vand.u32 %v271, 4294901760
        %v795 = vsub.f32 %v271, %v794
        %v796 = vand.u32 %v795, 4294901760
        %v797 = vsub.f32 %v795, %v796
        %v798 = vand.u32 %v797, 4294901760
        %799 = vmatprep.mubr.f32.mxu0 %v798
        %v800 = vand.u32 %v270, 4294901760
        %v801 = vsub.f32 %v270, %v800
        %v802 = vand.u32 %v801, 4294901760
        %v803 = vsub.f32 %v801, %v802
        %v804 = vand.u32 %v803, 4294901760
        %805 = vmatmul.mubr.f32.gmra.mrb[0].mxu0 %v804
        %v806 = vpop.f32.mrb[0].mxu0
        %v807 = vadd.f32 %v321, %v806
        %v808 = vpop.f32.mrb[0].mxu0
        %v809 = vand.u32 %v273, 4294901760
        %v810 = vsub.f32 %v273, %v809
        %v811 = vand.u32 %v810, 4294901760
        %v812 = vsub.f32 %v810, %v811
        %v813 = vand.u32 %v812, 4294901760
        %814 = vmatprep.mubr.f32.mxu0 %v813
        %v815 = vand.u32 %v272, 4294901760
        %v816 = vsub.f32 %v272, %v815
        %v817 = vand.u32 %v816, 4294901760
        %v818 = vsub.f32 %v816, %v817
        %v819 = vand.u32 %v818, 4294901760
        %820 = vmatmul.mubr.f32.gmra.mrb[0].mxu0 %v819
        %v821 = vpop.f32.mrb[0].mxu0
        %v822 = vadd.f32 %v321, %v821
        %v823 = vpop.f32.mrb[0].mxu0
        %v824 = vand.u32 %v275, 4294901760
        %v825 = vsub.f32 %v275, %v824
        %v826 = vand.u32 %v825, 4294901760
        %v827 = vsub.f32 %v825, %v826
        %v828 = vand.u32 %v827, 4294901760
        %829 = vmatprep.mubr.f32.mxu0 %v828
        %v830 = vand.u32 %v274, 4294901760
        %v831 = vsub.f32 %v274, %v830
        %v832 = vand.u32 %v831, 4294901760
        %v833 = vsub.f32 %v831, %v832
        %v834 = vand.u32 %v833, 4294901760
        %835 = vmatmul.mubr.f32.gmra.mrb[0].mxu0 %v834
        %v836 = vpop.f32.mrb[0].mxu0
        %v837 = vadd.f32 %v321, %v836
        %v838 = vpop.f32.mrb[0].mxu0
        %v839 = vand.u32 %v277, 4294901760
        %v840 = vsub.f32 %v277, %v839
        %v841 = vand.u32 %v840, 4294901760
        %v842 = vsub.f32 %v840, %v841
        %v843 = vand.u32 %v842, 4294901760
        %844 = vmatprep.mubr.f32.mxu0 %v843
        %v845 = vand.u32 %v276, 4294901760
        %v846 = vsub.f32 %v276, %v845
        %v847 = vand.u32 %v846, 4294901760
        %v848 = vsub.f32 %v846, %v847
        %v849 = vand.u32 %v848, 4294901760
        %850 = vmatmul.mubr.f32.gmra.mrb[0].mxu0 %v849
        %v851 = vpop.f32.mrb[0].mxu0
        %v852 = vadd.f32 %v321, %v851
        %v853 = vpop.f32.mrb[0].mxu0
        %v854 = vand.u32 %v279, 4294901760
        %v855 = vsub.f32 %v279, %v854
        %v856 = vand.u32 %v855, 4294901760
        %v857 = vsub.f32 %v855, %v856
        %v858 = vand.u32 %v857, 4294901760
        %859 = vmatprep.mubr.f32.mxu0 %v858
        %v860 = vand.u32 %v278, 4294901760
        %v861 = vsub.f32 %v278, %v860
        %v862 = vand.u32 %v861, 4294901760
        %v863 = vsub.f32 %v861, %v862
        %v864 = vand.u32 %v863, 4294901760
        %865 = vmatmul.mubr.f32.gmra.mrb[0].mxu0 %v864
        %v866 = vpop.f32.mrb[0].mxu0
        %v867 = vadd.f32 %v321, %v866
        %v868 = vpop.f32.mrb[0].mxu0
        %v869 = vand.u32 %v281, 4294901760
        %v870 = vsub.f32 %v281, %v869
        %v871 = vand.u32 %v870, 4294901760
        %v872 = vsub.f32 %v870, %v871
        %v873 = vand.u32 %v872, 4294901760
        %874 = vmatprep.mubr.f32.mxu0 %v873
        %v875 = vand.u32 %v280, 4294901760
        %v876 = vsub.f32 %v280, %v875
        %v877 = vand.u32 %v876, 4294901760
        %v878 = vsub.f32 %v876, %v877
        %v879 = vand.u32 %v878, 4294901760
        %880 = vmatmul.mubr.f32.gmra.mrb[0].mxu0 %v879
        %v881 = vpop.f32.mrb[0].mxu0
        %v882 = vadd.f32 %v321, %v881
        %v883 = vpop.f32.mrb[0].mxu0
        %v884 = vand.u32 %v283, 4294901760
        %v885 = vsub.f32 %v283, %v884
        %v886 = vand.u32 %v885, 4294901760
        %v887 = vsub.f32 %v885, %v886
        %v888 = vand.u32 %v887, 4294901760
        %889 = vmatprep.mubr.f32.mxu0 %v888
        %v890 = vand.u32 %v282, 4294901760
        %v891 = vsub.f32 %v282, %v890
        %v892 = vand.u32 %v891, 4294901760
        %v893 = vsub.f32 %v891, %v892
        %v894 = vand.u32 %v893, 4294901760
        %895 = vmatmul.mubr.f32.gmra.mrb[0].mxu0 %v894
        %v896 = vpop.f32.mrb[0].mxu0
        %v897 = vadd.f32 %v321, %v896
        %v898 = vpop.f32.mrb[0].mxu0
        %899 = vdwg.mxu0
        %900 = vmatprep.subr.mxu0 0.0
        %v901 = vand.u32 %v284, 4294901760
        %v902 = vsub.f32 %v284, %v901
        %v903 = vand.u32 %v902, 4294901760
        %v904 = vsub.f32 %v902, %v903
        %v905 = vand.u32 %v904, 4294901760
        %906 = vmatpush1.msra.mxu0 %v905
        %907 = vmatprep.subr.mxu0 0.0
        %v908 = vand.u32 %v285, 4294901760
        %v909 = vsub.f32 %v285, %v908
        %v910 = vand.u32 %v909, 4294901760
        %v911 = vsub.f32 %v909, %v910
        %v912 = vand.u32 %v911, 4294901760
        %913 = vmatpush1.msra.mxu0 %v912
        %914 = vmatprep.subr.mxu0 0.0
        %v915 = vand.u32 %v286, 4294901760
        %v916 = vsub.f32 %v286, %v915
        %v917 = vand.u32 %v916, 4294901760
        %v918 = vsub.f32 %v916, %v917
        %v919 = vand.u32 %v918, 4294901760
        %920 = vmatpush1.msra.mxu0 %v919
        %921 = vmatprep.subr.mxu0 0.0
        %v922 = vand.u32 %v287, 4294901760
        %v923 = vsub.f32 %v287, %v922
        %v924 = vand.u32 %v923, 4294901760
        %v925 = vsub.f32 %v923, %v924
        %v926 = vand.u32 %v925, 4294901760
        %927 = vmatpush1.msra.mxu0 %v926
        %928 = vmatprep.subr.mxu0 0.0
        %v929 = vand.u32 %v288, 4294901760
        %v930 = vsub.f32 %v288, %v929
        %v931 = vand.u32 %v930, 4294901760
        %v932 = vsub.f32 %v930, %v931
        %v933 = vand.u32 %v932, 4294901760
        %934 = vmatpush1.msra.mxu0 %v933
        %935 = vmatprep.subr.mxu0 0.0
        %v936 = vand.u32 %v289, 4294901760
        %v937 = vsub.f32 %v289, %v936
        %v938 = vand.u32 %v937, 4294901760
        %v939 = vsub.f32 %v937, %v938
        %v940 = vand.u32 %v939, 4294901760
        %941 = vmatpush1.msra.mxu0 %v940
        %942 = vmatprep.subr.mxu0 0.0
        %v943 = vand.u32 %v290, 4294901760
        %v944 = vsub.f32 %v290, %v943
        %v945 = vand.u32 %v944, 4294901760
        %v946 = vsub.f32 %v944, %v945
        %v947 = vand.u32 %v946, 4294901760
        %948 = vmatpush1.msra.mxu0 %v947
        %949 = vmatprep.subr.mxu0 0.0
        %v950 = vand.u32 %v291, 4294901760
        %v951 = vsub.f32 %v291, %v950
        %v952 = vand.u32 %v951, 4294901760
        %v953 = vsub.f32 %v951, %v952
        %v954 = vand.u32 %v953, 4294901760
        %955 = vmatpush1.msra.mxu0 %v954
        %956 = vmatprep.subr.mxu0 0.0
        %v957 = vand.u32 %v292, 4294901760
        %v958 = vsub.f32 %v292, %v957
        %v959 = vand.u32 %v958, 4294901760
        %v960 = vsub.f32 %v958, %v959
        %v961 = vand.u32 %v960, 4294901760
        %962 = vmatpush1.msra.mxu0 %v961
        %963 = vmatprep.subr.mxu0 0.0
        %v964 = vand.u32 %v293, 4294901760
        %v965 = vsub.f32 %v293, %v964
        %v966 = vand.u32 %v965, 4294901760
        %v967 = vsub.f32 %v965, %v966
        %v968 = vand.u32 %v967, 4294901760
        %969 = vmatpush1.msra.mxu0 %v968
        %970 = vmatprep.subr.mxu0 0.0
        %v971 = vand.u32 %v294, 4294901760
        %v972 = vsub.f32 %v294, %v971
        %v973 = vand.u32 %v972, 4294901760
        %v974 = vsub.f32 %v972, %v973
        %v975 = vand.u32 %v974, 4294901760
        %976 = vmatpush1.msra.mxu0 %v975
        %977 = vmatprep.subr.mxu0 0.0
        %v978 = vand.u32 %v295, 4294901760
        %v979 = vsub.f32 %v295, %v978
        %v980 = vand.u32 %v979, 4294901760
        %v981 = vsub.f32 %v979, %v980
        %v982 = vand.u32 %v981, 4294901760
        %983 = vmatpush1.msra.mxu0 %v982
        %984 = vmatprep.subr.mxu0 0.0
        %v985 = vand.u32 %v296, 4294901760
        %v986 = vsub.f32 %v296, %v985
        %v987 = vand.u32 %v986, 4294901760
        %v988 = vsub.f32 %v986, %v987
        %v989 = vand.u32 %v988, 4294901760
        %990 = vmatpush1.msra.mxu0 %v989
        %991 = vmatprep.subr.mxu0 0.0
        %v992 = vand.u32 %v297, 4294901760
        %v993 = vsub.f32 %v297, %v992
        %v994 = vand.u32 %v993, 4294901760
        %v995 = vsub.f32 %v993, %v994
        %v996 = vand.u32 %v995, 4294901760
        %997 = vmatpush1.msra.mxu0 %v996
        %998 = vmatprep.subr.mxu0 0.0
        %v999 = vand.u32 %v298, 4294901760
        %v1000 = vsub.f32 %v298, %v999
        %v1001 = vand.u32 %v1000, 4294901760
        %v1002 = vsub.f32 %v1000, %v1001
        %v1003 = vand.u32 %v1002, 4294901760
        %1004 = vmatpush1.msra.mxu0 %v1003
        %1005 = vmatprep.subr.mxu0 0.0
        %v1006 = vand.u32 %v299, 4294901760
        %v1007 = vsub.f32 %v299, %v1006
        %v1008 = vand.u32 %v1007, 4294901760
        %v1009 = vsub.f32 %v1007, %v1008
        %v1010 = vand.u32 %v1009, 4294901760
        %1011 = vmatpush1.msra.mxu0 %v1010
        %1012 = vmatprep.subr.mxu0 0.0
        %v1013 = vand.u32 %v300, 4294901760
        %v1014 = vsub.f32 %v300, %v1013
        %v1015 = vand.u32 %v1014, 4294901760
        %v1016 = vsub.f32 %v1014, %v1015
        %v1017 = vand.u32 %v1016, 4294901760
        %1018 = vmatpush1.msra.mxu0 %v1017
        %1019 = vmatprep.subr.mxu0 0.0
        %v1020 = vand.u32 %v301, 4294901760
        %v1021 = vsub.f32 %v301, %v1020
        %v1022 = vand.u32 %v1021, 4294901760
        %v1023 = vsub.f32 %v1021, %v1022
        %v1024 = vand.u32 %v1023, 4294901760
        %1025 = vmatpush1.msra.mxu0 %v1024
        %1026 = vmatprep.subr.mxu0 0.0
        %v1027 = vand.u32 %v302, 4294901760
        %v1028 = vsub.f32 %v302, %v1027
        %v1029 = vand.u32 %v1028, 4294901760
        %v1030 = vsub.f32 %v1028, %v1029
        %v1031 = vand.u32 %v1030, 4294901760
        %1032 = vmatpush1.msra.mxu0 %v1031
        %1033 = vmatprep.subr.mxu0 0.0
        %v1034 = vand.u32 %v303, 4294901760
        %v1035 = vsub.f32 %v303, %v1034
        %v1036 = vand.u32 %v1035, 4294901760
        %v1037 = vsub.f32 %v1035, %v1036
        %v1038 = vand.u32 %v1037, 4294901760
        %1039 = vmatpush1.msra.mxu0 %v1038
        %1040 = vmatprep.subr.mxu0 0.0
        %v1041 = vand.u32 %v304, 4294901760
        %v1042 = vsub.f32 %v304, %v1041
        %v1043 = vand.u32 %v1042, 4294901760
        %v1044 = vsub.f32 %v1042, %v1043
        %v1045 = vand.u32 %v1044, 4294901760
        %1046 = vmatpush1.msra.mxu0 %v1045
        %1047 = vmatprep.subr.mxu0 0.0
        %v1048 = vand.u32 %v305, 4294901760
        %v1049 = vsub.f32 %v305, %v1048
        %v1050 = vand.u32 %v1049, 4294901760
        %v1051 = vsub.f32 %v1049, %v1050
        %v1052 = vand.u32 %v1051, 4294901760
        %1053 = vmatpush1.msra.mxu0 %v1052
        %1054 = vmatprep.subr.mxu0 0.0
        %v1055 = vand.u32 %v306, 4294901760
        %v1056 = vsub.f32 %v306, %v1055
        %v1057 = vand.u32 %v1056, 4294901760
        %v1058 = vsub.f32 %v1056, %v1057
        %v1059 = vand.u32 %v1058, 4294901760
        %1060 = vmatpush1.msra.mxu0 %v1059
        %1061 = vmatprep.subr.mxu0 0.0
        %v1062 = vand.u32 %v307, 4294901760
        %v1063 = vsub.f32 %v307, %v1062
        %v1064 = vand.u32 %v1063, 4294901760
        %v1065 = vsub.f32 %v1063, %v1064
        %v1066 = vand.u32 %v1065, 4294901760
        %1067 = vmatpush1.msra.mxu0 %v1066
        %1068 = vmatprep.subr.mxu0 0.0
        %v1069 = vand.u32 %v308, 4294901760
        %v1070 = vsub.f32 %v308, %v1069
        %v1071 = vand.u32 %v1070, 4294901760
        %v1072 = vsub.f32 %v1070, %v1071
        %v1073 = vand.u32 %v1072, 4294901760
        %1074 = vmatpush1.msra.mxu0 %v1073
        %1075 = vmatprep.subr.mxu0 0.0
        %v1076 = vand.u32 %v309, 4294901760
        %v1077 = vsub.f32 %v309, %v1076
        %v1078 = vand.u32 %v1077, 4294901760
        %v1079 = vsub.f32 %v1077, %v1078
        %v1080 = vand.u32 %v1079, 4294901760
        %1081 = vmatpush1.msra.mxu0 %v1080
        %1082 = vmatprep.subr.mxu0 0.0
        %v1083 = vand.u32 %v310, 4294901760
        %v1084 = vsub.f32 %v310, %v1083
        %v1085 = vand.u32 %v1084, 4294901760
        %v1086 = vsub.f32 %v1084, %v1085
        %v1087 = vand.u32 %v1086, 4294901760
        %1088 = vmatpush1.msra.mxu0 %v1087
        %1089 = vmatprep.subr.mxu0 0.0
        %v1090 = vand.u32 %v311, 4294901760
        %v1091 = vsub.f32 %v311, %v1090
        %v1092 = vand.u32 %v1091, 4294901760
        %v1093 = vsub.f32 %v1091, %v1092
        %v1094 = vand.u32 %v1093, 4294901760
        %1095 = vmatpush1.msra.mxu0 %v1094
        %1096 = vmatprep.subr.mxu0 0.0
        %v1097 = vand.u32 %v312, 4294901760
        %v1098 = vsub.f32 %v312, %v1097
        %v1099 = vand.u32 %v1098, 4294901760
        %v1100 = vsub.f32 %v1098, %v1099
        %v1101 = vand.u32 %v1100, 4294901760
        %1102 = vmatpush1.msra.mxu0 %v1101
        %1103 = vmatprep.subr.mxu0 0.0
        %v1104 = vand.u32 %v313, 4294901760
        %v1105 = vsub.f32 %v313, %v1104
        %v1106 = vand.u32 %v1105, 4294901760
        %v1107 = vsub.f32 %v1105, %v1106
        %v1108 = vand.u32 %v1107, 4294901760
        %1109 = vmatpush1.msra.mxu0 %v1108
        %1110 = vmatprep.subr.mxu0 0.0
        %v1111 = vand.u32 %v314, 4294901760
        %v1112 = vsub.f32 %v314, %v1111
        %v1113 = vand.u32 %v1112, 4294901760
        %v1114 = vsub.f32 %v1112, %v1113
        %v1115 = vand.u32 %v1114, 4294901760
        %1116 = vmatpush1.msra.mxu0 %v1115
        %1117 = vmatprep.subr.mxu0 0.0
        %v1118 = vand.u32 %v315, 4294901760
        %v1119 = vsub.f32 %v315, %v1118
        %v1120 = vand.u32 %v1119, 4294901760
        %v1121 = vsub.f32 %v1119, %v1120
        %v1122 = vand.u32 %v1121, 4294901760
        %1123 = vmatpush1.msra.mxu0 %v1122
        %v1124 = vand.u32 %v221, 4294901760
        %1125 = vmatprep.mubr.f32.mxu0 %v1124
        %v1126 = vand.u32 %v220, 4294901760
        %1127 = vmatmul.mubr.f32.gmra.mrb[0].mxu0 %v1126
        %v1128 = vpop.f32.mrb[0].mxu0
        %v1129 = vadd.f32 %v432, %v1128
        %v1130 = vpop.f32.mrb[0].mxu0
        %v1131 = vand.u32 %v223, 4294901760
        %1132 = vmatprep.mubr.f32.mxu0 %v1131
        %v1133 = vand.u32 %v222, 4294901760
        %1134 = vmatmul.mubr.f32.gmra.mrb[0].mxu0 %v1133
        %v1135 = vpop.f32.mrb[0].mxu0
        %v1136 = vadd.f32 %v447, %v1135
        %v1137 = vpop.f32.mrb[0].mxu0
        %v1138 = vand.u32 %v225, 4294901760
        %1139 = vmatprep.mubr.f32.mxu0 %v1138
        %v1140 = vand.u32 %v224, 4294901760
        %1141 = vmatmul.mubr.f32.gmra.mrb[0].mxu0 %v1140
        %v1142 = vpop.f32.mrb[0].mxu0
        %v1143 = vadd.f32 %v462, %v1142
        %v1144 = vpop.f32.mrb[0].mxu0
        %v1145 = vand.u32 %v227, 4294901760
        %1146 = vmatprep.mubr.f32.mxu0 %v1145
        %v1147 = vand.u32 %v226, 4294901760
        %1148 = vmatmul.mubr.f32.gmra.mrb[0].mxu0 %v1147
        %v1149 = vpop.f32.mrb[0].mxu0
        %v1150 = vadd.f32 %v477, %v1149
        %v1151 = vpop.f32.mrb[0].mxu0
        %v1152 = vand.u32 %v229, 4294901760
        %1153 = vmatprep.mubr.f32.mxu0 %v1152
        %v1154 = vand.u32 %v228, 4294901760
        %1155 = vmatmul.mubr.f32.gmra.mrb[0].mxu0 %v1154
        %v1156 = vpop.f32.mrb[0].mxu0
        %v1157 = vadd.f32 %v492, %v1156
        %v1158 = vpop.f32.mrb[0].mxu0
        %v1159 = vand.u32 %v231, 4294901760
        %1160 = vmatprep.mubr.f32.mxu0 %v1159
        %v1161 = vand.u32 %v230, 4294901760
        %1162 = vmatmul.mubr.f32.gmra.mrb[0].mxu0 %v1161
        %v1163 = vpop.f32.mrb[0].mxu0
        %v1164 = vadd.f32 %v507, %v1163
        %v1165 = vpop.f32.mrb[0].mxu0
        %v1166 = vand.u32 %v233, 4294901760
        %1167 = vmatprep.mubr.f32.mxu0 %v1166
        %v1168 = vand.u32 %v232, 4294901760
        %1169 = vmatmul.mubr.f32.gmra.mrb[0].mxu0 %v1168
        %v1170 = vpop.f32.mrb[0].mxu0
        %v1171 = vadd.f32 %v522, %v1170
        %v1172 = vpop.f32.mrb[0].mxu0
        %v1173 = vand.u32 %v235, 4294901760
        %1174 = vmatprep.mubr.f32.mxu0 %v1173
        %v1175 = vand.u32 %v234, 4294901760
        %1176 = vmatmul.mubr.f32.gmra.mrb[0].mxu0 %v1175
        %v1177 = vpop.f32.mrb[0].mxu0
        %v1178 = vadd.f32 %v537, %v1177
        %v1179 = vpop.f32.mrb[0].mxu0
        %v1180 = vand.u32 %v237, 4294901760
        %1181 = vmatprep.mubr.f32.mxu0 %v1180
        %v1182 = vand.u32 %v236, 4294901760
        %1183 = vmatmul.mubr.f32.gmra.mrb[0].mxu0 %v1182
        %v1184 = vpop.f32.mrb[0].mxu0
        %v1185 = vadd.f32 %v552, %v1184
        %v1186 = vpop.f32.mrb[0].mxu0
        %v1187 = vand.u32 %v239, 4294901760
        %1188 = vmatprep.mubr.f32.mxu0 %v1187
        %v1189 = vand.u32 %v238, 4294901760
        %1190 = vmatmul.mubr.f32.gmra.mrb[0].mxu0 %v1189
        %v1191 = vpop.f32.mrb[0].mxu0
        %v1192 = vadd.f32 %v567, %v1191
        %v1193 = vpop.f32.mrb[0].mxu0
        %v1194 = vand.u32 %v241, 4294901760
        %1195 = vmatprep.mubr.f32.mxu0 %v1194
        %v1196 = vand.u32 %v240, 4294901760
        %1197 = vmatmul.mubr.f32.gmra.mrb[0].mxu0 %v1196
        %v1198 = vpop.f32.mrb[0].mxu0
        %v1199 = vadd.f32 %v582, %v1198
        %v1200 = vpop.f32.mrb[0].mxu0
        %v1201 = vand.u32 %v243, 4294901760
        %1202 = vmatprep.mubr.f32.mxu0 %v1201
        %v1203 = vand.u32 %v242, 4294901760
        %1204 = vmatmul.mubr.f32.gmra.mrb[0].mxu0 %v1203
        %v1205 = vpop.f32.mrb[0].mxu0
        %v1206 = vadd.f32 %v597, %v1205
        %v1207 = vpop.f32.mrb[0].mxu0
        %v1208 = vand.u32 %v245, 4294901760
        %1209 = vmatprep.mubr.f32.mxu0 %v1208
        %v1210 = vand.u32 %v244, 4294901760
        %1211 = vmatmul.mubr.f32.gmra.mrb[0].mxu0 %v1210
        %v1212 = vpop.f32.mrb[0].mxu0
        %v1213 = vadd.f32 %v612, %v1212
        %v1214 = vpop.f32.mrb[0].mxu0
        %v1215 = vand.u32 %v247, 4294901760
        %1216 = vmatprep.mubr.f32.mxu0 %v1215
        %v1217 = vand.u32 %v246, 4294901760
        %1218 = vmatmul.mubr.f32.gmra.mrb[0].mxu0 %v1217
        %v1219 = vpop.f32.mrb[0].mxu0
        %v1220 = vadd.f32 %v627, %v1219
        %v1221 = vpop.f32.mrb[0].mxu0
        %v1222 = vand.u32 %v249, 4294901760
        %1223 = vmatprep.mubr.f32.mxu0 %v1222
        %v1224 = vand.u32 %v248, 4294901760
        %1225 = vmatmul.mubr.f32.gmra.mrb[0].mxu0 %v1224
        %v1226 = vpop.f32.mrb[0].mxu0
        %v1227 = vadd.f32 %v642, %v1226
        %v1228 = vpop.f32.mrb[0].mxu0
        %v1229 = vand.u32 %v251, 4294901760
        %1230 = vmatprep.mubr.f32.mxu0 %v1229
        %v1231 = vand.u32 %v250, 4294901760
        %1232 = vmatmul.mubr.f32.gmra.mrb[0].mxu0 %v1231
        %v1233 = vpop.f32.mrb[0].mxu0
        %v1234 = vadd.f32 %v657, %v1233
        %v1235 = vpop.f32.mrb[0].mxu0
        %v1236 = vand.u32 %v253, 4294901760
        %1237 = vmatprep.mubr.f32.mxu0 %v1236
        %v1238 = vand.u32 %v252, 4294901760
        %1239 = vmatmul.mubr.f32.gmra.mrb[0].mxu0 %v1238
        %v1240 = vpop.f32.mrb[0].mxu0
        %v1241 = vadd.f32 %v672, %v1240
        %v1242 = vpop.f32.mrb[0].mxu0
        %v1243 = vand.u32 %v255, 4294901760
        %1244 = vmatprep.mubr.f32.mxu0 %v1243
        %v1245 = vand.u32 %v254, 4294901760
        %1246 = vmatmul.mubr.f32.gmra.mrb[0].mxu0 %v1245
        %v1247 = vpop.f32.mrb[0].mxu0
        %v1248 = vadd.f32 %v687, %v1247
        %v1249 = vpop.f32.mrb[0].mxu0
        %v1250 = vand.u32 %v257, 4294901760
        %1251 = vmatprep.mubr.f32.mxu0 %v1250
        %v1252 = vand.u32 %v256, 4294901760
        %1253 = vmatmul.mubr.f32.gmra.mrb[0].mxu0 %v1252
        %v1254 = vpop.f32.mrb[0].mxu0
        %v1255 = vadd.f32 %v702, %v1254
        %v1256 = vpop.f32.mrb[0].mxu0
        %v1257 = vand.u32 %v259, 4294901760
        %1258 = vmatprep.mubr.f32.mxu0 %v1257
        %v1259 = vand.u32 %v258, 4294901760
        %1260 = vmatmul.mubr.f32.gmra.mrb[0].mxu0 %v1259
        %v1261 = vpop.f32.mrb[0].mxu0
        %v1262 = vadd.f32 %v717, %v1261
        %v1263 = vpop.f32.mrb[0].mxu0
        %v1264 = vand.u32 %v261, 4294901760
        %1265 = vmatprep.mubr.f32.mxu0 %v1264
        %v1266 = vand.u32 %v260, 4294901760
        %1267 = vmatmul.mubr.f32.gmra.mrb[0].mxu0 %v1266
        %v1268 = vpop.f32.mrb[0].mxu0
        %v1269 = vadd.f32 %v732, %v1268
        %v1270 = vpop.f32.mrb[0].mxu0
        %v1271 = vand.u32 %v263, 4294901760
        %1272 = vmatprep.mubr.f32.mxu0 %v1271
        %v1273 = vand.u32 %v262, 4294901760
        %1274 = vmatmul.mubr.f32.gmra.mrb[0].mxu0 %v1273
        %v1275 = vpop.f32.mrb[0].mxu0
        %v1276 = vadd.f32 %v747, %v1275
        %v1277 = vpop.f32.mrb[0].mxu0
        %v1278 = vand.u32 %v265, 4294901760
        %1279 = vmatprep.mubr.f32.mxu0 %v1278
        %v1280 = vand.u32 %v264, 4294901760
        %1281 = vmatmul.mubr.f32.gmra.mrb[0].mxu0 %v1280
        %v1282 = vpop.f32.mrb[0].mxu0
        %v1283 = vadd.f32 %v762, %v1282
        %v1284 = vpop.f32.mrb[0].mxu0
        %v1285 = vand.u32 %v267, 4294901760
        %1286 = vmatprep.mubr.f32.mxu0 %v1285
        %v1287 = vand.u32 %v266, 4294901760
        %1288 = vmatmul.mubr.f32.gmra.mrb[0].mxu0 %v1287
        %v1289 = vpop.f32.mrb[0].mxu0
        %v1290 = vadd.f32 %v777, %v1289
        %v1291 = vpop.f32.mrb[0].mxu0
        %v1292 = vand.u32 %v269, 4294901760
        %1293 = vmatprep.mubr.f32.mxu0 %v1292
        %v1294 = vand.u32 %v268, 4294901760
        %1295 = vmatmul.mubr.f32.gmra.mrb[0].mxu0 %v1294
        %v1296 = vpop.f32.mrb[0].mxu0
        %v1297 = vadd.f32 %v792, %v1296
        %v1298 = vpop.f32.mrb[0].mxu0
        %v1299 = vand.u32 %v271, 4294901760
        %1300 = vmatprep.mubr.f32.mxu0 %v1299
        %v1301 = vand.u32 %v270, 4294901760
        %1302 = vmatmul.mubr.f32.gmra.mrb[0].mxu0 %v1301
        %v1303 = vpop.f32.mrb[0].mxu0
        %v1304 = vadd.f32 %v807, %v1303
        %v1305 = vpop.f32.mrb[0].mxu0
        %v1306 = vand.u32 %v273, 4294901760
        %1307 = vmatprep.mubr.f32.mxu0 %v1306
        %v1308 = vand.u32 %v272, 4294901760
        %1309 = vmatmul.mubr.f32.gmra.mrb[0].mxu0 %v1308
        %v1310 = vpop.f32.mrb[0].mxu0
        %v1311 = vadd.f32 %v822, %v1310
        %v1312 = vpop.f32.mrb[0].mxu0
        %v1313 = vand.u32 %v275, 4294901760
        %1314 = vmatprep.mubr.f32.mxu0 %v1313
        %v1315 = vand.u32 %v274, 4294901760
        %1316 = vmatmul.mubr.f32.gmra.mrb[0].mxu0 %v1315
        %v1317 = vpop.f32.mrb[0].mxu0
        %v1318 = vadd.f32 %v837, %v1317
        %v1319 = vpop.f32.mrb[0].mxu0
        %v1320 = vand.u32 %v277, 4294901760
        %1321 = vmatprep.mubr.f32.mxu0 %v1320
        %v1322 = vand.u32 %v276, 4294901760
        %1323 = vmatmul.mubr.f32.gmra.mrb[0].mxu0 %v1322
        %v1324 = vpop.f32.mrb[0].mxu0
        %v1325 = vadd.f32 %v852, %v1324
        %v1326 = vpop.f32.mrb[0].mxu0
        %v1327 = vand.u32 %v279, 4294901760
        %1328 = vmatprep.mubr.f32.mxu0 %v1327
        %v1329 = vand.u32 %v278, 4294901760
        %1330 = vmatmul.mubr.f32.gmra.mrb[0].mxu0 %v1329
        %v1331 = vpop.f32.mrb[0].mxu0
        %v1332 = vadd.f32 %v867, %v1331
        %v1333 = vpop.f32.mrb[0].mxu0
        %v1334 = vand.u32 %v281, 4294901760
        %1335 = vmatprep.mubr.f32.mxu0 %v1334
        %v1336 = vand.u32 %v280, 4294901760
        %1337 = vmatmul.mubr.f32.gmra.mrb[0].mxu0 %v1336
        %v1338 = vpop.f32.mrb[0].mxu0
        %v1339 = vadd.f32 %v882, %v1338
        %v1340 = vpop.f32.mrb[0].mxu0
        %v1341 = vand.u32 %v283, 4294901760
        %1342 = vmatprep.mubr.f32.mxu0 %v1341
        %v1343 = vand.u32 %v282, 4294901760
        %1344 = vmatmul.mubr.f32.gmra.mrb[0].mxu0 %v1343
        %v1345 = vpop.f32.mrb[0].mxu0
        %v1346 = vadd.f32 %v897, %v1345
        %v1347 = vpop.f32.mrb[0].mxu0
        %1348 = vdwg.mxu0
        %1349 = vmatprep.subr.mxu0 0.0
        %v1350 = vand.u32 %v284, 4294901760
        %v1351 = vsub.f32 %v284, %v1350
        %1352 = vmatpush1.msra.mxu0 %v1351
        %1353 = vmatprep.subr.mxu0 0.0
        %v1354 = vand.u32 %v285, 4294901760
        %v1355 = vsub.f32 %v285, %v1354
        %1356 = vmatpush1.msra.mxu0 %v1355
        %1357 = vmatprep.subr.mxu0 0.0
        %v1358 = vand.u32 %v286, 4294901760
        %v1359 = vsub.f32 %v286, %v1358
        %1360 = vmatpush1.msra.mxu0 %v1359
        %1361 = vmatprep.subr.mxu0 0.0
        %v1362 = vand.u32 %v287, 4294901760
        %v1363 = vsub.f32 %v287, %v1362
        %1364 = vmatpush1.msra.mxu0 %v1363
        %1365 = vmatprep.subr.mxu0 0.0
        %v1366 = vand.u32 %v288, 4294901760
        %v1367 = vsub.f32 %v288, %v1366
        %1368 = vmatpush1.msra.mxu0 %v1367
        %1369 = vmatprep.subr.mxu0 0.0
        %v1370 = vand.u32 %v289, 4294901760
        %v1371 = vsub.f32 %v289, %v1370
        %1372 = vmatpush1.msra.mxu0 %v1371
        %1373 = vmatprep.subr.mxu0 0.0
        %v1374 = vand.u32 %v290, 4294901760
        %v1375 = vsub.f32 %v290, %v1374
        %1376 = vmatpush1.msra.mxu0 %v1375
        %1377 = vmatprep.subr.mxu0 0.0
        %v1378 = vand.u32 %v291, 4294901760
        %v1379 = vsub.f32 %v291, %v1378
        %1380 = vmatpush1.msra.mxu0 %v1379
        %1381 = vmatprep.subr.mxu0 0.0
        %v1382 = vand.u32 %v292, 4294901760
        %v1383 = vsub.f32 %v292, %v1382
        %1384 = vmatpush1.msra.mxu0 %v1383
        %1385 = vmatprep.subr.mxu0 0.0
        %v1386 = vand.u32 %v293, 4294901760
        %v1387 = vsub.f32 %v293, %v1386
        %1388 = vmatpush1.msra.mxu0 %v1387
        %1389 = vmatprep.subr.mxu0 0.0
        %v1390 = vand.u32 %v294, 4294901760
        %v1391 = vsub.f32 %v294, %v1390
        %1392 = vmatpush1.msra.mxu0 %v1391
        %1393 = vmatprep.subr.mxu0 0.0
        %v1394 = vand.u32 %v295, 4294901760
        %v1395 = vsub.f32 %v295, %v1394
        %1396 = vmatpush1.msra.mxu0 %v1395
        %1397 = vmatprep.subr.mxu0 0.0
        %v1398 = vand.u32 %v296, 4294901760
        %v1399 = vsub.f32 %v296, %v1398
        %1400 = vmatpush1.msra.mxu0 %v1399
        %1401 = vmatprep.subr.mxu0 0.0
        %v1402 = vand.u32 %v297, 4294901760
        %v1403 = vsub.f32 %v297, %v1402
        %1404 = vmatpush1.msra.mxu0 %v1403
        %1405 = vmatprep.subr.mxu0 0.0
        %v1406 = vand.u32 %v298, 4294901760
        %v1407 = vsub.f32 %v298, %v1406
        %1408 = vmatpush1.msra.mxu0 %v1407
        %1409 = vmatprep.subr.mxu0 0.0
        %v1410 = vand.u32 %v299, 4294901760
        %v1411 = vsub.f32 %v299, %v1410
        %1412 = vmatpush1.msra.mxu0 %v1411
        %1413 = vmatprep.subr.mxu0 0.0
        %v1414 = vand.u32 %v300, 4294901760
        %v1415 = vsub.f32 %v300, %v1414
        %1416 = vmatpush1.msra.mxu0 %v1415
        %1417 = vmatprep.subr.mxu0 0.0
        %v1418 = vand.u32 %v301, 4294901760
        %v1419 = vsub.f32 %v301, %v1418
        %1420 = vmatpush1.msra.mxu0 %v1419
        %1421 = vmatprep.subr.mxu0 0.0
        %v1422 = vand.u32 %v302, 4294901760
        %v1423 = vsub.f32 %v302, %v1422
        %1424 = vmatpush1.msra.mxu0 %v1423
        %1425 = vmatprep.subr.mxu0 0.0
        %v1426 = vand.u32 %v303, 4294901760
        %v1427 = vsub.f32 %v303, %v1426
        %1428 = vmatpush1.msra.mxu0 %v1427
        %1429 = vmatprep.subr.mxu0 0.0
        %v1430 = vand.u32 %v304, 4294901760
        %v1431 = vsub.f32 %v304, %v1430
        %1432 = vmatpush1.msra.mxu0 %v1431
        %1433 = vmatprep.subr.mxu0 0.0
        %v1434 = vand.u32 %v305, 4294901760
        %v1435 = vsub.f32 %v305, %v1434
        %1436 = vmatpush1.msra.mxu0 %v1435
        %1437 = vmatprep.subr.mxu0 0.0
        %v1438 = vand.u32 %v306, 4294901760
        %v1439 = vsub.f32 %v306, %v1438
        %1440 = vmatpush1.msra.mxu0 %v1439
        %1441 = vmatprep.subr.mxu0 0.0
        %v1442 = vand.u32 %v307, 4294901760
        %v1443 = vsub.f32 %v307, %v1442
        %1444 = vmatpush1.msra.mxu0 %v1443
        %1445 = vmatprep.subr.mxu0 0.0
        %v1446 = vand.u32 %v308, 4294901760
        %v1447 = vsub.f32 %v308, %v1446
        %1448 = vmatpush1.msra.mxu0 %v1447
        %1449 = vmatprep.subr.mxu0 0.0
        %v1450 = vand.u32 %v309, 4294901760
        %v1451 = vsub.f32 %v309, %v1450
        %1452 = vmatpush1.msra.mxu0 %v1451
        %1453 = vmatprep.subr.mxu0 0.0
        %v1454 = vand.u32 %v310, 4294901760
        %v1455 = vsub.f32 %v310, %v1454
        %1456 = vmatpush1.msra.mxu0 %v1455
        %1457 = vmatprep.subr.mxu0 0.0
        %v1458 = vand.u32 %v311, 4294901760
        %v1459 = vsub.f32 %v311, %v1458
        %1460 = vmatpush1.msra.mxu0 %v1459
        %1461 = vmatprep.subr.mxu0 0.0
        %v1462 = vand.u32 %v312, 4294901760
        %v1463 = vsub.f32 %v312, %v1462
        %1464 = vmatpush1.msra.mxu0 %v1463
        %1465 = vmatprep.subr.mxu0 0.0
        %v1466 = vand.u32 %v313, 4294901760
        %v1467 = vsub.f32 %v313, %v1466
        %1468 = vmatpush1.msra.mxu0 %v1467
        %1469 = vmatprep.subr.mxu0 0.0
        %v1470 = vand.u32 %v314, 4294901760
        %v1471 = vsub.f32 %v314, %v1470
        %1472 = vmatpush1.msra.mxu0 %v1471
        %1473 = vmatprep.subr.mxu0 0.0
        %v1474 = vand.u32 %v315, 4294901760
        %v1475 = vsub.f32 %v315, %v1474
        %1476 = vmatpush1.msra.mxu0 %v1475
        %v1477 = vand.u32 %v221, 4294901760
        %v1478 = vsub.f32 %v221, %v1477
        %1479 = vmatprep.mubr.f32.mxu0 %v1478
        %v1480 = vand.u32 %v220, 4294901760
        %v1481 = vsub.f32 %v220, %v1480
        %1482 = vmatmul.mubr.f32.gmra.mrb[0].mxu0 %v1481
        %v1483 = vpop.f32.mrb[0].mxu0
        %v1484 = vadd.f32 %v1129, %v1483
        %v1485 = vpop.f32.mrb[0].mxu0
        %v1486 = vand.u32 %v223, 4294901760
        %v1487 = vsub.f32 %v223, %v1486
        %1488 = vmatprep.mubr.f32.mxu0 %v1487
        %v1489 = vand.u32 %v222, 4294901760
        %v1490 = vsub.f32 %v222, %v1489
        %1491 = vmatmul.mubr.f32.gmra.mrb[0].mxu0 %v1490
        %v1492 = vpop.f32.mrb[0].mxu0
        %v1493 = vadd.f32 %v1136, %v1492
        %v1494 = vpop.f32.mrb[0].mxu0
        %v1495 = vand.u32 %v225, 4294901760
        %v1496 = vsub.f32 %v225, %v1495
        %1497 = vmatprep.mubr.f32.mxu0 %v1496
        %v1498 = vand.u32 %v224, 4294901760
        %v1499 = vsub.f32 %v224, %v1498
        %1500 = vmatmul.mubr.f32.gmra.mrb[0].mxu0 %v1499
        %v1501 = vpop.f32.mrb[0].mxu0
        %v1502 = vadd.f32 %v1143, %v1501
        %v1503 = vpop.f32.mrb[0].mxu0
        %v1504 = vand.u32 %v227, 4294901760
        %v1505 = vsub.f32 %v227, %v1504
        %1506 = vmatprep.mubr.f32.mxu0 %v1505
        %v1507 = vand.u32 %v226, 4294901760
        %v1508 = vsub.f32 %v226, %v1507
        %1509 = vmatmul.mubr.f32.gmra.mrb[0].mxu0 %v1508
        %v1510 = vpop.f32.mrb[0].mxu0
        %v1511 = vadd.f32 %v1150, %v1510
        %v1512 = vpop.f32.mrb[0].mxu0
        %v1513 = vand.u32 %v229, 4294901760
        %v1514 = vsub.f32 %v229, %v1513
        %1515 = vmatprep.mubr.f32.mxu0 %v1514
        %v1516 = vand.u32 %v228, 4294901760
        %v1517 = vsub.f32 %v228, %v1516
        %1518 = vmatmul.mubr.f32.gmra.mrb[0].mxu0 %v1517
        %v1519 = vpop.f32.mrb[0].mxu0
        %v1520 = vadd.f32 %v1157, %v1519
        %v1521 = vpop.f32.mrb[0].mxu0
        %v1522 = vand.u32 %v231, 4294901760
        %v1523 = vsub.f32 %v231, %v1522
        %1524 = vmatprep.mubr.f32.mxu0 %v1523
        %v1525 = vand.u32 %v230, 4294901760
        %v1526 = vsub.f32 %v230, %v1525
        %1527 = vmatmul.mubr.f32.gmra.mrb[0].mxu0 %v1526
        %v1528 = vpop.f32.mrb[0].mxu0
        %v1529 = vadd.f32 %v1164, %v1528
        %v1530 = vpop.f32.mrb[0].mxu0
        %v1531 = vand.u32 %v233, 4294901760
        %v1532 = vsub.f32 %v233, %v1531
        %1533 = vmatprep.mubr.f32.mxu0 %v1532
        %v1534 = vand.u32 %v232, 4294901760
        %v1535 = vsub.f32 %v232, %v1534
        %1536 = vmatmul.mubr.f32.gmra.mrb[0].mxu0 %v1535
        %v1537 = vpop.f32.mrb[0].mxu0
        %v1538 = vadd.f32 %v1171, %v1537
        %v1539 = vpop.f32.mrb[0].mxu0
        %v1540 = vand.u32 %v235, 4294901760
        %v1541 = vsub.f32 %v235, %v1540
        %1542 = vmatprep.mubr.f32.mxu0 %v1541
        %v1543 = vand.u32 %v234, 4294901760
        %v1544 = vsub.f32 %v234, %v1543
        %1545 = vmatmul.mubr.f32.gmra.mrb[0].mxu0 %v1544
        %v1546 = vpop.f32.mrb[0].mxu0
        %v1547 = vadd.f32 %v1178, %v1546
        %v1548 = vpop.f32.mrb[0].mxu0
        %v1549 = vand.u32 %v237, 4294901760
        %v1550 = vsub.f32 %v237, %v1549
        %1551 = vmatprep.mubr.f32.mxu0 %v1550
        %v1552 = vand.u32 %v236, 4294901760
        %v1553 = vsub.f32 %v236, %v1552
        %1554 = vmatmul.mubr.f32.gmra.mrb[0].mxu0 %v1553
        %v1555 = vpop.f32.mrb[0].mxu0
        %v1556 = vadd.f32 %v1185, %v1555
        %v1557 = vpop.f32.mrb[0].mxu0
        %v1558 = vand.u32 %v239, 4294901760
        %v1559 = vsub.f32 %v239, %v1558
        %1560 = vmatprep.mubr.f32.mxu0 %v1559
        %v1561 = vand.u32 %v238, 4294901760
        %v1562 = vsub.f32 %v238, %v1561
        %1563 = vmatmul.mubr.f32.gmra.mrb[0].mxu0 %v1562
        %v1564 = vpop.f32.mrb[0].mxu0
        %v1565 = vadd.f32 %v1192, %v1564
        %v1566 = vpop.f32.mrb[0].mxu0
        %v1567 = vand.u32 %v241, 4294901760
        %v1568 = vsub.f32 %v241, %v1567
        %1569 = vmatprep.mubr.f32.mxu0 %v1568
        %v1570 = vand.u32 %v240, 4294901760
        %v1571 = vsub.f32 %v240, %v1570
        %1572 = vmatmul.mubr.f32.gmra.mrb[0].mxu0 %v1571
        %v1573 = vpop.f32.mrb[0].mxu0
        %v1574 = vadd.f32 %v1199, %v1573
        %v1575 = vpop.f32.mrb[0].mxu0
        %v1576 = vand.u32 %v243, 4294901760
        %v1577 = vsub.f32 %v243, %v1576
        %1578 = vmatprep.mubr.f32.mxu0 %v1577
        %v1579 = vand.u32 %v242, 4294901760
        %v1580 = vsub.f32 %v242, %v1579
        %1581 = vmatmul.mubr.f32.gmra.mrb[0].mxu0 %v1580
        %v1582 = vpop.f32.mrb[0].mxu0
        %v1583 = vadd.f32 %v1206, %v1582
        %v1584 = vpop.f32.mrb[0].mxu0
        %v1585 = vand.u32 %v245, 4294901760
        %v1586 = vsub.f32 %v245, %v1585
        %1587 = vmatprep.mubr.f32.mxu0 %v1586
        %v1588 = vand.u32 %v244, 4294901760
        %v1589 = vsub.f32 %v244, %v1588
        %1590 = vmatmul.mubr.f32.gmra.mrb[0].mxu0 %v1589
        %v1591 = vpop.f32.mrb[0].mxu0
        %v1592 = vadd.f32 %v1213, %v1591
        %v1593 = vpop.f32.mrb[0].mxu0
        %v1594 = vand.u32 %v247, 4294901760
        %v1595 = vsub.f32 %v247, %v1594
        %1596 = vmatprep.mubr.f32.mxu0 %v1595
        %v1597 = vand.u32 %v246, 4294901760
        %v1598 = vsub.f32 %v246, %v1597
        %1599 = vmatmul.mubr.f32.gmra.mrb[0].mxu0 %v1598
        %v1600 = vpop.f32.mrb[0].mxu0
        %v1601 = vadd.f32 %v1220, %v1600
        %v1602 = vpop.f32.mrb[0].mxu0
        %v1603 = vand.u32 %v249, 4294901760
        %v1604 = vsub.f32 %v249, %v1603
        %1605 = vmatprep.mubr.f32.mxu0 %v1604
        %v1606 = vand.u32 %v248, 4294901760
        %v1607 = vsub.f32 %v248, %v1606
        %1608 = vmatmul.mubr.f32.gmra.mrb[0].mxu0 %v1607
        %v1609 = vpop.f32.mrb[0].mxu0
        %v1610 = vadd.f32 %v1227, %v1609
        %v1611 = vpop.f32.mrb[0].mxu0
        %v1612 = vand.u32 %v251, 4294901760
        %v1613 = vsub.f32 %v251, %v1612
        %1614 = vmatprep.mubr.f32.mxu0 %v1613
        %v1615 = vand.u32 %v250, 4294901760
        %v1616 = vsub.f32 %v250, %v1615
        %1617 = vmatmul.mubr.f32.gmra.mrb[0].mxu0 %v1616
        %v1618 = vpop.f32.mrb[0].mxu0
        %v1619 = vadd.f32 %v1234, %v1618
        %v1620 = vpop.f32.mrb[0].mxu0
        %v1621 = vand.u32 %v253, 4294901760
        %v1622 = vsub.f32 %v253, %v1621
        %1623 = vmatprep.mubr.f32.mxu0 %v1622
        %v1624 = vand.u32 %v252, 4294901760
        %v1625 = vsub.f32 %v252, %v1624
        %1626 = vmatmul.mubr.f32.gmra.mrb[0].mxu0 %v1625
        %v1627 = vpop.f32.mrb[0].mxu0
        %v1628 = vadd.f32 %v1241, %v1627
        %v1629 = vpop.f32.mrb[0].mxu0
        %v1630 = vand.u32 %v255, 4294901760
        %v1631 = vsub.f32 %v255, %v1630
        %1632 = vmatprep.mubr.f32.mxu0 %v1631
        %v1633 = vand.u32 %v254, 4294901760
        %v1634 = vsub.f32 %v254, %v1633
        %1635 = vmatmul.mubr.f32.gmra.mrb[0].mxu0 %v1634
        %v1636 = vpop.f32.mrb[0].mxu0
        %v1637 = vadd.f32 %v1248, %v1636
        %v1638 = vpop.f32.mrb[0].mxu0
        %v1639 = vand.u32 %v257, 4294901760
        %v1640 = vsub.f32 %v257, %v1639
        %1641 = vmatprep.mubr.f32.mxu0 %v1640
        %v1642 = vand.u32 %v256, 4294901760
        %v1643 = vsub.f32 %v256, %v1642
        %1644 = vmatmul.mubr.f32.gmra.mrb[0].mxu0 %v1643
        %v1645 = vpop.f32.mrb[0].mxu0
        %v1646 = vadd.f32 %v1255, %v1645
        %v1647 = vpop.f32.mrb[0].mxu0
        %v1648 = vand.u32 %v259, 4294901760
        %v1649 = vsub.f32 %v259, %v1648
        %1650 = vmatprep.mubr.f32.mxu0 %v1649
        %v1651 = vand.u32 %v258, 4294901760
        %v1652 = vsub.f32 %v258, %v1651
        %1653 = vmatmul.mubr.f32.gmra.mrb[0].mxu0 %v1652
        %v1654 = vpop.f32.mrb[0].mxu0
        %v1655 = vadd.f32 %v1262, %v1654
        %v1656 = vpop.f32.mrb[0].mxu0
        %v1657 = vand.u32 %v261, 4294901760
        %v1658 = vsub.f32 %v261, %v1657
        %1659 = vmatprep.mubr.f32.mxu0 %v1658
        %v1660 = vand.u32 %v260, 4294901760
        %v1661 = vsub.f32 %v260, %v1660
        %1662 = vmatmul.mubr.f32.gmra.mrb[0].mxu0 %v1661
        %v1663 = vpop.f32.mrb[0].mxu0
        %v1664 = vadd.f32 %v1269, %v1663
        %v1665 = vpop.f32.mrb[0].mxu0
        %v1666 = vand.u32 %v263, 4294901760
        %v1667 = vsub.f32 %v263, %v1666
        %1668 = vmatprep.mubr.f32.mxu0 %v1667
        %v1669 = vand.u32 %v262, 4294901760
        %v1670 = vsub.f32 %v262, %v1669
        %1671 = vmatmul.mubr.f32.gmra.mrb[0].mxu0 %v1670
        %v1672 = vpop.f32.mrb[0].mxu0
        %v1673 = vadd.f32 %v1276, %v1672
        %v1674 = vpop.f32.mrb[0].mxu0
        %v1675 = vand.u32 %v265, 4294901760
        %v1676 = vsub.f32 %v265, %v1675
        %1677 = vmatprep.mubr.f32.mxu0 %v1676
        %v1678 = vand.u32 %v264, 4294901760
        %v1679 = vsub.f32 %v264, %v1678
        %1680 = vmatmul.mubr.f32.gmra.mrb[0].mxu0 %v1679
        %v1681 = vpop.f32.mrb[0].mxu0
        %v1682 = vadd.f32 %v1283, %v1681
        %v1683 = vpop.f32.mrb[0].mxu0
        %v1684 = vand.u32 %v267, 4294901760
        %v1685 = vsub.f32 %v267, %v1684
        %1686 = vmatprep.mubr.f32.mxu0 %v1685
        %v1687 = vand.u32 %v266, 4294901760
        %v1688 = vsub.f32 %v266, %v1687
        %1689 = vmatmul.mubr.f32.gmra.mrb[0].mxu0 %v1688
        %v1690 = vpop.f32.mrb[0].mxu0
        %v1691 = vadd.f32 %v1290, %v1690
        %v1692 = vpop.f32.mrb[0].mxu0
        %v1693 = vand.u32 %v269, 4294901760
        %v1694 = vsub.f32 %v269, %v1693
        %1695 = vmatprep.mubr.f32.mxu0 %v1694
        %v1696 = vand.u32 %v268, 4294901760
        %v1697 = vsub.f32 %v268, %v1696
        %1698 = vmatmul.mubr.f32.gmra.mrb[0].mxu0 %v1697
        %v1699 = vpop.f32.mrb[0].mxu0
        %v1700 = vadd.f32 %v1297, %v1699
        %v1701 = vpop.f32.mrb[0].mxu0
        %v1702 = vand.u32 %v271, 4294901760
        %v1703 = vsub.f32 %v271, %v1702
        %1704 = vmatprep.mubr.f32.mxu0 %v1703
        %v1705 = vand.u32 %v270, 4294901760
        %v1706 = vsub.f32 %v270, %v1705
        %1707 = vmatmul.mubr.f32.gmra.mrb[0].mxu0 %v1706
        %v1708 = vpop.f32.mrb[0].mxu0
        %v1709 = vadd.f32 %v1304, %v1708
        %v1710 = vpop.f32.mrb[0].mxu0
        %v1711 = vand.u32 %v273, 4294901760
        %v1712 = vsub.f32 %v273, %v1711
        %1713 = vmatprep.mubr.f32.mxu0 %v1712
        %v1714 = vand.u32 %v272, 4294901760
        %v1715 = vsub.f32 %v272, %v1714
        %1716 = vmatmul.mubr.f32.gmra.mrb[0].mxu0 %v1715
        %v1717 = vpop.f32.mrb[0].mxu0
        %v1718 = vadd.f32 %v1311, %v1717
        %v1719 = vpop.f32.mrb[0].mxu0
        %v1720 = vand.u32 %v275, 4294901760
        %v1721 = vsub.f32 %v275, %v1720
        %1722 = vmatprep.mubr.f32.mxu0 %v1721
        %v1723 = vand.u32 %v274, 4294901760
        %v1724 = vsub.f32 %v274, %v1723
        %1725 = vmatmul.mubr.f32.gmra.mrb[0].mxu0 %v1724
        %v1726 = vpop.f32.mrb[0].mxu0
        %v1727 = vadd.f32 %v1318, %v1726
        %v1728 = vpop.f32.mrb[0].mxu0
        %v1729 = vand.u32 %v277, 4294901760
        %v1730 = vsub.f32 %v277, %v1729
        %1731 = vmatprep.mubr.f32.mxu0 %v1730
        %v1732 = vand.u32 %v276, 4294901760
        %v1733 = vsub.f32 %v276, %v1732
        %1734 = vmatmul.mubr.f32.gmra.mrb[0].mxu0 %v1733
        %v1735 = vpop.f32.mrb[0].mxu0
        %v1736 = vadd.f32 %v1325, %v1735
        %v1737 = vpop.f32.mrb[0].mxu0
        %v1738 = vand.u32 %v279, 4294901760
        %v1739 = vsub.f32 %v279, %v1738
        %1740 = vmatprep.mubr.f32.mxu0 %v1739
        %v1741 = vand.u32 %v278, 4294901760
        %v1742 = vsub.f32 %v278, %v1741
        %1743 = vmatmul.mubr.f32.gmra.mrb[0].mxu0 %v1742
        %v1744 = vpop.f32.mrb[0].mxu0
        %v1745 = vadd.f32 %v1332, %v1744
        %v1746 = vpop.f32.mrb[0].mxu0
        %v1747 = vand.u32 %v281, 4294901760
        %v1748 = vsub.f32 %v281, %v1747
        %1749 = vmatprep.mubr.f32.mxu0 %v1748
        %v1750 = vand.u32 %v280, 4294901760
        %v1751 = vsub.f32 %v280, %v1750
        %1752 = vmatmul.mubr.f32.gmra.mrb[0].mxu0 %v1751
        %v1753 = vpop.f32.mrb[0].mxu0
        %v1754 = vadd.f32 %v1339, %v1753
        %v1755 = vpop.f32.mrb[0].mxu0
        %v1756 = vand.u32 %v283, 4294901760
        %v1757 = vsub.f32 %v283, %v1756
        %1758 = vmatprep.mubr.f32.mxu0 %v1757
        %v1759 = vand.u32 %v282, 4294901760
        %v1760 = vsub.f32 %v282, %v1759
        %1761 = vmatmul.mubr.f32.gmra.mrb[0].mxu0 %v1760
        %v1762 = vpop.f32.mrb[0].mxu0
        %v1763 = vadd.f32 %v1346, %v1762
        %v1764 = vpop.f32.mrb[0].mxu0
        %1765 = vdwg.mxu0
        %1766 = vmatprep.subr.mxu0 0.0
        %v1767 = vand.u32 %v284, 4294901760
        %1768 = vmatpush1.msra.mxu0 %v1767
        %1769 = vmatprep.subr.mxu0 0.0
        %v1770 = vand.u32 %v285, 4294901760
        %1771 = vmatpush1.msra.mxu0 %v1770
        %1772 = vmatprep.subr.mxu0 0.0
        %v1773 = vand.u32 %v286, 4294901760
        %1774 = vmatpush1.msra.mxu0 %v1773
        %1775 = vmatprep.subr.mxu0 0.0
        %v1776 = vand.u32 %v287, 4294901760
        %1777 = vmatpush1.msra.mxu0 %v1776
        %1778 = vmatprep.subr.mxu0 0.0
        %v1779 = vand.u32 %v288, 4294901760
        %1780 = vmatpush1.msra.mxu0 %v1779
        %1781 = vmatprep.subr.mxu0 0.0
        %v1782 = vand.u32 %v289, 4294901760
        %1783 = vmatpush1.msra.mxu0 %v1782
        %1784 = vmatprep.subr.mxu0 0.0
        %v1785 = vand.u32 %v290, 4294901760
        %1786 = vmatpush1.msra.mxu0 %v1785
        %1787 = vmatprep.subr.mxu0 0.0
        %v1788 = vand.u32 %v291, 4294901760
        %1789 = vmatpush1.msra.mxu0 %v1788
        %1790 = vmatprep.subr.mxu0 0.0
        %v1791 = vand.u32 %v292, 4294901760
        %1792 = vmatpush1.msra.mxu0 %v1791
        %1793 = vmatprep.subr.mxu0 0.0
        %v1794 = vand.u32 %v293, 4294901760
        %1795 = vmatpush1.msra.mxu0 %v1794
        %1796 = vmatprep.subr.mxu0 0.0
        %v1797 = vand.u32 %v294, 4294901760
        %1798 = vmatpush1.msra.mxu0 %v1797
        %1799 = vmatprep.subr.mxu0 0.0
        %v1800 = vand.u32 %v295, 4294901760
        %1801 = vmatpush1.msra.mxu0 %v1800
        %1802 = vmatprep.subr.mxu0 0.0
        %v1803 = vand.u32 %v296, 4294901760
        %1804 = vmatpush1.msra.mxu0 %v1803
        %1805 = vmatprep.subr.mxu0 0.0
        %v1806 = vand.u32 %v297, 4294901760
        %1807 = vmatpush1.msra.mxu0 %v1806
        %1808 = vmatprep.subr.mxu0 0.0
        %v1809 = vand.u32 %v298, 4294901760
        %1810 = vmatpush1.msra.mxu0 %v1809
        %1811 = vmatprep.subr.mxu0 0.0
        %v1812 = vand.u32 %v299, 4294901760
        %1813 = vmatpush1.msra.mxu0 %v1812
        %1814 = vmatprep.subr.mxu0 0.0
        %v1815 = vand.u32 %v300, 4294901760
        %1816 = vmatpush1.msra.mxu0 %v1815
        %1817 = vmatprep.subr.mxu0 0.0
        %v1818 = vand.u32 %v301, 4294901760
        %1819 = vmatpush1.msra.mxu0 %v1818
        %1820 = vmatprep.subr.mxu0 0.0
        %v1821 = vand.u32 %v302, 4294901760
        %1822 = vmatpush1.msra.mxu0 %v1821
        %1823 = vmatprep.subr.mxu0 0.0
        %v1824 = vand.u32 %v303, 4294901760
        %1825 = vmatpush1.msra.mxu0 %v1824
        %1826 = vmatprep.subr.mxu0 0.0
        %v1827 = vand.u32 %v304, 4294901760
        %1828 = vmatpush1.msra.mxu0 %v1827
        %1829 = vmatprep.subr.mxu0 0.0
        %v1830 = vand.u32 %v305, 4294901760
        %1831 = vmatpush1.msra.mxu0 %v1830
        %1832 = vmatprep.subr.mxu0 0.0
        %v1833 = vand.u32 %v306, 4294901760
        %1834 = vmatpush1.msra.mxu0 %v1833
        %1835 = vmatprep.subr.mxu0 0.0
        %v1836 = vand.u32 %v307, 4294901760
        %1837 = vmatpush1.msra.mxu0 %v1836
        %1838 = vmatprep.subr.mxu0 0.0
        %v1839 = vand.u32 %v308, 4294901760
        %1840 = vmatpush1.msra.mxu0 %v1839
        %1841 = vmatprep.subr.mxu0 0.0
        %v1842 = vand.u32 %v309, 4294901760
        %1843 = vmatpush1.msra.mxu0 %v1842
        %1844 = vmatprep.subr.mxu0 0.0
        %v1845 = vand.u32 %v310, 4294901760
        %1846 = vmatpush1.msra.mxu0 %v1845
        %1847 = vmatprep.subr.mxu0 0.0
        %v1848 = vand.u32 %v311, 4294901760
        %1849 = vmatpush1.msra.mxu0 %v1848
        %1850 = vmatprep.subr.mxu0 0.0
        %v1851 = vand.u32 %v312, 4294901760
        %1852 = vmatpush1.msra.mxu0 %v1851
        %1853 = vmatprep.subr.mxu0 0.0
        %v1854 = vand.u32 %v313, 4294901760
        %1855 = vmatpush1.msra.mxu0 %v1854
        %1856 = vmatprep.subr.mxu0 0.0
        %v1857 = vand.u32 %v314, 4294901760
        %1858 = vmatpush1.msra.mxu0 %v1857
        %1859 = vmatprep.subr.mxu0 0.0
        %v1860 = vand.u32 %v315, 4294901760
        %1861 = vmatpush1.msra.mxu0 %v1860
        %v1862 = vand.u32 %v221, 4294901760
        %v1863 = vsub.f32 %v221, %v1862
        %v1864 = vand.u32 %v1863, 4294901760
        %1865 = vmatprep.mubr.f32.mxu0 %v1864
        %v1866 = vand.u32 %v220, 4294901760
        %v1867 = vsub.f32 %v220, %v1866
        %v1868 = vand.u32 %v1867, 4294901760
        %1869 = vmatmul.mubr.f32.gmra.mrb[0].mxu0 %v1868
        %v1870 = vpop.f32.mrb[0].mxu0
        %v1871 = vadd.f32 %v1484, %v1870
        %v1872 = vpop.f32.mrb[0].mxu0
        %v1873 = vand.u32 %v223, 4294901760
        %v1874 = vsub.f32 %v223, %v1873
        %v1875 = vand.u32 %v1874, 4294901760
        %1876 = vmatprep.mubr.f32.mxu0 %v1875
        %v1877 = vand.u32 %v222, 4294901760
        %v1878 = vsub.f32 %v222, %v1877
        %v1879 = vand.u32 %v1878, 4294901760
        %1880 = vmatmul.mubr.f32.gmra.mrb[0].mxu0 %v1879
        %v1881 = vpop.f32.mrb[0].mxu0
        %v1882 = vadd.f32 %v1493, %v1881
        %v1883 = vpop.f32.mrb[0].mxu0
        %v1884 = vand.u32 %v225, 4294901760
        %v1885 = vsub.f32 %v225, %v1884
        %v1886 = vand.u32 %v1885, 4294901760
        %1887 = vmatprep.mubr.f32.mxu0 %v1886
        %v1888 = vand.u32 %v224, 4294901760
        %v1889 = vsub.f32 %v224, %v1888
        %v1890 = vand.u32 %v1889, 4294901760
        %1891 = vmatmul.mubr.f32.gmra.mrb[0].mxu0 %v1890
        %v1892 = vpop.f32.mrb[0].mxu0
        %v1893 = vadd.f32 %v1502, %v1892
        %v1894 = vpop.f32.mrb[0].mxu0
        %v1895 = vand.u32 %v227, 4294901760
        %v1896 = vsub.f32 %v227, %v1895
        %v1897 = vand.u32 %v1896, 4294901760
        %1898 = vmatprep.mubr.f32.mxu0 %v1897
        %v1899 = vand.u32 %v226, 4294901760
        %v1900 = vsub.f32 %v226, %v1899
        %v1901 = vand.u32 %v1900, 4294901760
        %1902 = vmatmul.mubr.f32.gmra.mrb[0].mxu0 %v1901
        %v1903 = vpop.f32.mrb[0].mxu0
        %v1904 = vadd.f32 %v1511, %v1903
        %v1905 = vpop.f32.mrb[0].mxu0
        %v1906 = vand.u32 %v229, 4294901760
        %v1907 = vsub.f32 %v229, %v1906
        %v1908 = vand.u32 %v1907, 4294901760
        %1909 = vmatprep.mubr.f32.mxu0 %v1908
        %v1910 = vand.u32 %v228, 4294901760
        %v1911 = vsub.f32 %v228, %v1910
        %v1912 = vand.u32 %v1911, 4294901760
        %1913 = vmatmul.mubr.f32.gmra.mrb[0].mxu0 %v1912
        %v1914 = vpop.f32.mrb[0].mxu0
        %v1915 = vadd.f32 %v1520, %v1914
        %v1916 = vpop.f32.mrb[0].mxu0
        %v1917 = vand.u32 %v231, 4294901760
        %v1918 = vsub.f32 %v231, %v1917
        %v1919 = vand.u32 %v1918, 4294901760
        %1920 = vmatprep.mubr.f32.mxu0 %v1919
        %v1921 = vand.u32 %v230, 4294901760
        %v1922 = vsub.f32 %v230, %v1921
        %v1923 = vand.u32 %v1922, 4294901760
        %1924 = vmatmul.mubr.f32.gmra.mrb[0].mxu0 %v1923
        %v1925 = vpop.f32.mrb[0].mxu0
        %v1926 = vadd.f32 %v1529, %v1925
        %v1927 = vpop.f32.mrb[0].mxu0
        %v1928 = vand.u32 %v233, 4294901760
        %v1929 = vsub.f32 %v233, %v1928
        %v1930 = vand.u32 %v1929, 4294901760
        %1931 = vmatprep.mubr.f32.mxu0 %v1930
        %v1932 = vand.u32 %v232, 4294901760
        %v1933 = vsub.f32 %v232, %v1932
        %v1934 = vand.u32 %v1933, 4294901760
        %1935 = vmatmul.mubr.f32.gmra.mrb[0].mxu0 %v1934
        %v1936 = vpop.f32.mrb[0].mxu0
        %v1937 = vadd.f32 %v1538, %v1936
        %v1938 = vpop.f32.mrb[0].mxu0
        %v1939 = vand.u32 %v235, 4294901760
        %v1940 = vsub.f32 %v235, %v1939
        %v1941 = vand.u32 %v1940, 4294901760
        %1942 = vmatprep.mubr.f32.mxu0 %v1941
        %v1943 = vand.u32 %v234, 4294901760
        %v1944 = vsub.f32 %v234, %v1943
        %v1945 = vand.u32 %v1944, 4294901760
        %1946 = vmatmul.mubr.f32.gmra.mrb[0].mxu0 %v1945
        %v1947 = vpop.f32.mrb[0].mxu0
        %v1948 = vadd.f32 %v1547, %v1947
        %v1949 = vpop.f32.mrb[0].mxu0
        %v1950 = vand.u32 %v237, 4294901760
        %v1951 = vsub.f32 %v237, %v1950
        %v1952 = vand.u32 %v1951, 4294901760
        %1953 = vmatprep.mubr.f32.mxu0 %v1952
        %v1954 = vand.u32 %v236, 4294901760
        %v1955 = vsub.f32 %v236, %v1954
        %v1956 = vand.u32 %v1955, 4294901760
        %1957 = vmatmul.mubr.f32.gmra.mrb[0].mxu0 %v1956
        %v1958 = vpop.f32.mrb[0].mxu0
        %v1959 = vadd.f32 %v1556, %v1958
        %v1960 = vpop.f32.mrb[0].mxu0
        %v1961 = vand.u32 %v239, 4294901760
        %v1962 = vsub.f32 %v239, %v1961
        %v1963 = vand.u32 %v1962, 4294901760
        %1964 = vmatprep.mubr.f32.mxu0 %v1963
        %v1965 = vand.u32 %v238, 4294901760
        %v1966 = vsub.f32 %v238, %v1965
        %v1967 = vand.u32 %v1966, 4294901760
        %1968 = vmatmul.mubr.f32.gmra.mrb[0].mxu0 %v1967
        %v1969 = vpop.f32.mrb[0].mxu0
        %v1970 = vadd.f32 %v1565, %v1969
        %v1971 = vpop.f32.mrb[0].mxu0
        %v1972 = vand.u32 %v241, 4294901760
        %v1973 = vsub.f32 %v241, %v1972
        %v1974 = vand.u32 %v1973, 4294901760
        %1975 = vmatprep.mubr.f32.mxu0 %v1974
        %v1976 = vand.u32 %v240, 4294901760
        %v1977 = vsub.f32 %v240, %v1976
        %v1978 = vand.u32 %v1977, 4294901760
        %1979 = vmatmul.mubr.f32.gmra.mrb[0].mxu0 %v1978
        %v1980 = vpop.f32.mrb[0].mxu0
        %v1981 = vadd.f32 %v1574, %v1980
        %v1982 = vpop.f32.mrb[0].mxu0
        %v1983 = vand.u32 %v243, 4294901760
        %v1984 = vsub.f32 %v243, %v1983
        %v1985 = vand.u32 %v1984, 4294901760
        %1986 = vmatprep.mubr.f32.mxu0 %v1985
        %v1987 = vand.u32 %v242, 4294901760
        %v1988 = vsub.f32 %v242, %v1987
        %v1989 = vand.u32 %v1988, 4294901760
        %1990 = vmatmul.mubr.f32.gmra.mrb[0].mxu0 %v1989
        %v1991 = vpop.f32.mrb[0].mxu0
        %v1992 = vadd.f32 %v1583, %v1991
        %v1993 = vpop.f32.mrb[0].mxu0
        %v1994 = vand.u32 %v245, 4294901760
        %v1995 = vsub.f32 %v245, %v1994
        %v1996 = vand.u32 %v1995, 4294901760
        %1997 = vmatprep.mubr.f32.mxu0 %v1996
        %v1998 = vand.u32 %v244, 4294901760
        %v1999 = vsub.f32 %v244, %v1998
        %v2000 = vand.u32 %v1999, 4294901760
        %2001 = vmatmul.mubr.f32.gmra.mrb[0].mxu0 %v2000
        %v2002 = vpop.f32.mrb[0].mxu0
        %v2003 = vadd.f32 %v1592, %v2002
        %v2004 = vpop.f32.mrb[0].mxu0
        %v2005 = vand.u32 %v247, 4294901760
        %v2006 = vsub.f32 %v247, %v2005
        %v2007 = vand.u32 %v2006, 4294901760
        %2008 = vmatprep.mubr.f32.mxu0 %v2007
        %v2009 = vand.u32 %v246, 4294901760
        %v2010 = vsub.f32 %v246, %v2009
        %v2011 = vand.u32 %v2010, 4294901760
        %2012 = vmatmul.mubr.f32.gmra.mrb[0].mxu0 %v2011
        %v2013 = vpop.f32.mrb[0].mxu0
        %v2014 = vadd.f32 %v1601, %v2013
        %v2015 = vpop.f32.mrb[0].mxu0
        %v2016 = vand.u32 %v249, 4294901760
        %v2017 = vsub.f32 %v249, %v2016
        %v2018 = vand.u32 %v2017, 4294901760
        %2019 = vmatprep.mubr.f32.mxu0 %v2018
        %v2020 = vand.u32 %v248, 4294901760
        %v2021 = vsub.f32 %v248, %v2020
        %v2022 = vand.u32 %v2021, 4294901760
        %2023 = vmatmul.mubr.f32.gmra.mrb[0].mxu0 %v2022
        %v2024 = vpop.f32.mrb[0].mxu0
        %v2025 = vadd.f32 %v1610, %v2024
        %v2026 = vpop.f32.mrb[0].mxu0
        %v2027 = vand.u32 %v251, 4294901760
        %v2028 = vsub.f32 %v251, %v2027
        %v2029 = vand.u32 %v2028, 4294901760
        %2030 = vmatprep.mubr.f32.mxu0 %v2029
        %v2031 = vand.u32 %v250, 4294901760
        %v2032 = vsub.f32 %v250, %v2031
        %v2033 = vand.u32 %v2032, 4294901760
        %2034 = vmatmul.mubr.f32.gmra.mrb[0].mxu0 %v2033
        %v2035 = vpop.f32.mrb[0].mxu0
        %v2036 = vadd.f32 %v1619, %v2035
        %v2037 = vpop.f32.mrb[0].mxu0
        %v2038 = vand.u32 %v253, 4294901760
        %v2039 = vsub.f32 %v253, %v2038
        %v2040 = vand.u32 %v2039, 4294901760
        %2041 = vmatprep.mubr.f32.mxu0 %v2040
        %v2042 = vand.u32 %v252, 4294901760
        %v2043 = vsub.f32 %v252, %v2042
        %v2044 = vand.u32 %v2043, 4294901760
        %2045 = vmatmul.mubr.f32.gmra.mrb[0].mxu0 %v2044
        %v2046 = vpop.f32.mrb[0].mxu0
        %v2047 = vadd.f32 %v1628, %v2046
        %v2048 = vpop.f32.mrb[0].mxu0
        %v2049 = vand.u32 %v255, 4294901760
        %v2050 = vsub.f32 %v255, %v2049
        %v2051 = vand.u32 %v2050, 4294901760
        %2052 = vmatprep.mubr.f32.mxu0 %v2051
        %v2053 = vand.u32 %v254, 4294901760
        %v2054 = vsub.f32 %v254, %v2053
        %v2055 = vand.u32 %v2054, 4294901760
        %2056 = vmatmul.mubr.f32.gmra.mrb[0].mxu0 %v2055
        %v2057 = vpop.f32.mrb[0].mxu0
        %v2058 = vadd.f32 %v1637, %v2057
        %v2059 = vpop.f32.mrb[0].mxu0
        %v2060 = vand.u32 %v257, 4294901760
        %v2061 = vsub.f32 %v257, %v2060
        %v2062 = vand.u32 %v2061, 4294901760
        %2063 = vmatprep.mubr.f32.mxu0 %v2062
        %v2064 = vand.u32 %v256, 4294901760
        %v2065 = vsub.f32 %v256, %v2064
        %v2066 = vand.u32 %v2065, 4294901760
        %2067 = vmatmul.mubr.f32.gmra.mrb[0].mxu0 %v2066
        %v2068 = vpop.f32.mrb[0].mxu0
        %v2069 = vadd.f32 %v1646, %v2068
        %v2070 = vpop.f32.mrb[0].mxu0
        %v2071 = vand.u32 %v259, 4294901760
        %v2072 = vsub.f32 %v259, %v2071
        %v2073 = vand.u32 %v2072, 4294901760
        %2074 = vmatprep.mubr.f32.mxu0 %v2073
        %v2075 = vand.u32 %v258, 4294901760
        %v2076 = vsub.f32 %v258, %v2075
        %v2077 = vand.u32 %v2076, 4294901760
        %2078 = vmatmul.mubr.f32.gmra.mrb[0].mxu0 %v2077
        %v2079 = vpop.f32.mrb[0].mxu0
        %v2080 = vadd.f32 %v1655, %v2079
        %v2081 = vpop.f32.mrb[0].mxu0
        %v2082 = vand.u32 %v261, 4294901760
        %v2083 = vsub.f32 %v261, %v2082
        %v2084 = vand.u32 %v2083, 4294901760
        %2085 = vmatprep.mubr.f32.mxu0 %v2084
        %v2086 = vand.u32 %v260, 4294901760
        %v2087 = vsub.f32 %v260, %v2086
        %v2088 = vand.u32 %v2087, 4294901760
        %2089 = vmatmul.mubr.f32.gmra.mrb[0].mxu0 %v2088
        %v2090 = vpop.f32.mrb[0].mxu0
        %v2091 = vadd.f32 %v1664, %v2090
        %v2092 = vpop.f32.mrb[0].mxu0
        %v2093 = vand.u32 %v263, 4294901760
        %v2094 = vsub.f32 %v263, %v2093
        %v2095 = vand.u32 %v2094, 4294901760
        %2096 = vmatprep.mubr.f32.mxu0 %v2095
        %v2097 = vand.u32 %v262, 4294901760
        %v2098 = vsub.f32 %v262, %v2097
        %v2099 = vand.u32 %v2098, 4294901760
        %2100 = vmatmul.mubr.f32.gmra.mrb[0].mxu0 %v2099
        %v2101 = vpop.f32.mrb[0].mxu0
        %v2102 = vadd.f32 %v1673, %v2101
        %v2103 = vpop.f32.mrb[0].mxu0
        %v2104 = vand.u32 %v265, 4294901760
        %v2105 = vsub.f32 %v265, %v2104
        %v2106 = vand.u32 %v2105, 4294901760
        %2107 = vmatprep.mubr.f32.mxu0 %v2106
        %v2108 = vand.u32 %v264, 4294901760
        %v2109 = vsub.f32 %v264, %v2108
        %v2110 = vand.u32 %v2109, 4294901760
        %2111 = vmatmul.mubr.f32.gmra.mrb[0].mxu0 %v2110
        %v2112 = vpop.f32.mrb[0].mxu0
        %v2113 = vadd.f32 %v1682, %v2112
        %v2114 = vpop.f32.mrb[0].mxu0
        %v2115 = vand.u32 %v267, 4294901760
        %v2116 = vsub.f32 %v267, %v2115
        %v2117 = vand.u32 %v2116, 4294901760
        %2118 = vmatprep.mubr.f32.mxu0 %v2117
        %v2119 = vand.u32 %v266, 4294901760
        %v2120 = vsub.f32 %v266, %v2119
        %v2121 = vand.u32 %v2120, 4294901760
        %2122 = vmatmul.mubr.f32.gmra.mrb[0].mxu0 %v2121
        %v2123 = vpop.f32.mrb[0].mxu0
        %v2124 = vadd.f32 %v1691, %v2123
        %v2125 = vpop.f32.mrb[0].mxu0
        %v2126 = vand.u32 %v269, 4294901760
        %v2127 = vsub.f32 %v269, %v2126
        %v2128 = vand.u32 %v2127, 4294901760
        %2129 = vmatprep.mubr.f32.mxu0 %v2128
        %v2130 = vand.u32 %v268, 4294901760
        %v2131 = vsub.f32 %v268, %v2130
        %v2132 = vand.u32 %v2131, 4294901760
        %2133 = vmatmul.mubr.f32.gmra.mrb[0].mxu0 %v2132
        %v2134 = vpop.f32.mrb[0].mxu0
        %v2135 = vadd.f32 %v1700, %v2134
        %v2136 = vpop.f32.mrb[0].mxu0
        %v2137 = vand.u32 %v271, 4294901760
        %v2138 = vsub.f32 %v271, %v2137
        %v2139 = vand.u32 %v2138, 4294901760
        %2140 = vmatprep.mubr.f32.mxu0 %v2139
        %v2141 = vand.u32 %v270, 4294901760
        %v2142 = vsub.f32 %v270, %v2141
        %v2143 = vand.u32 %v2142, 4294901760
        %2144 = vmatmul.mubr.f32.gmra.mrb[0].mxu0 %v2143
        %v2145 = vpop.f32.mrb[0].mxu0
        %v2146 = vadd.f32 %v1709, %v2145
        %v2147 = vpop.f32.mrb[0].mxu0
        %v2148 = vand.u32 %v273, 4294901760
        %v2149 = vsub.f32 %v273, %v2148
        %v2150 = vand.u32 %v2149, 4294901760
        %2151 = vmatprep.mubr.f32.mxu0 %v2150
        %v2152 = vand.u32 %v272, 4294901760
        %v2153 = vsub.f32 %v272, %v2152
        %v2154 = vand.u32 %v2153, 4294901760
        %2155 = vmatmul.mubr.f32.gmra.mrb[0].mxu0 %v2154
        %v2156 = vpop.f32.mrb[0].mxu0
        %v2157 = vadd.f32 %v1718, %v2156
        %v2158 = vpop.f32.mrb[0].mxu0
        %v2159 = vand.u32 %v275, 4294901760
        %v2160 = vsub.f32 %v275, %v2159
        %v2161 = vand.u32 %v2160, 4294901760
        %2162 = vmatprep.mubr.f32.mxu0 %v2161
        %v2163 = vand.u32 %v274, 4294901760
        %v2164 = vsub.f32 %v274, %v2163
        %v2165 = vand.u32 %v2164, 4294901760
        %2166 = vmatmul.mubr.f32.gmra.mrb[0].mxu0 %v2165
        %v2167 = vpop.f32.mrb[0].mxu0
        %v2168 = vadd.f32 %v1727, %v2167
        %v2169 = vpop.f32.mrb[0].mxu0
        %v2170 = vand.u32 %v277, 4294901760
        %v2171 = vsub.f32 %v277, %v2170
        %v2172 = vand.u32 %v2171, 4294901760
        %2173 = vmatprep.mubr.f32.mxu0 %v2172
        %v2174 = vand.u32 %v276, 4294901760
        %v2175 = vsub.f32 %v276, %v2174
        %v2176 = vand.u32 %v2175, 4294901760
        %2177 = vmatmul.mubr.f32.gmra.mrb[0].mxu0 %v2176
        %v2178 = vpop.f32.mrb[0].mxu0
        %v2179 = vadd.f32 %v1736, %v2178
        %v2180 = vpop.f32.mrb[0].mxu0
        %v2181 = vand.u32 %v279, 4294901760
        %v2182 = vsub.f32 %v279, %v2181
        %v2183 = vand.u32 %v2182, 4294901760
        %2184 = vmatprep.mubr.f32.mxu0 %v2183
        %v2185 = vand.u32 %v278, 4294901760
        %v2186 = vsub.f32 %v278, %v2185
        %v2187 = vand.u32 %v2186, 4294901760
        %2188 = vmatmul.mubr.f32.gmra.mrb[0].mxu0 %v2187
        %v2189 = vpop.f32.mrb[0].mxu0
        %v2190 = vadd.f32 %v1745, %v2189
        %v2191 = vpop.f32.mrb[0].mxu0
        %v2192 = vand.u32 %v281, 4294901760
        %v2193 = vsub.f32 %v281, %v2192
        %v2194 = vand.u32 %v2193, 4294901760
        %2195 = vmatprep.mubr.f32.mxu0 %v2194
        %v2196 = vand.u32 %v280, 4294901760
        %v2197 = vsub.f32 %v280, %v2196
        %v2198 = vand.u32 %v2197, 4294901760
        %2199 = vmatmul.mubr.f32.gmra.mrb[0].mxu0 %v2198
        %v2200 = vpop.f32.mrb[0].mxu0
        %v2201 = vadd.f32 %v1754, %v2200
        %v2202 = vpop.f32.mrb[0].mxu0
        %v2203 = vand.u32 %v283, 4294901760
        %v2204 = vsub.f32 %v283, %v2203
        %v2205 = vand.u32 %v2204, 4294901760
        %2206 = vmatprep.mubr.f32.mxu0 %v2205
        %v2207 = vand.u32 %v282, 4294901760
        %v2208 = vsub.f32 %v282, %v2207
        %v2209 = vand.u32 %v2208, 4294901760
        %2210 = vmatmul.mubr.f32.gmra.mrb[0].mxu0 %v2209
        %v2211 = vpop.f32.mrb[0].mxu0
        %v2212 = vadd.f32 %v1763, %v2211
        %v2213 = vpop.f32.mrb[0].mxu0
        %2214 = vdwg.mxu0
        %2215 = vmatprep.subr.mxu0 0.0
        %v2216 = vand.u32 %v284, 4294901760
        %v2217 = vsub.f32 %v284, %v2216
        %v2218 = vand.u32 %v2217, 4294901760
        %2219 = vmatpush1.msra.mxu0 %v2218
        %2220 = vmatprep.subr.mxu0 0.0
        %v2221 = vand.u32 %v285, 4294901760
        %v2222 = vsub.f32 %v285, %v2221
        %v2223 = vand.u32 %v2222, 4294901760
        %2224 = vmatpush1.msra.mxu0 %v2223
        %2225 = vmatprep.subr.mxu0 0.0
        %v2226 = vand.u32 %v286, 4294901760
        %v2227 = vsub.f32 %v286, %v2226
        %v2228 = vand.u32 %v2227, 4294901760
        %2229 = vmatpush1.msra.mxu0 %v2228
        %2230 = vmatprep.subr.mxu0 0.0
        %v2231 = vand.u32 %v287, 4294901760
        %v2232 = vsub.f32 %v287, %v2231
        %v2233 = vand.u32 %v2232, 4294901760
        %2234 = vmatpush1.msra.mxu0 %v2233
        %2235 = vmatprep.subr.mxu0 0.0
        %v2236 = vand.u32 %v288, 4294901760
        %v2237 = vsub.f32 %v288, %v2236
        %v2238 = vand.u32 %v2237, 4294901760
        %2239 = vmatpush1.msra.mxu0 %v2238
        %2240 = vmatprep.subr.mxu0 0.0
        %v2241 = vand.u32 %v289, 4294901760
        %v2242 = vsub.f32 %v289, %v2241
        %v2243 = vand.u32 %v2242, 4294901760
        %2244 = vmatpush1.msra.mxu0 %v2243
        %2245 = vmatprep.subr.mxu0 0.0
        %v2246 = vand.u32 %v290, 4294901760
        %v2247 = vsub.f32 %v290, %v2246
        %v2248 = vand.u32 %v2247, 4294901760
        %2249 = vmatpush1.msra.mxu0 %v2248
        %2250 = vmatprep.subr.mxu0 0.0
        %v2251 = vand.u32 %v291, 4294901760
        %v2252 = vsub.f32 %v291, %v2251
        %v2253 = vand.u32 %v2252, 4294901760
        %2254 = vmatpush1.msra.mxu0 %v2253
        %2255 = vmatprep.subr.mxu0 0.0
        %v2256 = vand.u32 %v292, 4294901760
        %v2257 = vsub.f32 %v292, %v2256
        %v2258 = vand.u32 %v2257, 4294901760
        %2259 = vmatpush1.msra.mxu0 %v2258
        %2260 = vmatprep.subr.mxu0 0.0
        %v2261 = vand.u32 %v293, 4294901760
        %v2262 = vsub.f32 %v293, %v2261
        %v2263 = vand.u32 %v2262, 4294901760
        %2264 = vmatpush1.msra.mxu0 %v2263
        %2265 = vmatprep.subr.mxu0 0.0
        %v2266 = vand.u32 %v294, 4294901760
        %v2267 = vsub.f32 %v294, %v2266
        %v2268 = vand.u32 %v2267, 4294901760
        %2269 = vmatpush1.msra.mxu0 %v2268
        %2270 = vmatprep.subr.mxu0 0.0
        %v2271 = vand.u32 %v295, 4294901760
        %v2272 = vsub.f32 %v295, %v2271
        %v2273 = vand.u32 %v2272, 4294901760
        %2274 = vmatpush1.msra.mxu0 %v2273
        %2275 = vmatprep.subr.mxu0 0.0
        %v2276 = vand.u32 %v296, 4294901760
        %v2277 = vsub.f32 %v296, %v2276
        %v2278 = vand.u32 %v2277, 4294901760
        %2279 = vmatpush1.msra.mxu0 %v2278
        %2280 = vmatprep.subr.mxu0 0.0
        %v2281 = vand.u32 %v297, 4294901760
        %v2282 = vsub.f32 %v297, %v2281
        %v2283 = vand.u32 %v2282, 4294901760
        %2284 = vmatpush1.msra.mxu0 %v2283
        %2285 = vmatprep.subr.mxu0 0.0
        %v2286 = vand.u32 %v298, 4294901760
        %v2287 = vsub.f32 %v298, %v2286
        %v2288 = vand.u32 %v2287, 4294901760
        %2289 = vmatpush1.msra.mxu0 %v2288
        %2290 = vmatprep.subr.mxu0 0.0
        %v2291 = vand.u32 %v299, 4294901760
        %v2292 = vsub.f32 %v299, %v2291
        %v2293 = vand.u32 %v2292, 4294901760
        %2294 = vmatpush1.msra.mxu0 %v2293
        %2295 = vmatprep.subr.mxu0 0.0
        %v2296 = vand.u32 %v300, 4294901760
        %v2297 = vsub.f32 %v300, %v2296
        %v2298 = vand.u32 %v2297, 4294901760
        %2299 = vmatpush1.msra.mxu0 %v2298
        %2300 = vmatprep.subr.mxu0 0.0
        %v2301 = vand.u32 %v301, 4294901760
        %v2302 = vsub.f32 %v301, %v2301
        %v2303 = vand.u32 %v2302, 4294901760
        %2304 = vmatpush1.msra.mxu0 %v2303
        %2305 = vmatprep.subr.mxu0 0.0
        %v2306 = vand.u32 %v302, 4294901760
        %v2307 = vsub.f32 %v302, %v2306
        %v2308 = vand.u32 %v2307, 4294901760
        %2309 = vmatpush1.msra.mxu0 %v2308
        %2310 = vmatprep.subr.mxu0 0.0
        %v2311 = vand.u32 %v303, 4294901760
        %v2312 = vsub.f32 %v303, %v2311
        %v2313 = vand.u32 %v2312, 4294901760
        %2314 = vmatpush1.msra.mxu0 %v2313
        %2315 = vmatprep.subr.mxu0 0.0
        %v2316 = vand.u32 %v304, 4294901760
        %v2317 = vsub.f32 %v304, %v2316
        %v2318 = vand.u32 %v2317, 4294901760
        %2319 = vmatpush1.msra.mxu0 %v2318
        %2320 = vmatprep.subr.mxu0 0.0
        %v2321 = vand.u32 %v305, 4294901760
        %v2322 = vsub.f32 %v305, %v2321
        %v2323 = vand.u32 %v2322, 4294901760
        %2324 = vmatpush1.msra.mxu0 %v2323
        %2325 = vmatprep.subr.mxu0 0.0
        %v2326 = vand.u32 %v306, 4294901760
        %v2327 = vsub.f32 %v306, %v2326
        %v2328 = vand.u32 %v2327, 4294901760
        %2329 = vmatpush1.msra.mxu0 %v2328
        %2330 = vmatprep.subr.mxu0 0.0
        %v2331 = vand.u32 %v307, 4294901760
        %v2332 = vsub.f32 %v307, %v2331
        %v2333 = vand.u32 %v2332, 4294901760
        %2334 = vmatpush1.msra.mxu0 %v2333
        %2335 = vmatprep.subr.mxu0 0.0
        %v2336 = vand.u32 %v308, 4294901760
        %v2337 = vsub.f32 %v308, %v2336
        %v2338 = vand.u32 %v2337, 4294901760
        %2339 = vmatpush1.msra.mxu0 %v2338
        %2340 = vmatprep.subr.mxu0 0.0
        %v2341 = vand.u32 %v309, 4294901760
        %v2342 = vsub.f32 %v309, %v2341
        %v2343 = vand.u32 %v2342, 4294901760
        %2344 = vmatpush1.msra.mxu0 %v2343
        %2345 = vmatprep.subr.mxu0 0.0
        %v2346 = vand.u32 %v310, 4294901760
        %v2347 = vsub.f32 %v310, %v2346
        %v2348 = vand.u32 %v2347, 4294901760
        %2349 = vmatpush1.msra.mxu0 %v2348
        %2350 = vmatprep.subr.mxu0 0.0
        %v2351 = vand.u32 %v311, 4294901760
        %v2352 = vsub.f32 %v311, %v2351
        %v2353 = vand.u32 %v2352, 4294901760
        %2354 = vmatpush1.msra.mxu0 %v2353
        %2355 = vmatprep.subr.mxu0 0.0
        %v2356 = vand.u32 %v312, 4294901760
        %v2357 = vsub.f32 %v312, %v2356
        %v2358 = vand.u32 %v2357, 4294901760
        %2359 = vmatpush1.msra.mxu0 %v2358
        %2360 = vmatprep.subr.mxu0 0.0
        %v2361 = vand.u32 %v313, 4294901760
        %v2362 = vsub.f32 %v313, %v2361
        %v2363 = vand.u32 %v2362, 4294901760
        %2364 = vmatpush1.msra.mxu0 %v2363
        %2365 = vmatprep.subr.mxu0 0.0
        %v2366 = vand.u32 %v314, 4294901760
        %v2367 = vsub.f32 %v314, %v2366
        %v2368 = vand.u32 %v2367, 4294901760
        %2369 = vmatpush1.msra.mxu0 %v2368
        %2370 = vmatprep.subr.mxu0 0.0
        %v2371 = vand.u32 %v315, 4294901760
        %v2372 = vsub.f32 %v315, %v2371
        %v2373 = vand.u32 %v2372, 4294901760
        %2374 = vmatpush1.msra.mxu0 %v2373
        %v2375 = vand.u32 %v221, 4294901760
        %2376 = vmatprep.mubr.f32.mxu0 %v2375
        %v2377 = vand.u32 %v220, 4294901760
        %2378 = vmatmul.mubr.f32.gmra.mrb[0].mxu0 %v2377
        %v2379 = vpop.f32.mrb[0].mxu0
        %v2380 = vadd.f32 %v1871, %v2379
        %v2381 = vpop.f32.mrb[0].mxu0
        %v2382 = vand.u32 %v223, 4294901760
        %2383 = vmatprep.mubr.f32.mxu0 %v2382
        %v2384 = vand.u32 %v222, 4294901760
        %2385 = vmatmul.mubr.f32.gmra.mrb[0].mxu0 %v2384
        %v2386 = vpop.f32.mrb[0].mxu0
        %v2387 = vadd.f32 %v1882, %v2386
        %v2388 = vpop.f32.mrb[0].mxu0
        %v2389 = vand.u32 %v225, 4294901760
        %2390 = vmatprep.mubr.f32.mxu0 %v2389
        %v2391 = vand.u32 %v224, 4294901760
        %2392 = vmatmul.mubr.f32.gmra.mrb[0].mxu0 %v2391
        %v2393 = vpop.f32.mrb[0].mxu0
        %v2394 = vadd.f32 %v1893, %v2393
        %v2395 = vpop.f32.mrb[0].mxu0
        %v2396 = vand.u32 %v227, 4294901760
        %2397 = vmatprep.mubr.f32.mxu0 %v2396
        %v2398 = vand.u32 %v226, 4294901760
        %2399 = vmatmul.mubr.f32.gmra.mrb[0].mxu0 %v2398
        %v2400 = vpop.f32.mrb[0].mxu0
        %v2401 = vadd.f32 %v1904, %v2400
        %v2402 = vpop.f32.mrb[0].mxu0
        %v2403 = vand.u32 %v229, 4294901760
        %2404 = vmatprep.mubr.f32.mxu0 %v2403
        %v2405 = vand.u32 %v228, 4294901760
        %2406 = vmatmul.mubr.f32.gmra.mrb[0].mxu0 %v2405
        %v2407 = vpop.f32.mrb[0].mxu0
        %v2408 = vadd.f32 %v1915, %v2407
        %v2409 = vpop.f32.mrb[0].mxu0
        %v2410 = vand.u32 %v231, 4294901760
        %2411 = vmatprep.mubr.f32.mxu0 %v2410
        %v2412 = vand.u32 %v230, 4294901760
        %2413 = vmatmul.mubr.f32.gmra.mrb[0].mxu0 %v2412
        %v2414 = vpop.f32.mrb[0].mxu0
        %v2415 = vadd.f32 %v1926, %v2414
        %v2416 = vpop.f32.mrb[0].mxu0
        %v2417 = vand.u32 %v233, 4294901760
        %2418 = vmatprep.mubr.f32.mxu0 %v2417
        %v2419 = vand.u32 %v232, 4294901760
        %2420 = vmatmul.mubr.f32.gmra.mrb[0].mxu0 %v2419
        %v2421 = vpop.f32.mrb[0].mxu0
        %v2422 = vadd.f32 %v1937, %v2421
        %v2423 = vpop.f32.mrb[0].mxu0
        %v2424 = vand.u32 %v235, 4294901760
        %2425 = vmatprep.mubr.f32.mxu0 %v2424
        %v2426 = vand.u32 %v234, 4294901760
        %2427 = vmatmul.mubr.f32.gmra.mrb[0].mxu0 %v2426
        %v2428 = vpop.f32.mrb[0].mxu0
        %v2429 = vadd.f32 %v1948, %v2428
        %v2430 = vpop.f32.mrb[0].mxu0
        %v2431 = vand.u32 %v237, 4294901760
        %2432 = vmatprep.mubr.f32.mxu0 %v2431
        %v2433 = vand.u32 %v236, 4294901760
        %2434 = vmatmul.mubr.f32.gmra.mrb[0].mxu0 %v2433
        %v2435 = vpop.f32.mrb[0].mxu0
        %v2436 = vadd.f32 %v1959, %v2435
        %v2437 = vpop.f32.mrb[0].mxu0
        %v2438 = vand.u32 %v239, 4294901760
        %2439 = vmatprep.mubr.f32.mxu0 %v2438
        %v2440 = vand.u32 %v238, 4294901760
        %2441 = vmatmul.mubr.f32.gmra.mrb[0].mxu0 %v2440
        %v2442 = vpop.f32.mrb[0].mxu0
        %v2443 = vadd.f32 %v1970, %v2442
        %v2444 = vpop.f32.mrb[0].mxu0
        %v2445 = vand.u32 %v241, 4294901760
        %2446 = vmatprep.mubr.f32.mxu0 %v2445
        %v2447 = vand.u32 %v240, 4294901760
        %2448 = vmatmul.mubr.f32.gmra.mrb[0].mxu0 %v2447
        %v2449 = vpop.f32.mrb[0].mxu0
        %v2450 = vadd.f32 %v1981, %v2449
        %v2451 = vpop.f32.mrb[0].mxu0
        %v2452 = vand.u32 %v243, 4294901760
        %2453 = vmatprep.mubr.f32.mxu0 %v2452
        %v2454 = vand.u32 %v242, 4294901760
        %2455 = vmatmul.mubr.f32.gmra.mrb[0].mxu0 %v2454
        %v2456 = vpop.f32.mrb[0].mxu0
        %v2457 = vadd.f32 %v1992, %v2456
        %v2458 = vpop.f32.mrb[0].mxu0
        %v2459 = vand.u32 %v245, 4294901760
        %2460 = vmatprep.mubr.f32.mxu0 %v2459
        %v2461 = vand.u32 %v244, 4294901760
        %2462 = vmatmul.mubr.f32.gmra.mrb[0].mxu0 %v2461
        %v2463 = vpop.f32.mrb[0].mxu0
        %v2464 = vadd.f32 %v2003, %v2463
        %v2465 = vpop.f32.mrb[0].mxu0
        %v2466 = vand.u32 %v247, 4294901760
        %2467 = vmatprep.mubr.f32.mxu0 %v2466
        %v2468 = vand.u32 %v246, 4294901760
        %2469 = vmatmul.mubr.f32.gmra.mrb[0].mxu0 %v2468
        %v2470 = vpop.f32.mrb[0].mxu0
        %v2471 = vadd.f32 %v2014, %v2470
        %v2472 = vpop.f32.mrb[0].mxu0
        %v2473 = vand.u32 %v249, 4294901760
        %2474 = vmatprep.mubr.f32.mxu0 %v2473
        %v2475 = vand.u32 %v248, 4294901760
        %2476 = vmatmul.mubr.f32.gmra.mrb[0].mxu0 %v2475
        %v2477 = vpop.f32.mrb[0].mxu0
        %v2478 = vadd.f32 %v2025, %v2477
        %v2479 = vpop.f32.mrb[0].mxu0
        %v2480 = vand.u32 %v251, 4294901760
        %2481 = vmatprep.mubr.f32.mxu0 %v2480
        %v2482 = vand.u32 %v250, 4294901760
        %2483 = vmatmul.mubr.f32.gmra.mrb[0].mxu0 %v2482
        %v2484 = vpop.f32.mrb[0].mxu0
        %v2485 = vadd.f32 %v2036, %v2484
        %v2486 = vpop.f32.mrb[0].mxu0
        %v2487 = vand.u32 %v253, 4294901760
        %2488 = vmatprep.mubr.f32.mxu0 %v2487
        %v2489 = vand.u32 %v252, 4294901760
        %2490 = vmatmul.mubr.f32.gmra.mrb[0].mxu0 %v2489
        %v2491 = vpop.f32.mrb[0].mxu0
        %v2492 = vadd.f32 %v2047, %v2491
        %v2493 = vpop.f32.mrb[0].mxu0
        %v2494 = vand.u32 %v255, 4294901760
        %2495 = vmatprep.mubr.f32.mxu0 %v2494
        %v2496 = vand.u32 %v254, 4294901760
        %2497 = vmatmul.mubr.f32.gmra.mrb[0].mxu0 %v2496
        %v2498 = vpop.f32.mrb[0].mxu0
        %v2499 = vadd.f32 %v2058, %v2498
        %v2500 = vpop.f32.mrb[0].mxu0
        %v2501 = vand.u32 %v257, 4294901760
        %2502 = vmatprep.mubr.f32.mxu0 %v2501
        %v2503 = vand.u32 %v256, 4294901760
        %2504 = vmatmul.mubr.f32.gmra.mrb[0].mxu0 %v2503
        %v2505 = vpop.f32.mrb[0].mxu0
        %v2506 = vadd.f32 %v2069, %v2505
        %v2507 = vpop.f32.mrb[0].mxu0
        %v2508 = vand.u32 %v259, 4294901760
        %2509 = vmatprep.mubr.f32.mxu0 %v2508
        %v2510 = vand.u32 %v258, 4294901760
        %2511 = vmatmul.mubr.f32.gmra.mrb[0].mxu0 %v2510
        %v2512 = vpop.f32.mrb[0].mxu0
        %v2513 = vadd.f32 %v2080, %v2512
        %v2514 = vpop.f32.mrb[0].mxu0
        %v2515 = vand.u32 %v261, 4294901760
        %2516 = vmatprep.mubr.f32.mxu0 %v2515
        %v2517 = vand.u32 %v260, 4294901760
        %2518 = vmatmul.mubr.f32.gmra.mrb[0].mxu0 %v2517
        %v2519 = vpop.f32.mrb[0].mxu0
        %v2520 = vadd.f32 %v2091, %v2519
        %v2521 = vpop.f32.mrb[0].mxu0
        %v2522 = vand.u32 %v263, 4294901760
        %2523 = vmatprep.mubr.f32.mxu0 %v2522
        %v2524 = vand.u32 %v262, 4294901760
        %2525 = vmatmul.mubr.f32.gmra.mrb[0].mxu0 %v2524
        %v2526 = vpop.f32.mrb[0].mxu0
        %v2527 = vadd.f32 %v2102, %v2526
        %v2528 = vpop.f32.mrb[0].mxu0
        %v2529 = vand.u32 %v265, 4294901760
        %2530 = vmatprep.mubr.f32.mxu0 %v2529
        %v2531 = vand.u32 %v264, 4294901760
        %2532 = vmatmul.mubr.f32.gmra.mrb[0].mxu0 %v2531
        %v2533 = vpop.f32.mrb[0].mxu0
        %v2534 = vadd.f32 %v2113, %v2533
        %v2535 = vpop.f32.mrb[0].mxu0
        %v2536 = vand.u32 %v267, 4294901760
        %2537 = vmatprep.mubr.f32.mxu0 %v2536
        %v2538 = vand.u32 %v266, 4294901760
        %2539 = vmatmul.mubr.f32.gmra.mrb[0].mxu0 %v2538
        %v2540 = vpop.f32.mrb[0].mxu0
        %v2541 = vadd.f32 %v2124, %v2540
        %v2542 = vpop.f32.mrb[0].mxu0
        %v2543 = vand.u32 %v269, 4294901760
        %2544 = vmatprep.mubr.f32.mxu0 %v2543
        %v2545 = vand.u32 %v268, 4294901760
        %2546 = vmatmul.mubr.f32.gmra.mrb[0].mxu0 %v2545
        %v2547 = vpop.f32.mrb[0].mxu0
        %v2548 = vadd.f32 %v2135, %v2547
        %v2549 = vpop.f32.mrb[0].mxu0
        %v2550 = vand.u32 %v271, 4294901760
        %2551 = vmatprep.mubr.f32.mxu0 %v2550
        %v2552 = vand.u32 %v270, 4294901760
        %2553 = vmatmul.mubr.f32.gmra.mrb[0].mxu0 %v2552
        %v2554 = vpop.f32.mrb[0].mxu0
        %v2555 = vadd.f32 %v2146, %v2554
        %v2556 = vpop.f32.mrb[0].mxu0
        %v2557 = vand.u32 %v273, 4294901760
        %2558 = vmatprep.mubr.f32.mxu0 %v2557
        %v2559 = vand.u32 %v272, 4294901760
        %2560 = vmatmul.mubr.f32.gmra.mrb[0].mxu0 %v2559
        %v2561 = vpop.f32.mrb[0].mxu0
        %v2562 = vadd.f32 %v2157, %v2561
        %v2563 = vpop.f32.mrb[0].mxu0
        %v2564 = vand.u32 %v275, 4294901760
        %2565 = vmatprep.mubr.f32.mxu0 %v2564
        %v2566 = vand.u32 %v274, 4294901760
        %2567 = vmatmul.mubr.f32.gmra.mrb[0].mxu0 %v2566
        %v2568 = vpop.f32.mrb[0].mxu0
        %v2569 = vadd.f32 %v2168, %v2568
        %v2570 = vpop.f32.mrb[0].mxu0
        %v2571 = vand.u32 %v277, 4294901760
        %2572 = vmatprep.mubr.f32.mxu0 %v2571
        %v2573 = vand.u32 %v276, 4294901760
        %2574 = vmatmul.mubr.f32.gmra.mrb[0].mxu0 %v2573
        %v2575 = vpop.f32.mrb[0].mxu0
        %v2576 = vadd.f32 %v2179, %v2575
        %v2577 = vpop.f32.mrb[0].mxu0
        %v2578 = vand.u32 %v279, 4294901760
        %2579 = vmatprep.mubr.f32.mxu0 %v2578
        %v2580 = vand.u32 %v278, 4294901760
        %2581 = vmatmul.mubr.f32.gmra.mrb[0].mxu0 %v2580
        %v2582 = vpop.f32.mrb[0].mxu0
        %v2583 = vadd.f32 %v2190, %v2582
        %v2584 = vpop.f32.mrb[0].mxu0
        %v2585 = vand.u32 %v281, 4294901760
        %2586 = vmatprep.mubr.f32.mxu0 %v2585
        %v2587 = vand.u32 %v280, 4294901760
        %2588 = vmatmul.mubr.f32.gmra.mrb[0].mxu0 %v2587
        %v2589 = vpop.f32.mrb[0].mxu0
        %v2590 = vadd.f32 %v2201, %v2589
        %v2591 = vpop.f32.mrb[0].mxu0
        %v2592 = vand.u32 %v283, 4294901760
        %2593 = vmatprep.mubr.f32.mxu0 %v2592
        %v2594 = vand.u32 %v282, 4294901760
        %2595 = vmatmul.mubr.f32.gmra.mrb[0].mxu0 %v2594
        %v2596 = vpop.f32.mrb[0].mxu0
        %v2597 = vadd.f32 %v2212, %v2596
        %v2598 = vpop.f32.mrb[0].mxu0
        %2599 = vdwg.mxu0
        %2600 = vmatprep.subr.mxu0 0.0
        %v2601 = vand.u32 %v284, 4294901760
        %2602 = vmatpush1.msra.mxu0 %v2601
        %2603 = vmatprep.subr.mxu0 0.0
        %v2604 = vand.u32 %v285, 4294901760
        %2605 = vmatpush1.msra.mxu0 %v2604
        %2606 = vmatprep.subr.mxu0 0.0
        %v2607 = vand.u32 %v286, 4294901760
        %2608 = vmatpush1.msra.mxu0 %v2607
        %2609 = vmatprep.subr.mxu0 0.0
        %v2610 = vand.u32 %v287, 4294901760
        %2611 = vmatpush1.msra.mxu0 %v2610
        %2612 = vmatprep.subr.mxu0 0.0
        %v2613 = vand.u32 %v288, 4294901760
        %2614 = vmatpush1.msra.mxu0 %v2613
        %2615 = vmatprep.subr.mxu0 0.0
        %v2616 = vand.u32 %v289, 4294901760
        %2617 = vmatpush1.msra.mxu0 %v2616
        %2618 = vmatprep.subr.mxu0 0.0
        %v2619 = vand.u32 %v290, 4294901760
        %2620 = vmatpush1.msra.mxu0 %v2619
        %2621 = vmatprep.subr.mxu0 0.0
        %v2622 = vand.u32 %v291, 4294901760
        %2623 = vmatpush1.msra.mxu0 %v2622
        %2624 = vmatprep.subr.mxu0 0.0
        %v2625 = vand.u32 %v292, 4294901760
        %2626 = vmatpush1.msra.mxu0 %v2625
        %2627 = vmatprep.subr.mxu0 0.0
        %v2628 = vand.u32 %v293, 4294901760
        %2629 = vmatpush1.msra.mxu0 %v2628
        %2630 = vmatprep.subr.mxu0 0.0
        %v2631 = vand.u32 %v294, 4294901760
        %2632 = vmatpush1.msra.mxu0 %v2631
        %2633 = vmatprep.subr.mxu0 0.0
        %v2634 = vand.u32 %v295, 4294901760
        %2635 = vmatpush1.msra.mxu0 %v2634
        %2636 = vmatprep.subr.mxu0 0.0
        %v2637 = vand.u32 %v296, 4294901760
        %2638 = vmatpush1.msra.mxu0 %v2637
        %2639 = vmatprep.subr.mxu0 0.0
        %v2640 = vand.u32 %v297, 4294901760
        %2641 = vmatpush1.msra.mxu0 %v2640
        %2642 = vmatprep.subr.mxu0 0.0
        %v2643 = vand.u32 %v298, 4294901760
        %2644 = vmatpush1.msra.mxu0 %v2643
        %2645 = vmatprep.subr.mxu0 0.0
        %v2646 = vand.u32 %v299, 4294901760
        %2647 = vmatpush1.msra.mxu0 %v2646
        %2648 = vmatprep.subr.mxu0 0.0
        %v2649 = vand.u32 %v300, 4294901760
        %2650 = vmatpush1.msra.mxu0 %v2649
        %2651 = vmatprep.subr.mxu0 0.0
        %v2652 = vand.u32 %v301, 4294901760
        %2653 = vmatpush1.msra.mxu0 %v2652
        %2654 = vmatprep.subr.mxu0 0.0
        %v2655 = vand.u32 %v302, 4294901760
        %2656 = vmatpush1.msra.mxu0 %v2655
        %2657 = vmatprep.subr.mxu0 0.0
        %v2658 = vand.u32 %v303, 4294901760
        %2659 = vmatpush1.msra.mxu0 %v2658
        %2660 = vmatprep.subr.mxu0 0.0
        %v2661 = vand.u32 %v304, 4294901760
        %2662 = vmatpush1.msra.mxu0 %v2661
        %2663 = vmatprep.subr.mxu0 0.0
        %v2664 = vand.u32 %v305, 4294901760
        %2665 = vmatpush1.msra.mxu0 %v2664
        %2666 = vmatprep.subr.mxu0 0.0
        %v2667 = vand.u32 %v306, 4294901760
        %2668 = vmatpush1.msra.mxu0 %v2667
        %2669 = vmatprep.subr.mxu0 0.0
        %v2670 = vand.u32 %v307, 4294901760
        %2671 = vmatpush1.msra.mxu0 %v2670
        %2672 = vmatprep.subr.mxu0 0.0
        %v2673 = vand.u32 %v308, 4294901760
        %2674 = vmatpush1.msra.mxu0 %v2673
        %2675 = vmatprep.subr.mxu0 0.0
        %v2676 = vand.u32 %v309, 4294901760
        %2677 = vmatpush1.msra.mxu0 %v2676
        %2678 = vmatprep.subr.mxu0 0.0
        %v2679 = vand.u32 %v310, 4294901760
        %2680 = vmatpush1.msra.mxu0 %v2679
        %2681 = vmatprep.subr.mxu0 0.0
        %v2682 = vand.u32 %v311, 4294901760
        %2683 = vmatpush1.msra.mxu0 %v2682
        %2684 = vmatprep.subr.mxu0 0.0
        %v2685 = vand.u32 %v312, 4294901760
        %2686 = vmatpush1.msra.mxu0 %v2685
        %2687 = vmatprep.subr.mxu0 0.0
        %v2688 = vand.u32 %v313, 4294901760
        %2689 = vmatpush1.msra.mxu0 %v2688
        %2690 = vmatprep.subr.mxu0 0.0
        %v2691 = vand.u32 %v314, 4294901760
        %2692 = vmatpush1.msra.mxu0 %v2691
        %2693 = vmatprep.subr.mxu0 0.0
        %v2694 = vand.u32 %v315, 4294901760
        %2695 = vmatpush1.msra.mxu0 %v2694
        %v2696 = vand.u32 %v221, 4294901760
        %2697 = vmatprep.mubr.f32.mxu0 %v2696
        %v2698 = vand.u32 %v220, 4294901760
        %2699 = vmatmul.mubr.f32.gmra.mrb[0].mxu0 %v2698
        %v2700 = vpop.f32.mrb[0].mxu0
        %v2701 = vadd.f32 %v2380, %v2700
        %v2702 = vpop.f32.mrb[0].mxu0
        %v2703 = vand.u32 %v223, 4294901760
        %2704 = vmatprep.mubr.f32.mxu0 %v2703
        %v2705 = vand.u32 %v222, 4294901760
        %2706 = vmatmul.mubr.f32.gmra.mrb[0].mxu0 %v2705
        %v2707 = vpop.f32.mrb[0].mxu0
        %v2708 = vadd.f32 %v2387, %v2707
        %v2709 = vpop.f32.mrb[0].mxu0
        %v2710 = vand.u32 %v225, 4294901760
        %2711 = vmatprep.mubr.f32.mxu0 %v2710
        %v2712 = vand.u32 %v224, 4294901760
        %2713 = vmatmul.mubr.f32.gmra.mrb[0].mxu0 %v2712
        %v2714 = vpop.f32.mrb[0].mxu0
        %v2715 = vadd.f32 %v2394, %v2714
        %v2716 = vpop.f32.mrb[0].mxu0
        %v2717 = vand.u32 %v227, 4294901760
        %2718 = vmatprep.mubr.f32.mxu0 %v2717
        %v2719 = vand.u32 %v226, 4294901760
        %2720 = vmatmul.mubr.f32.gmra.mrb[0].mxu0 %v2719
        %v2721 = vpop.f32.mrb[0].mxu0
        %v2722 = vadd.f32 %v2401, %v2721
        %v2723 = vpop.f32.mrb[0].mxu0
        %v2724 = vand.u32 %v229, 4294901760
        %2725 = vmatprep.mubr.f32.mxu0 %v2724
        %v2726 = vand.u32 %v228, 4294901760
        %2727 = vmatmul.mubr.f32.gmra.mrb[0].mxu0 %v2726
        %v2728 = vpop.f32.mrb[0].mxu0
        %v2729 = vadd.f32 %v2408, %v2728
        %v2730 = vpop.f32.mrb[0].mxu0
        %v2731 = vand.u32 %v231, 4294901760
        %2732 = vmatprep.mubr.f32.mxu0 %v2731
        %v2733 = vand.u32 %v230, 4294901760
        %2734 = vmatmul.mubr.f32.gmra.mrb[0].mxu0 %v2733
        %v2735 = vpop.f32.mrb[0].mxu0
        %v2736 = vadd.f32 %v2415, %v2735
        %v2737 = vpop.f32.mrb[0].mxu0
        %v2738 = vand.u32 %v233, 4294901760
        %2739 = vmatprep.mubr.f32.mxu0 %v2738
        %v2740 = vand.u32 %v232, 4294901760
        %2741 = vmatmul.mubr.f32.gmra.mrb[0].mxu0 %v2740
        %v2742 = vpop.f32.mrb[0].mxu0
        %v2743 = vadd.f32 %v2422, %v2742
        %v2744 = vpop.f32.mrb[0].mxu0
        %v2745 = vand.u32 %v235, 4294901760
        %2746 = vmatprep.mubr.f32.mxu0 %v2745
        %v2747 = vand.u32 %v234, 4294901760
        %2748 = vmatmul.mubr.f32.gmra.mrb[0].mxu0 %v2747
        %v2749 = vpop.f32.mrb[0].mxu0
        %v2750 = vadd.f32 %v2429, %v2749
        %v2751 = vpop.f32.mrb[0].mxu0
        %v2752 = vand.u32 %v237, 4294901760
        %2753 = vmatprep.mubr.f32.mxu0 %v2752
        %v2754 = vand.u32 %v236, 4294901760
        %2755 = vmatmul.mubr.f32.gmra.mrb[0].mxu0 %v2754
        %v2756 = vpop.f32.mrb[0].mxu0
        %v2757 = vadd.f32 %v2436, %v2756
        %v2758 = vpop.f32.mrb[0].mxu0
        %v2759 = vand.u32 %v239, 4294901760
        %2760 = vmatprep.mubr.f32.mxu0 %v2759
        %v2761 = vand.u32 %v238, 4294901760
        %2762 = vmatmul.mubr.f32.gmra.mrb[0].mxu0 %v2761
        %v2763 = vpop.f32.mrb[0].mxu0
        %v2764 = vadd.f32 %v2443, %v2763
        %v2765 = vpop.f32.mrb[0].mxu0
        %v2766 = vand.u32 %v241, 4294901760
        %2767 = vmatprep.mubr.f32.mxu0 %v2766
        %v2768 = vand.u32 %v240, 4294901760
        %2769 = vmatmul.mubr.f32.gmra.mrb[0].mxu0 %v2768
        %v2770 = vpop.f32.mrb[0].mxu0
        %v2771 = vadd.f32 %v2450, %v2770
        %v2772 = vpop.f32.mrb[0].mxu0
        %v2773 = vand.u32 %v243, 4294901760
        %2774 = vmatprep.mubr.f32.mxu0 %v2773
        %v2775 = vand.u32 %v242, 4294901760
        %2776 = vmatmul.mubr.f32.gmra.mrb[0].mxu0 %v2775
        %v2777 = vpop.f32.mrb[0].mxu0
        %v2778 = vadd.f32 %v2457, %v2777
        %v2779 = vpop.f32.mrb[0].mxu0
        %v2780 = vand.u32 %v245, 4294901760
        %2781 = vmatprep.mubr.f32.mxu0 %v2780
        %v2782 = vand.u32 %v244, 4294901760
        %2783 = vmatmul.mubr.f32.gmra.mrb[0].mxu0 %v2782
        %v2784 = vpop.f32.mrb[0].mxu0
        %v2785 = vadd.f32 %v2464, %v2784
        %v2786 = vpop.f32.mrb[0].mxu0
        %v2787 = vand.u32 %v247, 4294901760
        %2788 = vmatprep.mubr.f32.mxu0 %v2787
        %v2789 = vand.u32 %v246, 4294901760
        %2790 = vmatmul.mubr.f32.gmra.mrb[0].mxu0 %v2789
        %v2791 = vpop.f32.mrb[0].mxu0
        %v2792 = vadd.f32 %v2471, %v2791
        %v2793 = vpop.f32.mrb[0].mxu0
        %v2794 = vand.u32 %v249, 4294901760
        %2795 = vmatprep.mubr.f32.mxu0 %v2794
        %v2796 = vand.u32 %v248, 4294901760
        %2797 = vmatmul.mubr.f32.gmra.mrb[0].mxu0 %v2796
        %v2798 = vpop.f32.mrb[0].mxu0
        %v2799 = vadd.f32 %v2478, %v2798
        %v2800 = vpop.f32.mrb[0].mxu0
        %v2801 = vand.u32 %v251, 4294901760
        %2802 = vmatprep.mubr.f32.mxu0 %v2801
        %v2803 = vand.u32 %v250, 4294901760
        %2804 = vmatmul.mubr.f32.gmra.mrb[0].mxu0 %v2803
        %v2805 = vpop.f32.mrb[0].mxu0
        %v2806 = vadd.f32 %v2485, %v2805
        %v2807 = vpop.f32.mrb[0].mxu0
        %v2808 = vand.u32 %v253, 4294901760
        %2809 = vmatprep.mubr.f32.mxu0 %v2808
        %v2810 = vand.u32 %v252, 4294901760
        %2811 = vmatmul.mubr.f32.gmra.mrb[0].mxu0 %v2810
        %v2812 = vpop.f32.mrb[0].mxu0
        %v2813 = vadd.f32 %v2492, %v2812
        %v2814 = vpop.f32.mrb[0].mxu0
        %v2815 = vand.u32 %v255, 4294901760
        %2816 = vmatprep.mubr.f32.mxu0 %v2815
        %v2817 = vand.u32 %v254, 4294901760
        %2818 = vmatmul.mubr.f32.gmra.mrb[0].mxu0 %v2817
        %v2819 = vpop.f32.mrb[0].mxu0
        %v2820 = vadd.f32 %v2499, %v2819
        %v2821 = vpop.f32.mrb[0].mxu0
        %v2822 = vand.u32 %v257, 4294901760
        %2823 = vmatprep.mubr.f32.mxu0 %v2822
        %v2824 = vand.u32 %v256, 4294901760
        %2825 = vmatmul.mubr.f32.gmra.mrb[0].mxu0 %v2824
        %v2826 = vpop.f32.mrb[0].mxu0
        %v2827 = vadd.f32 %v2506, %v2826
        %v2828 = vpop.f32.mrb[0].mxu0
        %v2829 = vand.u32 %v259, 4294901760
        %2830 = vmatprep.mubr.f32.mxu0 %v2829
        %v2831 = vand.u32 %v258, 4294901760
        %2832 = vmatmul.mubr.f32.gmra.mrb[0].mxu0 %v2831
        %v2833 = vpop.f32.mrb[0].mxu0
        %v2834 = vadd.f32 %v2513, %v2833
        %v2835 = vpop.f32.mrb[0].mxu0
        %v2836 = vand.u32 %v261, 4294901760
        %2837 = vmatprep.mubr.f32.mxu0 %v2836
        %v2838 = vand.u32 %v260, 4294901760
        %2839 = vmatmul.mubr.f32.gmra.mrb[0].mxu0 %v2838
        %v2840 = vpop.f32.mrb[0].mxu0
        %v2841 = vadd.f32 %v2520, %v2840
        %v2842 = vpop.f32.mrb[0].mxu0
        %v2843 = vand.u32 %v263, 4294901760
        %2844 = vmatprep.mubr.f32.mxu0 %v2843
        %v2845 = vand.u32 %v262, 4294901760
        %2846 = vmatmul.mubr.f32.gmra.mrb[0].mxu0 %v2845
        %v2847 = vpop.f32.mrb[0].mxu0
        %v2848 = vadd.f32 %v2527, %v2847
        %v2849 = vpop.f32.mrb[0].mxu0
        %v2850 = vand.u32 %v265, 4294901760
        %2851 = vmatprep.mubr.f32.mxu0 %v2850
        %v2852 = vand.u32 %v264, 4294901760
        %2853 = vmatmul.mubr.f32.gmra.mrb[0].mxu0 %v2852
        %v2854 = vpop.f32.mrb[0].mxu0
        %v2855 = vadd.f32 %v2534, %v2854
        %v2856 = vpop.f32.mrb[0].mxu0
        %v2857 = vand.u32 %v267, 4294901760
        %2858 = vmatprep.mubr.f32.mxu0 %v2857
        %v2859 = vand.u32 %v266, 4294901760
        %2860 = vmatmul.mubr.f32.gmra.mrb[0].mxu0 %v2859
        %v2861 = vpop.f32.mrb[0].mxu0
        %v2862 = vadd.f32 %v2541, %v2861
        %v2863 = vpop.f32.mrb[0].mxu0
        %v2864 = vand.u32 %v269, 4294901760
        %2865 = vmatprep.mubr.f32.mxu0 %v2864
        %v2866 = vand.u32 %v268, 4294901760
        %2867 = vmatmul.mubr.f32.gmra.mrb[0].mxu0 %v2866
        %v2868 = vpop.f32.mrb[0].mxu0
        %v2869 = vadd.f32 %v2548, %v2868
        %v2870 = vpop.f32.mrb[0].mxu0
        %v2871 = vand.u32 %v271, 4294901760
        %2872 = vmatprep.mubr.f32.mxu0 %v2871
        %v2873 = vand.u32 %v270, 4294901760
        %2874 = vmatmul.mubr.f32.gmra.mrb[0].mxu0 %v2873
        %v2875 = vpop.f32.mrb[0].mxu0
        %v2876 = vadd.f32 %v2555, %v2875
        %v2877 = vpop.f32.mrb[0].mxu0
        %v2878 = vand.u32 %v273, 4294901760
        %2879 = vmatprep.mubr.f32.mxu0 %v2878
        %v2880 = vand.u32 %v272, 4294901760
        %2881 = vmatmul.mubr.f32.gmra.mrb[0].mxu0 %v2880
        %v2882 = vpop.f32.mrb[0].mxu0
        %v2883 = vadd.f32 %v2562, %v2882
        %v2884 = vpop.f32.mrb[0].mxu0
        %v2885 = vand.u32 %v275, 4294901760
        %2886 = vmatprep.mubr.f32.mxu0 %v2885
        %v2887 = vand.u32 %v274, 4294901760
        %2888 = vmatmul.mubr.f32.gmra.mrb[0].mxu0 %v2887
        %v2889 = vpop.f32.mrb[0].mxu0
        %v2890 = vadd.f32 %v2569, %v2889
        %v2891 = vpop.f32.mrb[0].mxu0
        %v2892 = vand.u32 %v277, 4294901760
        %2893 = vmatprep.mubr.f32.mxu0 %v2892
        %v2894 = vand.u32 %v276, 4294901760
        %2895 = vmatmul.mubr.f32.gmra.mrb[0].mxu0 %v2894
        %v2896 = vpop.f32.mrb[0].mxu0
        %v2897 = vadd.f32 %v2576, %v2896
        %v2898 = vpop.f32.mrb[0].mxu0
        %v2899 = vand.u32 %v279, 4294901760
        %2900 = vmatprep.mubr.f32.mxu0 %v2899
        %v2901 = vand.u32 %v278, 4294901760
        %2902 = vmatmul.mubr.f32.gmra.mrb[0].mxu0 %v2901
        %v2903 = vpop.f32.mrb[0].mxu0
        %v2904 = vadd.f32 %v2583, %v2903
        %v2905 = vpop.f32.mrb[0].mxu0
        %v2906 = vand.u32 %v281, 4294901760
        %2907 = vmatprep.mubr.f32.mxu0 %v2906
        %v2908 = vand.u32 %v280, 4294901760
        %2909 = vmatmul.mubr.f32.gmra.mrb[0].mxu0 %v2908
        %v2910 = vpop.f32.mrb[0].mxu0
        %v2911 = vadd.f32 %v2590, %v2910
        %v2912 = vpop.f32.mrb[0].mxu0
        %v2913 = vand.u32 %v283, 4294901760
        %2914 = vmatprep.mubr.f32.mxu0 %v2913
        %v2915 = vand.u32 %v282, 4294901760
        %2916 = vmatmul.mubr.f32.gmra.mrb[0].mxu0 %v2915
        %v2917 = vpop.f32.mrb[0].mxu0
        %v2918 = vadd.f32 %v2597, %v2917
        %v2919 = vpop.f32.mrb[0].mxu0
        %2920 = vdwg.mxu0
        %2921 = vst [vmem:[%s204] sm:$0xff] %v2701
        %2922 = vst [vmem:[%s204 + $0x8] sm:$0xff] %v2708
        %2923 = vst [vmem:[%s204 + $0x10] sm:$0xff] %v2715
        %2924 = vst [vmem:[%s204 + $0x18] sm:$0xff] %v2722
        %2925 = vst [vmem:[%s204 + $0x20] sm:$0xff] %v2729
        %2926 = vst [vmem:[%s204 + $0x28] sm:$0xff] %v2736
        %2927 = vst [vmem:[%s204 + $0x30] sm:$0xff] %v2743
        %2928 = vst [vmem:[%s204 + $0x38] sm:$0xff] %v2750
        %2929 = vst [vmem:[%s204 + $0x40] sm:$0xff] %v2757
        %2930 = vst [vmem:[%s204 + $0x48] sm:$0xff] %v2764
        %2931 = vst [vmem:[%s204 + $0x50] sm:$0xff] %v2771
        %2932 = vst [vmem:[%s204 + $0x58] sm:$0xff] %v2778
        %2933 = vst [vmem:[%s204 + $0x60] sm:$0xff] %v2785
        %2934 = vst [vmem:[%s204 + $0x68] sm:$0xff] %v2792
        %2935 = vst [vmem:[%s204 + $0x70] sm:$0xff] %v2799
        %2936 = vst [vmem:[%s204 + $0x78] sm:$0xff] %v2806
        %2937 = vst [vmem:[%s204 + $0x80] sm:$0xff] %v2813
        %2938 = vst [vmem:[%s204 + $0x88] sm:$0xff] %v2820
        %2939 = vst [vmem:[%s204 + $0x90] sm:$0xff] %v2827
        %2940 = vst [vmem:[%s204 + $0x98] sm:$0xff] %v2834
        %2941 = vst [vmem:[%s204 + $0xa0] sm:$0xff] %v2841
        %2942 = vst [vmem:[%s204 + $0xa8] sm:$0xff] %v2848
        %2943 = vst [vmem:[%s204 + $0xb0] sm:$0xff] %v2855
        %2944 = vst [vmem:[%s204 + $0xb8] sm:$0xff] %v2862
        %2945 = vst [vmem:[%s204 + $0xc0] sm:$0xff] %v2869
        %2946 = vst [vmem:[%s204 + $0xc8] sm:$0xff] %v2876
        %2947 = vst [vmem:[%s204 + $0xd0] sm:$0xff] %v2883
        %2948 = vst [vmem:[%s204 + $0xd8] sm:$0xff] %v2890
        %2949 = vst [vmem:[%s204 + $0xe0] sm:$0xff] %v2897
        %2950 = vst [vmem:[%s204 + $0xe8] sm:$0xff] %v2904
        %2951 = vst [vmem:[%s204 + $0xf0] sm:$0xff] %v2911
        %2952 = vst [vmem:[%s204 + $0xf8] sm:$0xff] %v2918
        %s2953 = sand.u32 %s117, 1
        %s2954 = scalar_lea.sflag [#allocation3], %s2953
        %s2955 = sand.u32 %s117, 1
        %s2956 = smul.addr %s2955, 256
        %s2957 = scalar_lea.vmem [#allocation2], %s2956
        // Predicated region
        $region33: #{_forward_core.1} parent=31 // pred_check
          %p2958 = pneg %p127
        $region34: #{_forward_core.1} parent=31 // pred_check_branch
          %2960 = sbr.rel (%p2958) target = $region36
        $region35: #{_forward_core.1} parent=31 // pred_region
          %s2961 = smul.u32 32, %s21
          %s2963 = ssub.s32 4096, 4096
          %2964 = vsyncadd %s2954, %s2963
          %s2965 = sadd.s32 %s22, %s2961
          %s2966 = smul.addr %s2965, 128
          %s2967 = scalar_lea.hbm %s3, %s2966
          %s2968 = sshll.u32 %s2957, 4
          %s2969 = int_to_ptr.vmem [resolvable:$true] %s2968
          %2974 = dma.vmem_to_hbm [thread:$0]  %s2969, 4096, %s2967, %s2954, 128, 128, 8
        $region36: #{_forward_core.1} parent=31 // pred_fallthru
          _
      $region32: #{_forward_core.1} parent=5 // pred_fallthru
        _
      %p2975 = scmp.le.s32.totalorder 2, %s12
      // Predicated region
      $region37: #{_forward_core.1} parent=5 // pred_check
        %p2976 = pneg %p2975
      $region38: #{_forward_core.1} parent=5 // pred_check_branch
        %2978 = sbr.rel (%p2976) target = $region40
      $region39: #{_forward_core.1} parent=5 // pred_region
        %s2979 = ssub.s32 %s12, 2
        // Predicated region
        $region41: #{_forward_core.1} parent=39 // pred_check
          %p2980 = pneg %p133
        $region42: #{_forward_core.1} parent=39 // pred_check_branch
          %2982 = sbr.rel (%p2980) target = $region44
        $region43: #{_forward_core.1} parent=39 // pred_region
          %s2983 = sand.u32 %s118, 1
          %s2984 = scalar_lea.sflag [#allocation3], %s2983
          %s2985 = sand.u32 %s118, 1
          %s2986 = smul.addr %s2985, 256
          %s2987 = scalar_lea.vmem [#allocation2], %s2986
          %2988 = dma.done %s2984, 4096
        $region44: #{_forward_core.1} parent=39 // pred_fallthru
          _
      $region40: #{_forward_core.1} parent=5 // pred_fallthru
        _
    $region6: #{_forward_core.1} parent=1 // loop_footer
      %s16 = sadd.s32 1, %s12
    $region7: #{_forward_core.1} parent=1 // loop_footer_branch
      %11 = sbr.rel target = $region3
    $region8: #{_forward_core.1} parent=1 // loop_exit
      _
    %2989 = vsyncpa [#allocation3], 1
    %s2990 = scalar_lea.sflag [#allocation3], 1
    %2991 = vsyncpa %s2990, 1

</llo_original>
